<compile_context>
chip_gen: v7x
topology: tpu7x:2x2x1
jax: 0.10.0
libtpu: 0.0.40
codegen_flags: <defaults>
</compile_context>

<pallas_src>
import jax
import jax.numpy as jnp
import numpy as np
from jax import lax
from jax.experimental import pallas as pl
from jax.experimental.pallas import tpu as pltpu

RELPOS_BINS = 17  # clamp(i - j, -8, 8) -> 17 bins


def _pair_embed_kernel(a_ref, m_ref, x_ref, w1_ref, b1_ref, w2t_ref, rel_ref, out_ref):
    # a_ref:   (1, L, dm)       j-side factor a[b, j, c]                       (f32)
    # m_ref:   (1, TI, dm, P)   i-side factor m[b, i, c, p] = sum_d a[b,i,d]*W2op[p,c,d]
    # x_ref:   (1, TI, L)       bppm rows i of this tile, lane-dense in j      (f32)
    # w1_ref:  (H, 1)  b1_ref: (H, 1)  w2t_ref: (H, P)   pair-MLP weights      (f32)
    # rel_ref: (TI, 2L-TI, P)   banded relpos rows + (b_pd2 + b_rel + b2m)     (bf16)
    # out_ref: (1, TI, L, P)    standard-layout output block                   (bf16)
    it = pl.program_id(1)
    ti = m_ref.shape[1]
    L = a_ref.shape[1]

    a = a_ref[0]                       # (L, dm)
    x = x_ref[0]                       # (TI, L)
    w1 = w1_ref[...]                   # (H, 1)   (hoisted out of the t loop)
    b1 = b1_ref[...]                   # (H, 1)
    w2t = w2t_ref[...]                 # (H, P)

    # sublane-aligned start of this tile's band in the relpos table
    s = pl.multiple_of((L - ti) - it * ti, 8)

    # Matmul precision is deliberately DEFAULT (single bf16 MXU pass) — same as the
    # XLA reference; the MXU is K-starved here so HIGHEST would only cost time.
    prec = lax.Precision.DEFAULT

    # Static unroll over the TI rows of this i-tile; each iteration ends in a store,
    # keeping live temporaries small.  (For TI >= 32 switch to lax.fori_loop.)
    for t in range(ti):
        # --- Outer_Product_Mean: outer[j, p] = sum_c a[j, c] * m[t, c, p]  (MXU) ---
        outer_t = jnp.dot(a, m_ref[0, t],
                          preferred_element_type=jnp.float32, precision=prec)   # (L, P)

        # --- pair MLP: hidden in (H, L) orientation, j stays on lanes ---
        h_t = jnp.maximum(w1 * x[t:t + 1, :] + b1, 0.0)                         # (H, L)
        # transposed-lhs matmul contracts H and lands j on sublanes / p on lanes
        mlp_t = jnp.dot(h_t.T, w2t,
                        preferred_element_type=jnp.float32, precision=prec)     # (L, P)

        # --- relpos row (+ all biases): one aligned slice of the banded table ---
        rel_t = rel_ref[t, pl.ds(s, L), :].astype(jnp.float32)                  # (L, P)

        out_ref[0, t] = (outer_t + mlp_t + rel_t).astype(out_ref.dtype)


def pair_embedding_forward(seq_rep, bppm, tp, *, ti=8, out_dtype=jnp.bfloat16,
                           vmem_limit_bytes=None):
    B, L, _ = seq_rep.shape
    dm = tp["w_pd1"].shape[0]            # dim_msa
    H = tp["w1m"].shape[0]               # d_hidden
    P = tp["w_pd2"].shape[0]             # d_pair
    assert ti % 8 == 0 and L % ti == 0, "TI must be a multiple of 8 and divide L"

    # ---- hoisted proj_down1 (tiny; XLA) ----
    a = (seq_rep @ tp["w_pd1"].T + tp["b_pd1"]).astype(jnp.float32)        # (B, L, dm)

    # ---- i-side half of the outer product, contracted with proj_down2 (tiny; XLA):
    #      m[b, i, c, p] = sum_d a[b, i, d] * W_pd2[p, c*dm + d]
    w2op = tp["w_pd2"].reshape(P, dm, dm)                                   # [p, c, d]
    m = jnp.einsum('bid,pcd->bicp', a, w2op)                                # (B, L, dm, P)

    # ---- banded relpos table with all three output biases folded in (bf16):
    #      RT[t, u, p] = W_rel[p, clip(t + (L-ti) - u, -8, 8) + 8] + b_total[p]
    #      so RT[t, ((L-ti) - it*ti) + j, p] == rel(i - j)[p] + b_total[p], i = it*ti + t
    K = 2 * L - ti
    uu = jnp.arange(K)[None, :]
    tt = jnp.arange(ti)[:, None]
    dclip = jnp.clip(tt + (L - ti) - uu, -8, 8) + 8                         # (ti, K)
    b_total = tp["b_pd2"] + tp["b_rel"] + tp["b2m"]                         # (P,)
    rel_tbl = (tp["w_rel"].T[dclip] + b_total).astype(jnp.bfloat16)         # (ti, K, P)

    w1 = tp["w1m"].astype(jnp.float32)                                      # (H, 1)
    b1 = tp["b1m"][:, None].astype(jnp.float32)                             # (H, 1)
    w2t = tp["w2m"].T.astype(jnp.float32)                                   # (H, P)

    if vmem_limit_bytes is None:
        # Rough per-step VMEM footprint (lane-padded, double-buffered where pipelined).
        # Guidance: v5e/v6e can run TI=32..64 with a ~100 MiB cap; v7x (64 MiB VMEM)
        # should keep TI<=16..32 so this stays <= ~56 MiB.
        pad = lambda n: -(-n // 128) * 128
        ob = np.dtype(out_dtype).itemsize
        est = (2 * ti * L * pad(P) * ob            # out block
               + 2 * ti * dm * pad(P) * 4          # m block
               + 2 * ti * pad(L) * 4               # bppm slab
               + 2 * L * pad(dm) * 4               # a (per-batch resident)
               + ti * K * pad(P) * 2               # rel table (bf16)
               + 4 * H * pad(max(L, P)) * 4        # mlp weights + (H, L) hidden temp
               + 6 * L * pad(P) * 4)               # (L, P) f32 temporaries
        vmem_limit_bytes = int(min(100 * 2**20, max(32 * 2**20, 2 * est)))

    grid = (B, L // ti)

    def _call(single_buffer_consts):
        def const_spec(shape):
            imap = lambda b, it, _n=len(shape): (0,) * _n
            if single_buffer_consts:
                # constant index map -> single buffer is enough (halves resident VMEM)
                return pl.BlockSpec(shape, imap, pipeline_mode=pl.Buffered(1))
            return pl.BlockSpec(shape, imap)

        return pl.pallas_call(
            _pair_embed_kernel,
            out_shape=jax.ShapeDtypeStruct((B, L, L, P), out_dtype),
            grid_spec=pltpu.PrefetchScalarGridSpec(
                num_scalar_prefetch=0,
                grid=grid,
                in_specs=[
                    pl.BlockSpec((1, L, dm), lambda b, it: (b, 0, 0)),          # a (all j)
                    pl.BlockSpec((1, ti, dm, P), lambda b, it: (b, it, 0, 0)),  # m rows i
                    pl.BlockSpec((1, ti, L), lambda b, it: (b, it, 0)),         # bppm slab
                    const_spec((H, 1)),                                          # w1
                    const_spec((H, 1)),                                          # b1
                    const_spec((H, P)),                                          # w2^T
                    const_spec((ti, K, P)),                                      # rel table
                ],
                out_specs=pl.BlockSpec((1, ti, L, P), lambda b, it: (b, it, 0, 0)),
            ),
            compiler_params=pltpu.CompilerParams(
                # every (b, i-tile) step is independent -> shard over v7x's 2 TCs
                dimension_semantics=("parallel", "parallel"),
                vmem_limit_bytes=vmem_limit_bytes,
            ),
        )(a, m, bppm.astype(jnp.float32), w1, b1, w2t, rel_tbl)

    try:
        return _call(True)
    except Exception:
        # pipeline_mode=pl.Buffered(1) not accepted by this JAX build: fall back to
        # default double-buffered resident constants (correctness unchanged).
        return _call(False)


# ---------------- deterministic parameter init (torch Linear shapes) ----------------
def init_params(key, d_seq, d_pair, d_hidden, dim_msa):
    ks = jax.random.split(key, 10)

    def unif(k, shape, fan_in):
        b = 1.0 / np.sqrt(fan_in)
        return jax.random.uniform(k, shape, jnp.float32, -b, b)

    return dict(
        # mlp = Linear(1, d_hidden) -> ReLU -> Linear(d_hidden, d_pair)
        w1m=unif(ks[0], (d_hidden, 1), 1),
        b1m=unif(ks[1], (d_hidden,), 1),
        w2m=unif(ks[2], (d_pair, d_hidden), d_hidden),
        b2m=unif(ks[3], (d_pair,), d_hidden),
        # Outer_Product_Mean: proj_down1 = Linear(d_seq, dim_msa),
        #                     proj_down2 = Linear(dim_msa**2, d_pair)
        w_pd1=unif(ks[4], (dim_msa, d_seq), d_seq),
        b_pd1=unif(ks[5], (dim_msa,), d_seq),
        w_pd2=unif(ks[6], (d_pair, dim_msa * dim_msa), dim_msa * dim_msa),
        b_pd2=unif(ks[7], (d_pair,), dim_msa * dim_msa),
        # relpos = Linear(17, d_pair)
        w_rel=unif(ks[8], (d_pair, RELPOS_BINS), RELPOS_BINS),
        b_rel=unif(ks[9], (d_pair,), RELPOS_BINS),
    )


# ---------------- pure-JAX reference (mirrors the PyTorch forward) ----------------
def reference_forward(seq_rep, bppm, tp):
    B, L, _ = seq_rep.shape
    dm = tp["w_pd1"].shape[0]
    # mlp(bppm.unsqueeze(-1))
    x = bppm[..., None]
    hid = jax.nn.relu(x @ tp["w1m"].T + tp["b1m"])
    pair_embed = hid @ tp["w2m"].T + tp["b2m"]
    # outer_product_mean(seq_rep)
    a = seq_rep @ tp["w_pd1"].T + tp["b_pd1"]
    op = jnp.einsum('bid,bjc->bijcd', a, a).reshape(B, L, L, dm * dm)
    outer = op @ tp["w_pd2"].T + tp["b_pd2"]
    # rel_pos_embed(seq_rep)
    res = jnp.arange(L)
    d = jnp.clip(res[:, None] - res[None, :], -8, 8)
    onehot = (d[..., None] == jnp.arange(-8, 9)).astype(jnp.float32)
    rel = onehot @ tp["w_rel"].T + tp["b_rel"]
    return outer + rel[None] + pair_embed


if __name__ == "__main__":
    key = jax.random.PRNGKey(0)

    cases = [
        # tiny smoke test
        dict(B=2, L=16, d_seq=32, d_pair=64, d_hidden=32, dim_msa=8, ti=8),
        # multi-tile grid, TI > 8, larger L / default d_hidden -> exercises the
        # dynamic band-table slice and multiple grid steps per batch
        dict(B=2, L=64, d_seq=48, d_pair=64, d_hidden=128, dim_msa=8, ti=16),
    ]

    for i, c in enumerate(cases):
        k1, k2, k3, key = jax.random.split(jax.random.fold_in(key, i), 4)
        seq_rep = jax.random.normal(k1, (c["B"], c["L"], c["d_seq"]), jnp.float32)
        bppm = jax.random.uniform(k2, (c["B"], c["L"], c["L"]), jnp.float32)
        tp = init_params(k3, c["d_seq"], c["d_pair"], c["d_hidden"], c["dim_msa"])

        out = pair_embedding_forward(seq_rep, bppm, tp, ti=c["ti"])
        out = jax.block_until_ready(out)

        assert out.shape == (c["B"], c["L"], c["L"], c["d_pair"])
        assert out.dtype == jnp.bfloat16

        ref = reference_forward(seq_rep, bppm, tp)
        np.testing.assert_allclose(np.asarray(out, dtype=np.float32),
                                   np.asarray(ref), rtol=2e-2, atol=2e-2)

    print("KERNEL_OK")
</pallas_src>

<mosaic_0001>
module attributes {stable_mosaic.version = 11 : i64} {
  func.func @_pair_embed_kernel(%arg0: i32, %arg1: i32, %arg2: memref<1x16x8xf32, #tpu.memory_space<vmem>>, %arg3: memref<1x8x8x64xf32, #tpu.memory_space<vmem>>, %arg4: memref<1x8x16xf32, #tpu.memory_space<vmem>>, %arg5: memref<32x1xf32, #tpu.memory_space<vmem>>, %arg6: memref<32x1xf32, #tpu.memory_space<vmem>>, %arg7: memref<32x64xf32, #tpu.memory_space<vmem>>, %arg8: memref<8x24x64xbf16, #tpu.memory_space<vmem>>, %arg9: memref<1x8x16x64xbf16, #tpu.memory_space<vmem>>) attributes {dimension_semantics = [#tpu.dimension_semantics<parallel>, #tpu.dimension_semantics<parallel>], iteration_bounds = array<i64: 2, 2>, scalar_prefetch = 0 : i64, scratch_operands = 0 : i64, tpu.core_type = #tpu.core_type<tc>, window_params = [{transform_indices = @transform_0, window_bounds = array<i64: 1, 16, 8>}, {transform_indices = @transform_1, window_bounds = array<i64: 1, 8, 8, 64>}, {transform_indices = @transform_2, window_bounds = array<i64: 1, 8, 16>}, {pipeline_mode = #tpu.pipeline_mode<synchronous>, transform_indices = @transform_3, window_bounds = array<i64: 32, 1>}, {pipeline_mode = #tpu.pipeline_mode<synchronous>, transform_indices = @transform_4, window_bounds = array<i64: 32, 1>}, {pipeline_mode = #tpu.pipeline_mode<synchronous>, transform_indices = @transform_5, window_bounds = array<i64: 32, 64>}, {pipeline_mode = #tpu.pipeline_mode<synchronous>, transform_indices = @transform_6, window_bounds = array<i64: 8, 24, 64>}, {transform_indices = @transform_7, window_bounds = array<i64: 1, 8, 16, 64>}]} {
    %c0 = arith.constant 0 : index
    %c0_0 = arith.constant 0 : index
    %c0_1 = arith.constant 0 : index
    %0 = vector.load %arg2[%c0, %c0_0, %c0_1] : memref<1x16x8xf32, #tpu.memory_space<vmem>>, vector<1x16x8xf32>
    %1 = vector.shape_cast %0 : vector<1x16x8xf32> to vector<16x8xf32>
    %c0_2 = arith.constant 0 : index
    %c0_3 = arith.constant 0 : index
    %c0_4 = arith.constant 0 : index
    %2 = vector.load %arg4[%c0_2, %c0_3, %c0_4] : memref<1x8x16xf32, #tpu.memory_space<vmem>>, vector<1x8x16xf32>
    %3 = vector.shape_cast %2 : vector<1x8x16xf32> to vector<8x16xf32>
    %c0_5 = arith.constant 0 : index
    %c0_6 = arith.constant 0 : index
    %4 = vector.load %arg5[%c0_5, %c0_6] : memref<32x1xf32, #tpu.memory_space<vmem>>, vector<32x1xf32>
    %c0_7 = arith.constant 0 : index
    %c0_8 = arith.constant 0 : index
    %5 = vector.load %arg6[%c0_7, %c0_8] : memref<32x1xf32, #tpu.memory_space<vmem>>, vector<32x1xf32>
    %c0_9 = arith.constant 0 : index
    %c0_10 = arith.constant 0 : index
    %6 = vector.load %arg7[%c0_9, %c0_10] : memref<32x64xf32, #tpu.memory_space<vmem>>, vector<32x64xf32>
    %c8_i32 = arith.constant 8 : i32
    %7 = arith.muli %arg1, %c8_i32 : i32
    %c8_i32_11 = arith.constant 8 : i32
    %8 = arith.subi %c8_i32_11, %7 : i32
    %9 = tpu.assume_multiple %8, 8 : i32
    %c0_12 = arith.constant 0 : index
    %c0_13 = arith.constant 0 : index
    %c0_14 = arith.constant 0 : index
    %c0_15 = arith.constant 0 : index
    %10 = vector.load %arg3[%c0_12, %c0_13, %c0_14, %c0_15] : memref<1x8x8x64xf32, #tpu.memory_space<vmem>>, vector<1x1x8x64xf32>
    %11 = vector.shape_cast %10 : vector<1x1x8x64xf32> to vector<8x64xf32>
    %cst = arith.constant dense<0.000000e+00> : vector<16x64xf32>
    %12 = tpu.matmul %1, %11, %cst {dimension_numbers = #tpu.dot_dimension_numbers<[1], [0], [0], [1], [0, 0, 1, 1], [], []>} : vector<16x8xf32>, vector<8x64xf32>, vector<16x64xf32> -> vector<16x64xf32>
    %13 = vector.extract_strided_slice %3 {offsets = [0, 0], sizes = [1, 16], strides = [1, 1]} : vector<8x16xf32> to vector<1x16xf32>
    %14 = vector.broadcast %4 : vector<32x1xf32> to vector<32x16xf32>
    %15 = vector.broadcast %13 : vector<1x16xf32> to vector<32x16xf32>
    %16 = arith.mulf %14, %15 : vector<32x16xf32>
    %17 = vector.broadcast %5 : vector<32x1xf32> to vector<32x16xf32>
    %18 = arith.addf %16, %17 : vector<32x16xf32>
    %cst_16 = arith.constant 0.000000e+00 : f32
    %19 = vector.broadcast %cst_16 : f32 to vector<32x16xf32>
    %20 = arith.maximumf %18, %19 : vector<32x16xf32>
    %21 = tpu.transpose %20, [1, 0] : vector<32x16xf32> -> vector<16x32xf32>
    %cst_17 = arith.constant dense<0.000000e+00> : vector<16x64xf32>
    %22 = tpu.matmul %21, %6, %cst_17 {dimension_numbers = #tpu.dot_dimension_numbers<[1], [0], [0], [1], [0, 0, 1, 1], [], []>} : vector<16x32xf32>, vector<32x64xf32>, vector<16x64xf32> -> vector<16x64xf32>
    %c0_18 = arith.constant 0 : index
    %23 = arith.index_cast %9 : i32 to index
    %c0_19 = arith.constant 0 : index
    %24 = vector.load %arg8[%c0_18, %23, %c0_19] : memref<8x24x64xbf16, #tpu.memory_space<vmem>>, vector<1x16x64xbf16>
    %25 = vector.shape_cast %24 : vector<1x16x64xbf16> to vector<16x64xbf16>
    %26 = arith.extf %25 : vector<16x64xbf16> to vector<16x64xf32>
    %27 = arith.addf %12, %22 : vector<16x64xf32>
    %28 = arith.addf %27, %26 : vector<16x64xf32>
    %29 = arith.truncf %28 : vector<16x64xf32> to vector<16x64xbf16>
    %c0_20 = arith.constant 0 : index
    %c0_21 = arith.constant 0 : index
    %c0_22 = arith.constant 0 : index
    %c0_23 = arith.constant 0 : index
    %30 = vector.load %arg9[%c0_20, %c0_21, %c0_22, %c0_23] : memref<1x8x16x64xbf16, #tpu.memory_space<vmem>>, vector<1x1x16x64xbf16>
    %31 = vector.shape_cast %30 : vector<1x1x16x64xbf16> to vector<16x64xbf16>
    %32 = vector.shape_cast %29 : vector<16x64xbf16> to vector<1x1x16x64xbf16>
    tpu.vector_store %arg9[%c0_20, %c0_21, %c0_22, %c0_23], %32 {strides = array<i32>} : memref<1x8x16x64xbf16, #tpu.memory_space<vmem>>, vector<1x1x16x64xbf16>,
    %c0_24 = arith.constant 0 : index
    %c1 = arith.constant 1 : index
    %c0_25 = arith.constant 0 : index
    %c0_26 = arith.constant 0 : index
    %33 = vector.load %arg3[%c0_24, %c1, %c0_25, %c0_26] : memref<1x8x8x64xf32, #tpu.memory_space<vmem>>, vector<1x1x8x64xf32>
    %34 = vector.shape_cast %33 : vector<1x1x8x64xf32> to vector<8x64xf32>
    %cst_27 = arith.constant dense<0.000000e+00> : vector<16x64xf32>
    %35 = tpu.matmul %1, %34, %cst_27 {dimension_numbers = #tpu.dot_dimension_numbers<[1], [0], [0], [1], [0, 0, 1, 1], [], []>} : vector<16x8xf32>, vector<8x64xf32>, vector<16x64xf32> -> vector<16x64xf32>
    %36 = vector.extract_strided_slice %3 {offsets = [1, 0], sizes = [1, 16], strides = [1, 1]} : vector<8x16xf32> to vector<1x16xf32>
    %37 = vector.broadcast %4 : vector<32x1xf32> to vector<32x16xf32>
    %38 = vector.broadcast %36 : vector<1x16xf32> to vector<32x16xf32>
    %39 = arith.mulf %37, %38 : vector<32x16xf32>
    %40 = vector.broadcast %5 : vector<32x1xf32> to vector<32x16xf32>
    %41 = arith.addf %39, %40 : vector<32x16xf32>
    %cst_28 = arith.constant 0.000000e+00 : f32
    %42 = vector.broadcast %cst_28 : f32 to vector<32x16xf32>
    %43 = arith.maximumf %41, %42 : vector<32x16xf32>
    %44 = tpu.transpose %43, [1, 0] : vector<32x16xf32> -> vector<16x32xf32>
    %cst_29 = arith.constant dense<0.000000e+00> : vector<16x64xf32>
    %45 = tpu.matmul %44, %6, %cst_29 {dimension_numbers = #tpu.dot_dimension_numbers<[1], [0], [0], [1], [0, 0, 1, 1], [], []>} : vector<16x32xf32>, vector<32x64xf32>, vector<16x64xf32> -> vector<16x64xf32>
    %c1_30 = arith.constant 1 : index
    %46 = arith.index_cast %9 : i32 to index
    %c0_31 = arith.constant 0 : index
    %47 = vector.load %arg8[%c1_30, %46, %c0_31] : memref<8x24x64xbf16, #tpu.memory_space<vmem>>, vector<1x16x64xbf16>
    %48 = vector.shape_cast %47 : vector<1x16x64xbf16> to vector<16x64xbf16>
    %49 = arith.extf %48 : vector<16x64xbf16> to vector<16x64xf32>
    %50 = arith.addf %35, %45 : vector<16x64xf32>
    %51 = arith.addf %50, %49 : vector<16x64xf32>
    %52 = arith.truncf %51 : vector<16x64xf32> to vector<16x64xbf16>
    %c0_32 = arith.constant 0 : index
    %c1_33 = arith.constant 1 : index
    %c0_34 = arith.constant 0 : index
    %c0_35 = arith.constant 0 : index
    %53 = vector.load %arg9[%c0_32, %c1_33, %c0_34, %c0_35] : memref<1x8x16x64xbf16, #tpu.memory_space<vmem>>, vector<1x1x16x64xbf16>
    %54 = vector.shape_cast %53 : vector<1x1x16x64xbf16> to vector<16x64xbf16>
    %55 = vector.shape_cast %52 : vector<16x64xbf16> to vector<1x1x16x64xbf16>
    tpu.vector_store %arg9[%c0_32, %c1_33, %c0_34, %c0_35], %55 {strides = array<i32>} : memref<1x8x16x64xbf16, #tpu.memory_space<vmem>>, vector<1x1x16x64xbf16>,
    %c0_36 = arith.constant 0 : index
    %c2 = arith.constant 2 : index
    %c0_37 = arith.constant 0 : index
    %c0_38 = arith.constant 0 : index
    %56 = vector.load %arg3[%c0_36, %c2, %c0_37, %c0_38] : memref<1x8x8x64xf32, #tpu.memory_space<vmem>>, vector<1x1x8x64xf32>
    %57 = vector.shape_cast %56 : vector<1x1x8x64xf32> to vector<8x64xf32>
    %cst_39 = arith.constant dense<0.000000e+00> : vector<16x64xf32>
    %58 = tpu.matmul %1, %57, %cst_39 {dimension_numbers = #tpu.dot_dimension_numbers<[1], [0], [0], [1], [0, 0, 1, 1], [], []>} : vector<16x8xf32>, vector<8x64xf32>, vector<16x64xf32> -> vector<16x64xf32>
    %59 = vector.extract_strided_slice %3 {offsets = [2, 0], sizes = [1, 16], strides = [1, 1]} : vector<8x16xf32> to vector<1x16xf32>
    %60 = vector.broadcast %4 : vector<32x1xf32> to vector<32x16xf32>
    %61 = vector.broadcast %59 : vector<1x16xf32> to vector<32x16xf32>
    %62 = arith.mulf %60, %61 : vector<32x16xf32>
    %63 = vector.broadcast %5 : vector<32x1xf32> to vector<32x16xf32>
    %64 = arith.addf %62, %63 : vector<32x16xf32>
    %cst_40 = arith.constant 0.000000e+00 : f32
    %65 = vector.broadcast %cst_40 : f32 to vector<32x16xf32>
    %66 = arith.maximumf %64, %65 : vector<32x16xf32>
    %67 = tpu.transpose %66, [1, 0] : vector<32x16xf32> -> vector<16x32xf32>
    %cst_41 = arith.constant dense<0.000000e+00> : vector<16x64xf32>
    %68 = tpu.matmul %67, %6, %cst_41 {dimension_numbers = #tpu.dot_dimension_numbers<[1], [0], [0], [1], [0, 0, 1, 1], [], []>} : vector<16x32xf32>, vector<32x64xf32>, vector<16x64xf32> -> vector<16x64xf32>
    %c2_42 = arith.constant 2 : index
    %69 = arith.index_cast %9 : i32 to index
    %c0_43 = arith.constant 0 : index
    %70 = vector.load %arg8[%c2_42, %69, %c0_43] : memref<8x24x64xbf16, #tpu.memory_space<vmem>>, vector<1x16x64xbf16>
    %71 = vector.shape_cast %70 : vector<1x16x64xbf16> to vector<16x64xbf16>
    %72 = arith.extf %71 : vector<16x64xbf16> to vector<16x64xf32>
    %73 = arith.addf %58, %68 : vector<16x64xf32>
    %74 = arith.addf %73, %72 : vector<16x64xf32>
    %75 = arith.truncf %74 : vector<16x64xf32> to vector<16x64xbf16>
    %c0_44 = arith.constant 0 : index
    %c2_45 = arith.constant 2 : index
    %c0_46 = arith.constant 0 : index
    %c0_47 = arith.constant 0 : index
    %76 = vector.load %arg9[%c0_44, %c2_45, %c0_46, %c0_47] : memref<1x8x16x64xbf16, #tpu.memory_space<vmem>>, vector<1x1x16x64xbf16>
    %77 = vector.shape_cast %76 : vector<1x1x16x64xbf16> to vector<16x64xbf16>
    %78 = vector.shape_cast %75 : vector<16x64xbf16> to vector<1x1x16x64xbf16>
    tpu.vector_store %arg9[%c0_44, %c2_45, %c0_46, %c0_47], %78 {strides = array<i32>} : memref<1x8x16x64xbf16, #tpu.memory_space<vmem>>, vector<1x1x16x64xbf16>,
    %c0_48 = arith.constant 0 : index
    %c3 = arith.constant 3 : index
    %c0_49 = arith.constant 0 : index
    %c0_50 = arith.constant 0 : index
    %79 = vector.load %arg3[%c0_48, %c3, %c0_49, %c0_50] : memref<1x8x8x64xf32, #tpu.memory_space<vmem>>, vector<1x1x8x64xf32>
    %80 = vector.shape_cast %79 : vector<1x1x8x64xf32> to vector<8x64xf32>
    %cst_51 = arith.constant dense<0.000000e+00> : vector<16x64xf32>
    %81 = tpu.matmul %1, %80, %cst_51 {dimension_numbers = #tpu.dot_dimension_numbers<[1], [0], [0], [1], [0, 0, 1, 1], [], []>} : vector<16x8xf32>, vector<8x64xf32>, vector<16x64xf32> -> vector<16x64xf32>
    %82 = vector.extract_strided_slice %3 {offsets = [3, 0], sizes = [1, 16], strides = [1, 1]} : vector<8x16xf32> to vector<1x16xf32>
    %83 = vector.broadcast %4 : vector<32x1xf32> to vector<32x16xf32>
    %84 = vector.broadcast %82 : vector<1x16xf32> to vector<32x16xf32>
    %85 = arith.mulf %83, %84 : vector<32x16xf32>
    %86 = vector.broadcast %5 : vector<32x1xf32> to vector<32x16xf32>
    %87 = arith.addf %85, %86 : vector<32x16xf32>
    %cst_52 = arith.constant 0.000000e+00 : f32
    %88 = vector.broadcast %cst_52 : f32 to vector<32x16xf32>
    %89 = arith.maximumf %87, %88 : vector<32x16xf32>
    %90 = tpu.transpose %89, [1, 0] : vector<32x16xf32> -> vector<16x32xf32>
    %cst_53 = arith.constant dense<0.000000e+00> : vector<16x64xf32>
    %91 = tpu.matmul %90, %6, %cst_53 {dimension_numbers = #tpu.dot_dimension_numbers<[1], [0], [0], [1], [0, 0, 1, 1], [], []>} : vector<16x32xf32>, vector<32x64xf32>, vector<16x64xf32> -> vector<16x64xf32>
    %c3_54 = arith.constant 3 : index
    %92 = arith.index_cast %9 : i32 to index
    %c0_55 = arith.constant 0 : index
    %93 = vector.load %arg8[%c3_54, %92, %c0_55] : memref<8x24x64xbf16, #tpu.memory_space<vmem>>, vector<1x16x64xbf16>
    %94 = vector.shape_cast %93 : vector<1x16x64xbf16> to vector<16x64xbf16>
    %95 = arith.extf %94 : vector<16x64xbf16> to vector<16x64xf32>
    %96 = arith.addf %81, %91 : vector<16x64xf32>
    %97 = arith.addf %96, %95 : vector<16x64xf32>
    %98 = arith.truncf %97 : vector<16x64xf32> to vector<16x64xbf16>
    %c0_56 = arith.constant 0 : index
    %c3_57 = arith.constant 3 : index
    %c0_58 = arith.constant 0 : index
    %c0_59 = arith.constant 0 : index
    %99 = vector.load %arg9[%c0_56, %c3_57, %c0_58, %c0_59] : memref<1x8x16x64xbf16, #tpu.memory_space<vmem>>, vector<1x1x16x64xbf16>
    %100 = vector.shape_cast %99 : vector<1x1x16x64xbf16> to vector<16x64xbf16>
    %101 = vector.shape_cast %98 : vector<16x64xbf16> to vector<1x1x16x64xbf16>
    tpu.vector_store %arg9[%c0_56, %c3_57, %c0_58, %c0_59], %101 {strides = array<i32>} : memref<1x8x16x64xbf16, #tpu.memory_space<vmem>>, vector<1x1x16x64xbf16>,
    %c0_60 = arith.constant 0 : index
    %c4 = arith.constant 4 : index
    %c0_61 = arith.constant 0 : index
    %c0_62 = arith.constant 0 : index
    %102 = vector.load %arg3[%c0_60, %c4, %c0_61, %c0_62] : memref<1x8x8x64xf32, #tpu.memory_space<vmem>>, vector<1x1x8x64xf32>
    %103 = vector.shape_cast %102 : vector<1x1x8x64xf32> to vector<8x64xf32>
    %cst_63 = arith.constant dense<0.000000e+00> : vector<16x64xf32>
    %104 = tpu.matmul %1, %103, %cst_63 {dimension_numbers = #tpu.dot_dimension_numbers<[1], [0], [0], [1], [0, 0, 1, 1], [], []>} : vector<16x8xf32>, vector<8x64xf32>, vector<16x64xf32> -> vector<16x64xf32>
    %105 = vector.extract_strided_slice %3 {offsets = [4, 0], sizes = [1, 16], strides = [1, 1]} : vector<8x16xf32> to vector<1x16xf32>
    %106 = vector.broadcast %4 : vector<32x1xf32> to vector<32x16xf32>
    %107 = vector.broadcast %105 : vector<1x16xf32> to vector<32x16xf32>
    %108 = arith.mulf %106, %107 : vector<32x16xf32>
    %109 = vector.broadcast %5 : vector<32x1xf32> to vector<32x16xf32>
    %110 = arith.addf %108, %109 : vector<32x16xf32>
    %cst_64 = arith.constant 0.000000e+00 : f32
    %111 = vector.broadcast %cst_64 : f32 to vector<32x16xf32>
    %112 = arith.maximumf %110, %111 : vector<32x16xf32>
    %113 = tpu.transpose %112, [1, 0] : vector<32x16xf32> -> vector<16x32xf32>
    %cst_65 = arith.constant dense<0.000000e+00> : vector<16x64xf32>
    %114 = tpu.matmul %113, %6, %cst_65 {dimension_numbers = #tpu.dot_dimension_numbers<[1], [0], [0], [1], [0, 0, 1, 1], [], []>} : vector<16x32xf32>, vector<32x64xf32>, vector<16x64xf32> -> vector<16x64xf32>
    %c4_66 = arith.constant 4 : index
    %115 = arith.index_cast %9 : i32 to index
    %c0_67 = arith.constant 0 : index
    %116 = vector.load %arg8[%c4_66, %115, %c0_67] : memref<8x24x64xbf16, #tpu.memory_space<vmem>>, vector<1x16x64xbf16>
    %117 = vector.shape_cast %116 : vector<1x16x64xbf16> to vector<16x64xbf16>
    %118 = arith.extf %117 : vector<16x64xbf16> to vector<16x64xf32>
    %119 = arith.addf %104, %114 : vector<16x64xf32>
    %120 = arith.addf %119, %118 : vector<16x64xf32>
    %121 = arith.truncf %120 : vector<16x64xf32> to vector<16x64xbf16>
    %c0_68 = arith.constant 0 : index
    %c4_69 = arith.constant 4 : index
    %c0_70 = arith.constant 0 : index
    %c0_71 = arith.constant 0 : index
    %122 = vector.load %arg9[%c0_68, %c4_69, %c0_70, %c0_71] : memref<1x8x16x64xbf16, #tpu.memory_space<vmem>>, vector<1x1x16x64xbf16>
    %123 = vector.shape_cast %122 : vector<1x1x16x64xbf16> to vector<16x64xbf16>
    %124 = vector.shape_cast %121 : vector<16x64xbf16> to vector<1x1x16x64xbf16>
    tpu.vector_store %arg9[%c0_68, %c4_69, %c0_70, %c0_71], %124 {strides = array<i32>} : memref<1x8x16x64xbf16, #tpu.memory_space<vmem>>, vector<1x1x16x64xbf16>,
    %c0_72 = arith.constant 0 : index
    %c5 = arith.constant 5 : index
    %c0_73 = arith.constant 0 : index
    %c0_74 = arith.constant 0 : index
    %125 = vector.load %arg3[%c0_72, %c5, %c0_73, %c0_74] : memref<1x8x8x64xf32, #tpu.memory_space<vmem>>, vector<1x1x8x64xf32>
    %126 = vector.shape_cast %125 : vector<1x1x8x64xf32> to vector<8x64xf32>
    %cst_75 = arith.constant dense<0.000000e+00> : vector<16x64xf32>
    %127 = tpu.matmul %1, %126, %cst_75 {dimension_numbers = #tpu.dot_dimension_numbers<[1], [0], [0], [1], [0, 0, 1, 1], [], []>} : vector<16x8xf32>, vector<8x64xf32>, vector<16x64xf32> -> vector<16x64xf32>
    %128 = vector.extract_strided_slice %3 {offsets = [5, 0], sizes = [1, 16], strides = [1, 1]} : vector<8x16xf32> to vector<1x16xf32>
    %129 = vector.broadcast %4 : vector<32x1xf32> to vector<32x16xf32>
    %130 = vector.broadcast %128 : vector<1x16xf32> to vector<32x16xf32>
    %131 = arith.mulf %129, %130 : vector<32x16xf32>
    %132 = vector.broadcast %5 : vector<32x1xf32> to vector<32x16xf32>
    %133 = arith.addf %131, %132 : vector<32x16xf32>
    %cst_76 = arith.constant 0.000000e+00 : f32
    %134 = vector.broadcast %cst_76 : f32 to vector<32x16xf32>
    %135 = arith.maximumf %133, %134 : vector<32x16xf32>
    %136 = tpu.transpose %135, [1, 0] : vector<32x16xf32> -> vector<16x32xf32>
    %cst_77 = arith.constant dense<0.000000e+00> : vector<16x64xf32>
    %137 = tpu.matmul %136, %6, %cst_77 {dimension_numbers = #tpu.dot_dimension_numbers<[1], [0], [0], [1], [0, 0, 1, 1], [], []>} : vector<16x32xf32>, vector<32x64xf32>, vector<16x64xf32> -> vector<16x64xf32>
    %c5_78 = arith.constant 5 : index
    %138 = arith.index_cast %9 : i32 to index
    %c0_79 = arith.constant 0 : index
    %139 = vector.load %arg8[%c5_78, %138, %c0_79] : memref<8x24x64xbf16, #tpu.memory_space<vmem>>, vector<1x16x64xbf16>
    %140 = vector.shape_cast %139 : vector<1x16x64xbf16> to vector<16x64xbf16>
    %141 = arith.extf %140 : vector<16x64xbf16> to vector<16x64xf32>
    %142 = arith.addf %127, %137 : vector<16x64xf32>
    %143 = arith.addf %142, %141 : vector<16x64xf32>
    %144 = arith.truncf %143 : vector<16x64xf32> to vector<16x64xbf16>
    %c0_80 = arith.constant 0 : index
    %c5_81 = arith.constant 5 : index
    %c0_82 = arith.constant 0 : index
    %c0_83 = arith.constant 0 : index
    %145 = vector.load %arg9[%c0_80, %c5_81, %c0_82, %c0_83] : memref<1x8x16x64xbf16, #tpu.memory_space<vmem>>, vector<1x1x16x64xbf16>
    %146 = vector.shape_cast %145 : vector<1x1x16x64xbf16> to vector<16x64xbf16>
    %147 = vector.shape_cast %144 : vector<16x64xbf16> to vector<1x1x16x64xbf16>
    tpu.vector_store %arg9[%c0_80, %c5_81, %c0_82, %c0_83], %147 {strides = array<i32>} : memref<1x8x16x64xbf16, #tpu.memory_space<vmem>>, vector<1x1x16x64xbf16>,
    %c0_84 = arith.constant 0 : index
    %c6 = arith.constant 6 : index
    %c0_85 = arith.constant 0 : index
    %c0_86 = arith.constant 0 : index
    %148 = vector.load %arg3[%c0_84, %c6, %c0_85, %c0_86] : memref<1x8x8x64xf32, #tpu.memory_space<vmem>>, vector<1x1x8x64xf32>
    %149 = vector.shape_cast %148 : vector<1x1x8x64xf32> to vector<8x64xf32>
    %cst_87 = arith.constant dense<0.000000e+00> : vector<16x64xf32>
    %150 = tpu.matmul %1, %149, %cst_87 {dimension_numbers = #tpu.dot_dimension_numbers<[1], [0], [0], [1], [0, 0, 1, 1], [], []>} : vector<16x8xf32>, vector<8x64xf32>, vector<16x64xf32> -> vector<16x64xf32>
    %151 = vector.extract_strided_slice %3 {offsets = [6, 0], sizes = [1, 16], strides = [1, 1]} : vector<8x16xf32> to vector<1x16xf32>
    %152 = vector.broadcast %4 : vector<32x1xf32> to vector<32x16xf32>
    %153 = vector.broadcast %151 : vector<1x16xf32> to vector<32x16xf32>
    %154 = arith.mulf %152, %153 : vector<32x16xf32>
    %155 = vector.broadcast %5 : vector<32x1xf32> to vector<32x16xf32>
    %156 = arith.addf %154, %155 : vector<32x16xf32>
    %cst_88 = arith.constant 0.000000e+00 : f32
    %157 = vector.broadcast %cst_88 : f32 to vector<32x16xf32>
    %158 = arith.maximumf %156, %157 : vector<32x16xf32>
    %159 = tpu.transpose %158, [1, 0] : vector<32x16xf32> -> vector<16x32xf32>
    %cst_89 = arith.constant dense<0.000000e+00> : vector<16x64xf32>
    %160 = tpu.matmul %159, %6, %cst_89 {dimension_numbers = #tpu.dot_dimension_numbers<[1], [0], [0], [1], [0, 0, 1, 1], [], []>} : vector<16x32xf32>, vector<32x64xf32>, vector<16x64xf32> -> vector<16x64xf32>
    %c6_90 = arith.constant 6 : index
    %161 = arith.index_cast %9 : i32 to index
    %c0_91 = arith.constant 0 : index
    %162 = vector.load %arg8[%c6_90, %161, %c0_91] : memref<8x24x64xbf16, #tpu.memory_space<vmem>>, vector<1x16x64xbf16>
    %163 = vector.shape_cast %162 : vector<1x16x64xbf16> to vector<16x64xbf16>
    %164 = arith.extf %163 : vector<16x64xbf16> to vector<16x64xf32>
    %165 = arith.addf %150, %160 : vector<16x64xf32>
    %166 = arith.addf %165, %164 : vector<16x64xf32>
    %167 = arith.truncf %166 : vector<16x64xf32> to vector<16x64xbf16>
    %c0_92 = arith.constant 0 : index
    %c6_93 = arith.constant 6 : index
    %c0_94 = arith.constant 0 : index
    %c0_95 = arith.constant 0 : index
    %168 = vector.load %arg9[%c0_92, %c6_93, %c0_94, %c0_95] : memref<1x8x16x64xbf16, #tpu.memory_space<vmem>>, vector<1x1x16x64xbf16>
    %169 = vector.shape_cast %168 : vector<1x1x16x64xbf16> to vector<16x64xbf16>
    %170 = vector.shape_cast %167 : vector<16x64xbf16> to vector<1x1x16x64xbf16>
    tpu.vector_store %arg9[%c0_92, %c6_93, %c0_94, %c0_95], %170 {strides = array<i32>} : memref<1x8x16x64xbf16, #tpu.memory_space<vmem>>, vector<1x1x16x64xbf16>,
    %c0_96 = arith.constant 0 : index
    %c7 = arith.constant 7 : index
    %c0_97 = arith.constant 0 : index
    %c0_98 = arith.constant 0 : index
    %171 = vector.load %arg3[%c0_96, %c7, %c0_97, %c0_98] : memref<1x8x8x64xf32, #tpu.memory_space<vmem>>, vector<1x1x8x64xf32>
    %172 = vector.shape_cast %171 : vector<1x1x8x64xf32> to vector<8x64xf32>
    %cst_99 = arith.constant dense<0.000000e+00> : vector<16x64xf32>
    %173 = tpu.matmul %1, %172, %cst_99 {dimension_numbers = #tpu.dot_dimension_numbers<[1], [0], [0], [1], [0, 0, 1, 1], [], []>} : vector<16x8xf32>, vector<8x64xf32>, vector<16x64xf32> -> vector<16x64xf32>
    %174 = vector.extract_strided_slice %3 {offsets = [7, 0], sizes = [1, 16], strides = [1, 1]} : vector<8x16xf32> to vector<1x16xf32>
    %175 = vector.broadcast %4 : vector<32x1xf32> to vector<32x16xf32>
    %176 = vector.broadcast %174 : vector<1x16xf32> to vector<32x16xf32>
    %177 = arith.mulf %175, %176 : vector<32x16xf32>
    %178 = vector.broadcast %5 : vector<32x1xf32> to vector<32x16xf32>
    %179 = arith.addf %177, %178 : vector<32x16xf32>
    %cst_100 = arith.constant 0.000000e+00 : f32
    %180 = vector.broadcast %cst_100 : f32 to vector<32x16xf32>
    %181 = arith.maximumf %179, %180 : vector<32x16xf32>
    %182 = tpu.transpose %181, [1, 0] : vector<32x16xf32> -> vector<16x32xf32>
    %cst_101 = arith.constant dense<0.000000e+00> : vector<16x64xf32>
    %183 = tpu.matmul %182, %6, %cst_101 {dimension_numbers = #tpu.dot_dimension_numbers<[1], [0], [0], [1], [0, 0, 1, 1], [], []>} : vector<16x32xf32>, vector<32x64xf32>, vector<16x64xf32> -> vector<16x64xf32>
    %c7_102 = arith.constant 7 : index
    %184 = arith.index_cast %9 : i32 to index
    %c0_103 = arith.constant 0 : index
    %185 = vector.load %arg8[%c7_102, %184, %c0_103] : memref<8x24x64xbf16, #tpu.memory_space<vmem>>, vector<1x16x64xbf16>
    %186 = vector.shape_cast %185 : vector<1x16x64xbf16> to vector<16x64xbf16>
    %187 = arith.extf %186 : vector<16x64xbf16> to vector<16x64xf32>
    %188 = arith.addf %173, %183 : vector<16x64xf32>
    %189 = arith.addf %188, %187 : vector<16x64xf32>
    %190 = arith.truncf %189 : vector<16x64xf32> to vector<16x64xbf16>
    %c0_104 = arith.constant 0 : index
    %c7_105 = arith.constant 7 : index
    %c0_106 = arith.constant 0 : index
    %c0_107 = arith.constant 0 : index
    %191 = vector.load %arg9[%c0_104, %c7_105, %c0_106, %c0_107] : memref<1x8x16x64xbf16, #tpu.memory_space<vmem>>, vector<1x1x16x64xbf16>
    %192 = vector.shape_cast %191 : vector<1x1x16x64xbf16> to vector<16x64xbf16>
    %193 = vector.shape_cast %190 : vector<16x64xbf16> to vector<1x1x16x64xbf16>
    tpu.vector_store %arg9[%c0_104, %c7_105, %c0_106, %c0_107], %193 {strides = array<i32>} : memref<1x8x16x64xbf16, #tpu.memory_space<vmem>>, vector<1x1x16x64xbf16>,
    return
  }
  func.func @transform_0(%arg0: i32, %arg1: i32) -> (i32, i32, i32) {
    %c0_i32 = arith.constant 0 : i32
    %c0_i32_0 = arith.constant 0 : i32
    %c0_i32_1 = arith.constant 0 : i32
    return %arg0, %c0_i32, %c0_i32_0 : i32, i32, i32
  }
  func.func @transform_1(%arg0: i32, %arg1: i32) -> (i32, i32, i32, i32) {
    %c0_i32 = arith.constant 0 : i32
    %c0_i32_0 = arith.constant 0 : i32
    %c0_i32_1 = arith.constant 0 : i32
    return %arg0, %arg1, %c0_i32, %c0_i32_0 : i32, i32, i32, i32
  }
  func.func @transform_2(%arg0: i32, %arg1: i32) -> (i32, i32, i32) {
    %c0_i32 = arith.constant 0 : i32
    %c0_i32_0 = arith.constant 0 : i32
    return %arg0, %arg1, %c0_i32 : i32, i32, i32
  }
  func.func @transform_3(%arg0: i32, %arg1: i32) -> (i32, i32) {
    %c0_i32 = arith.constant 0 : i32
    %c0_i32_0 = arith.constant 0 : i32
    %c0_i32_1 = arith.constant 0 : i32
    return %c0_i32, %c0_i32_0 : i32, i32
  }
  func.func @transform_4(%arg0: i32, %arg1: i32) -> (i32, i32) {
    %c0_i32 = arith.constant 0 : i32
    %c0_i32_0 = arith.constant 0 : i32
    %c0_i32_1 = arith.constant 0 : i32
    return %c0_i32, %c0_i32_0 : i32, i32
  }
  func.func @transform_5(%arg0: i32, %arg1: i32) -> (i32, i32) {
    %c0_i32 = arith.constant 0 : i32
    %c0_i32_0 = arith.constant 0 : i32
    %c0_i32_1 = arith.constant 0 : i32
    return %c0_i32, %c0_i32_0 : i32, i32
  }
  func.func @transform_6(%arg0: i32, %arg1: i32) -> (i32, i32, i32) {
    %c0_i32 = arith.constant 0 : i32
    %c0_i32_0 = arith.constant 0 : i32
    %c0_i32_1 = arith.constant 0 : i32
    %c0_i32_2 = arith.constant 0 : i32
    return %c0_i32, %c0_i32_0, %c0_i32_1 : i32, i32, i32
  }
  func.func @transform_7(%arg0: i32, %arg1: i32) -> (i32, i32, i32, i32) {
    %c0_i32 = arith.constant 0 : i32
    %c0_i32_0 = arith.constant 0 : i32
    %c0_i32_1 = arith.constant 0 : i32
    return %arg0, %arg1, %c0_i32, %c0_i32_0 : i32, i32, i32, i32
  }
}

module attributes {stable_mosaic.version = 11 : i64} {
  func.func @_pair_embed_kernel(%arg0: i32, %arg1: i32, %arg2: memref<1x16x8xf32, #tpu.memory_space<vmem>>, %arg3: memref<1x8x8x64xf32, #tpu.memory_space<vmem>>, %arg4: memref<1x8x16xf32, #tpu.memory_space<vmem>>, %arg5: memref<32x1xf32, #tpu.memory_space<vmem>>, %arg6: memref<32x1xf32, #tpu.memory_space<vmem>>, %arg7: memref<32x64xf32, #tpu.memory_space<vmem>>, %arg8: memref<8x24x64xbf16, #tpu.memory_space<vmem>>, %arg9: memref<1x8x16x64xbf16, #tpu.memory_space<vmem>>) attributes {dimension_semantics = [#tpu.dimension_semantics<parallel>, #tpu.dimension_semantics<parallel>], iteration_bounds = array<i64: 2, 2>, scalar_prefetch = 0 : i64, scratch_operands = 0 : i64, tpu.core_type = #tpu.core_type<tc>, window_params = [{transform_indices = @transform_0, window_bounds = array<i64: 1, 16, 8>}, {transform_indices = @transform_1, window_bounds = array<i64: 1, 8, 8, 64>}, {transform_indices = @transform_2, window_bounds = array<i64: 1, 8, 16>}, {pipeline_mode = #tpu.pipeline_mode<synchronous>, transform_indices = @transform_3, window_bounds = array<i64: 32, 1>}, {pipeline_mode = #tpu.pipeline_mode<synchronous>, transform_indices = @transform_4, window_bounds = array<i64: 32, 1>}, {pipeline_mode = #tpu.pipeline_mode<synchronous>, transform_indices = @transform_5, window_bounds = array<i64: 32, 64>}, {pipeline_mode = #tpu.pipeline_mode<synchronous>, transform_indices = @transform_6, window_bounds = array<i64: 8, 24, 64>}, {transform_indices = @transform_7, window_bounds = array<i64: 1, 8, 16, 64>}]} {
    %c0 = arith.constant 0 : index
    %c0_0 = arith.constant 0 : index
    %c0_1 = arith.constant 0 : index
    %0 = vector.load %arg2[%c0, %c0_0, %c0_1] : memref<1x16x8xf32, #tpu.memory_space<vmem>>, vector<1x16x8xf32>
    %1 = vector.shape_cast %0 : vector<1x16x8xf32> to vector<16x8xf32>
    %c0_2 = arith.constant 0 : index
    %c0_3 = arith.constant 0 : index
    %c0_4 = arith.constant 0 : index
    %2 = vector.load %arg4[%c0_2, %c0_3, %c0_4] : memref<1x8x16xf32, #tpu.memory_space<vmem>>, vector<1x8x16xf32>
    %3 = vector.shape_cast %2 : vector<1x8x16xf32> to vector<8x16xf32>
    %c0_5 = arith.constant 0 : index
    %c0_6 = arith.constant 0 : index
    %4 = vector.load %arg5[%c0_5, %c0_6] : memref<32x1xf32, #tpu.memory_space<vmem>>, vector<32x1xf32>
    %c0_7 = arith.constant 0 : index
    %c0_8 = arith.constant 0 : index
    %5 = vector.load %arg6[%c0_7, %c0_8] : memref<32x1xf32, #tpu.memory_space<vmem>>, vector<32x1xf32>
    %c0_9 = arith.constant 0 : index
    %c0_10 = arith.constant 0 : index
    %6 = vector.load %arg7[%c0_9, %c0_10] : memref<32x64xf32, #tpu.memory_space<vmem>>, vector<32x64xf32>
    %c8_i32 = arith.constant 8 : i32
    %7 = arith.muli %arg1, %c8_i32 : i32
    %c8_i32_11 = arith.constant 8 : i32
    %8 = arith.subi %c8_i32_11, %7 : i32
    %9 = tpu.assume_multiple %8, 8 : i32
    %c0_12 = arith.constant 0 : index
    %c0_13 = arith.constant 0 : index
    %c0_14 = arith.constant 0 : index
    %c0_15 = arith.constant 0 : index
    %10 = vector.load %arg3[%c0_12, %c0_13, %c0_14, %c0_15] : memref<1x8x8x64xf32, #tpu.memory_space<vmem>>, vector<1x1x8x64xf32>
    %11 = vector.shape_cast %10 : vector<1x1x8x64xf32> to vector<8x64xf32>
    %cst = arith.constant dense<0.000000e+00> : vector<16x64xf32>
    %12 = tpu.matmul %1, %11, %cst {dimension_numbers = #tpu.dot_dimension_numbers<[1], [0], [0], [1], [0, 0, 1, 1], [], []>} : vector<16x8xf32>, vector<8x64xf32>, vector<16x64xf32> -> vector<16x64xf32>
    %13 = vector.extract_strided_slice %3 {offsets = [0, 0], sizes = [1, 16], strides = [1, 1]} : vector<8x16xf32> to vector<1x16xf32>
    %14 = vector.broadcast %4 : vector<32x1xf32> to vector<32x16xf32>
    %15 = vector.broadcast %13 : vector<1x16xf32> to vector<32x16xf32>
    %16 = arith.mulf %14, %15 : vector<32x16xf32>
    %17 = vector.broadcast %5 : vector<32x1xf32> to vector<32x16xf32>
    %18 = arith.addf %16, %17 : vector<32x16xf32>
    %cst_16 = arith.constant 0.000000e+00 : f32
    %19 = vector.broadcast %cst_16 : f32 to vector<32x16xf32>
    %20 = arith.maximumf %18, %19 : vector<32x16xf32>
    %21 = tpu.transpose %20, [1, 0] : vector<32x16xf32> -> vector<16x32xf32>
    %cst_17 = arith.constant dense<0.000000e+00> : vector<16x64xf32>
    %22 = tpu.matmul %21, %6, %cst_17 {dimension_numbers = #tpu.dot_dimension_numbers<[1], [0], [0], [1], [0, 0, 1, 1], [], []>} : vector<16x32xf32>, vector<32x64xf32>, vector<16x64xf32> -> vector<16x64xf32>
    %c0_18 = arith.constant 0 : index
    %23 = arith.index_cast %9 : i32 to index
    %c0_19 = arith.constant 0 : index
    %24 = vector.load %arg8[%c0_18, %23, %c0_19] : memref<8x24x64xbf16, #tpu.memory_space<vmem>>, vector<1x16x64xbf16>
    %25 = vector.shape_cast %24 : vector<1x16x64xbf16> to vector<16x64xbf16>
    %26 = arith.extf %25 : vector<16x64xbf16> to vector<16x64xf32>
    %27 = arith.addf %12, %22 : vector<16x64xf32>
    %28 = arith.addf %27, %26 : vector<16x64xf32>
    %29 = arith.truncf %28 : vector<16x64xf32> to vector<16x64xbf16>
    %c0_20 = arith.constant 0 : index
    %c0_21 = arith.constant 0 : index
    %c0_22 = arith.constant 0 : index
    %c0_23 = arith.constant 0 : index
    %30 = vector.load %arg9[%c0_20, %c0_21, %c0_22, %c0_23] : memref<1x8x16x64xbf16, #tpu.memory_space<vmem>>, vector<1x1x16x64xbf16>
    %31 = vector.shape_cast %30 : vector<1x1x16x64xbf16> to vector<16x64xbf16>
    %32 = vector.shape_cast %29 : vector<16x64xbf16> to vector<1x1x16x64xbf16>
    tpu.vector_store %arg9[%c0_20, %c0_21, %c0_22, %c0_23], %32 {strides = array<i32>} : memref<1x8x16x64xbf16, #tpu.memory_space<vmem>>, vector<1x1x16x64xbf16>,
    %c0_24 = arith.constant 0 : index
    %c1 = arith.constant 1 : index
    %c0_25 = arith.constant 0 : index
    %c0_26 = arith.constant 0 : index
    %33 = vector.load %arg3[%c0_24, %c1, %c0_25, %c0_26] : memref<1x8x8x64xf32, #tpu.memory_space<vmem>>, vector<1x1x8x64xf32>
    %34 = vector.shape_cast %33 : vector<1x1x8x64xf32> to vector<8x64xf32>
    %cst_27 = arith.constant dense<0.000000e+00> : vector<16x64xf32>
    %35 = tpu.matmul %1, %34, %cst_27 {dimension_numbers = #tpu.dot_dimension_numbers<[1], [0], [0], [1], [0, 0, 1, 1], [], []>} : vector<16x8xf32>, vector<8x64xf32>, vector<16x64xf32> -> vector<16x64xf32>
    %36 = vector.extract_strided_slice %3 {offsets = [1, 0], sizes = [1, 16], strides = [1, 1]} : vector<8x16xf32> to vector<1x16xf32>
    %37 = vector.broadcast %4 : vector<32x1xf32> to vector<32x16xf32>
    %38 = vector.broadcast %36 : vector<1x16xf32> to vector<32x16xf32>
    %39 = arith.mulf %37, %38 : vector<32x16xf32>
    %40 = vector.broadcast %5 : vector<32x1xf32> to vector<32x16xf32>
    %41 = arith.addf %39, %40 : vector<32x16xf32>
    %cst_28 = arith.constant 0.000000e+00 : f32
    %42 = vector.broadcast %cst_28 : f32 to vector<32x16xf32>
    %43 = arith.maximumf %41, %42 : vector<32x16xf32>
    %44 = tpu.transpose %43, [1, 0] : vector<32x16xf32> -> vector<16x32xf32>
    %cst_29 = arith.constant dense<0.000000e+00> : vector<16x64xf32>
    %45 = tpu.matmul %44, %6, %cst_29 {dimension_numbers = #tpu.dot_dimension_numbers<[1], [0], [0], [1], [0, 0, 1, 1], [], []>} : vector<16x32xf32>, vector<32x64xf32>, vector<16x64xf32> -> vector<16x64xf32>
    %c1_30 = arith.constant 1 : index
    %46 = arith.index_cast %9 : i32 to index
    %c0_31 = arith.constant 0 : index
    %47 = vector.load %arg8[%c1_30, %46, %c0_31] : memref<8x24x64xbf16, #tpu.memory_space<vmem>>, vector<1x16x64xbf16>
    %48 = vector.shape_cast %47 : vector<1x16x64xbf16> to vector<16x64xbf16>
    %49 = arith.extf %48 : vector<16x64xbf16> to vector<16x64xf32>
    %50 = arith.addf %35, %45 : vector<16x64xf32>
    %51 = arith.addf %50, %49 : vector<16x64xf32>
    %52 = arith.truncf %51 : vector<16x64xf32> to vector<16x64xbf16>
    %c0_32 = arith.constant 0 : index
    %c1_33 = arith.constant 1 : index
    %c0_34 = arith.constant 0 : index
    %c0_35 = arith.constant 0 : index
    %53 = vector.load %arg9[%c0_32, %c1_33, %c0_34, %c0_35] : memref<1x8x16x64xbf16, #tpu.memory_space<vmem>>, vector<1x1x16x64xbf16>
    %54 = vector.shape_cast %53 : vector<1x1x16x64xbf16> to vector<16x64xbf16>
    %55 = vector.shape_cast %52 : vector<16x64xbf16> to vector<1x1x16x64xbf16>
    tpu.vector_store %arg9[%c0_32, %c1_33, %c0_34, %c0_35], %55 {strides = array<i32>} : memref<1x8x16x64xbf16, #tpu.memory_space<vmem>>, vector<1x1x16x64xbf16>,
    %c0_36 = arith.constant 0 : index
    %c2 = arith.constant 2 : index
    %c0_37 = arith.constant 0 : index
    %c0_38 = arith.constant 0 : index
    %56 = vector.load %arg3[%c0_36, %c2, %c0_37, %c0_38] : memref<1x8x8x64xf32, #tpu.memory_space<vmem>>, vector<1x1x8x64xf32>
    %57 = vector.shape_cast %56 : vector<1x1x8x64xf32> to vector<8x64xf32>
    %cst_39 = arith.constant dense<0.000000e+00> : vector<16x64xf32>
    %58 = tpu.matmul %1, %57, %cst_39 {dimension_numbers = #tpu.dot_dimension_numbers<[1], [0], [0], [1], [0, 0, 1, 1], [], []>} : vector<16x8xf32>, vector<8x64xf32>, vector<16x64xf32> -> vector<16x64xf32>
    %59 = vector.extract_strided_slice %3 {offsets = [2, 0], sizes = [1, 16], strides = [1, 1]} : vector<8x16xf32> to vector<1x16xf32>
    %60 = vector.broadcast %4 : vector<32x1xf32> to vector<32x16xf32>
    %61 = vector.broadcast %59 : vector<1x16xf32> to vector<32x16xf32>
    %62 = arith.mulf %60, %61 : vector<32x16xf32>
    %63 = vector.broadcast %5 : vector<32x1xf32> to vector<32x16xf32>
    %64 = arith.addf %62, %63 : vector<32x16xf32>
    %cst_40 = arith.constant 0.000000e+00 : f32
    %65 = vector.broadcast %cst_40 : f32 to vector<32x16xf32>
    %66 = arith.maximumf %64, %65 : vector<32x16xf32>
    %67 = tpu.transpose %66, [1, 0] : vector<32x16xf32> -> vector<16x32xf32>
    %cst_41 = arith.constant dense<0.000000e+00> : vector<16x64xf32>
    %68 = tpu.matmul %67, %6, %cst_41 {dimension_numbers = #tpu.dot_dimension_numbers<[1], [0], [0], [1], [0, 0, 1, 1], [], []>} : vector<16x32xf32>, vector<32x64xf32>, vector<16x64xf32> -> vector<16x64xf32>
    %c2_42 = arith.constant 2 : index
    %69 = arith.index_cast %9 : i32 to index
    %c0_43 = arith.constant 0 : index
    %70 = vector.load %arg8[%c2_42, %69, %c0_43] : memref<8x24x64xbf16, #tpu.memory_space<vmem>>, vector<1x16x64xbf16>
    %71 = vector.shape_cast %70 : vector<1x16x64xbf16> to vector<16x64xbf16>
    %72 = arith.extf %71 : vector<16x64xbf16> to vector<16x64xf32>
    %73 = arith.addf %58, %68 : vector<16x64xf32>
    %74 = arith.addf %73, %72 : vector<16x64xf32>
    %75 = arith.truncf %74 : vector<16x64xf32> to vector<16x64xbf16>
    %c0_44 = arith.constant 0 : index
    %c2_45 = arith.constant 2 : index
    %c0_46 = arith.constant 0 : index
    %c0_47 = arith.constant 0 : index
    %76 = vector.load %arg9[%c0_44, %c2_45, %c0_46, %c0_47] : memref<1x8x16x64xbf16, #tpu.memory_space<vmem>>, vector<1x1x16x64xbf16>
    %77 = vector.shape_cast %76 : vector<1x1x16x64xbf16> to vector<16x64xbf16>
    %78 = vector.shape_cast %75 : vector<16x64xbf16> to vector<1x1x16x64xbf16>
    tpu.vector_store %arg9[%c0_44, %c2_45, %c0_46, %c0_47], %78 {strides = array<i32>} : memref<1x8x16x64xbf16, #tpu.memory_space<vmem>>, vector<1x1x16x64xbf16>,
    %c0_48 = arith.constant 0 : index
    %c3 = arith.constant 3 : index
    %c0_49 = arith.constant 0 : index
    %c0_50 = arith.constant 0 : index
    %79 = vector.load %arg3[%c0_48, %c3, %c0_49, %c0_50] : memref<1x8x8x64xf32, #tpu.memory_space<vmem>>, vector<1x1x8x64xf32>
    %80 = vector.shape_cast %79 : vector<1x1x8x64xf32> to vector<8x64xf32>
    %cst_51 = arith.constant dense<0.000000e+00> : vector<16x64xf32>
    %81 = tpu.matmul %1, %80, %cst_51 {dimension_numbers = #tpu.dot_dimension_numbers<[1], [0], [0], [1], [0, 0, 1, 1], [], []>} : vector<16x8xf32>, vector<8x64xf32>, vector<16x64xf32> -> vector<16x64xf32>
    %82 = vector.extract_strided_slice %3 {offsets = [3, 0], sizes = [1, 16], strides = [1, 1]} : vector<8x16xf32> to vector<1x16xf32>
    %83 = vector.broadcast %4 : vector<32x1xf32> to vector<32x16xf32>
    %84 = vector.broadcast %82 : vector<1x16xf32> to vector<32x16xf32>
    %85 = arith.mulf %83, %84 : vector<32x16xf32>
    %86 = vector.broadcast %5 : vector<32x1xf32> to vector<32x16xf32>
    %87 = arith.addf %85, %86 : vector<32x16xf32>
    %cst_52 = arith.constant 0.000000e+00 : f32
    %88 = vector.broadcast %cst_52 : f32 to vector<32x16xf32>
    %89 = arith.maximumf %87, %88 : vector<32x16xf32>
    %90 = tpu.transpose %89, [1, 0] : vector<32x16xf32> -> vector<16x32xf32>
    %cst_53 = arith.constant dense<0.000000e+00> : vector<16x64xf32>
    %91 = tpu.matmul %90, %6, %cst_53 {dimension_numbers = #tpu.dot_dimension_numbers<[1], [0], [0], [1], [0, 0, 1, 1], [], []>} : vector<16x32xf32>, vector<32x64xf32>, vector<16x64xf32> -> vector<16x64xf32>
    %c3_54 = arith.constant 3 : index
    %92 = arith.index_cast %9 : i32 to index
    %c0_55 = arith.constant 0 : index
    %93 = vector.load %arg8[%c3_54, %92, %c0_55] : memref<8x24x64xbf16, #tpu.memory_space<vmem>>, vector<1x16x64xbf16>
    %94 = vector.shape_cast %93 : vector<1x16x64xbf16> to vector<16x64xbf16>
    %95 = arith.extf %94 : vector<16x64xbf16> to vector<16x64xf32>
    %96 = arith.addf %81, %91 : vector<16x64xf32>
    %97 = arith.addf %96, %95 : vector<16x64xf32>
    %98 = arith.truncf %97 : vector<16x64xf32> to vector<16x64xbf16>
    %c0_56 = arith.constant 0 : index
    %c3_57 = arith.constant 3 : index
    %c0_58 = arith.constant 0 : index
    %c0_59 = arith.constant 0 : index
    %99 = vector.load %arg9[%c0_56, %c3_57, %c0_58, %c0_59] : memref<1x8x16x64xbf16, #tpu.memory_space<vmem>>, vector<1x1x16x64xbf16>
    %100 = vector.shape_cast %99 : vector<1x1x16x64xbf16> to vector<16x64xbf16>
    %101 = vector.shape_cast %98 : vector<16x64xbf16> to vector<1x1x16x64xbf16>
    tpu.vector_store %arg9[%c0_56, %c3_57, %c0_58, %c0_59], %101 {strides = array<i32>} : memref<1x8x16x64xbf16, #tpu.memory_space<vmem>>, vector<1x1x16x64xbf16>,
    %c0_60 = arith.constant 0 : index
    %c4 = arith.constant 4 : index
    %c0_61 = arith.constant 0 : index
    %c0_62 = arith.constant 0 : index
    %102 = vector.load %arg3[%c0_60, %c4, %c0_61, %c0_62] : memref<1x8x8x64xf32, #tpu.memory_space<vmem>>, vector<1x1x8x64xf32>
    %103 = vector.shape_cast %102 : vector<1x1x8x64xf32> to vector<8x64xf32>
    %cst_63 = arith.constant dense<0.000000e+00> : vector<16x64xf32>
    %104 = tpu.matmul %1, %103, %cst_63 {dimension_numbers = #tpu.dot_dimension_numbers<[1], [0], [0], [1], [0, 0, 1, 1], [], []>} : vector<16x8xf32>, vector<8x64xf32>, vector<16x64xf32> -> vector<16x64xf32>
    %105 = vector.extract_strided_slice %3 {offsets = [4, 0], sizes = [1, 16], strides = [1, 1]} : vector<8x16xf32> to vector<1x16xf32>
    %106 = vector.broadcast %4 : vector<32x1xf32> to vector<32x16xf32>
    %107 = vector.broadcast %105 : vector<1x16xf32> to vector<32x16xf32>
    %108 = arith.mulf %106, %107 : vector<32x16xf32>
    %109 = vector.broadcast %5 : vector<32x1xf32> to vector<32x16xf32>
    %110 = arith.addf %108, %109 : vector<32x16xf32>
    %cst_64 = arith.constant 0.000000e+00 : f32
    %111 = vector.broadcast %cst_64 : f32 to vector<32x16xf32>
    %112 = arith.maximumf %110, %111 : vector<32x16xf32>
    %113 = tpu.transpose %112, [1, 0] : vector<32x16xf32> -> vector<16x32xf32>
    %cst_65 = arith.constant dense<0.000000e+00> : vector<16x64xf32>
    %114 = tpu.matmul %113, %6, %cst_65 {dimension_numbers = #tpu.dot_dimension_numbers<[1], [0], [0], [1], [0, 0, 1, 1], [], []>} : vector<16x32xf32>, vector<32x64xf32>, vector<16x64xf32> -> vector<16x64xf32>
    %c4_66 = arith.constant 4 : index
    %115 = arith.index_cast %9 : i32 to index
    %c0_67 = arith.constant 0 : index
    %116 = vector.load %arg8[%c4_66, %115, %c0_67] : memref<8x24x64xbf16, #tpu.memory_space<vmem>>, vector<1x16x64xbf16>
    %117 = vector.shape_cast %116 : vector<1x16x64xbf16> to vector<16x64xbf16>
    %118 = arith.extf %117 : vector<16x64xbf16> to vector<16x64xf32>
    %119 = arith.addf %104, %114 : vector<16x64xf32>
    %120 = arith.addf %119, %118 : vector<16x64xf32>
    %121 = arith.truncf %120 : vector<16x64xf32> to vector<16x64xbf16>
    %c0_68 = arith.constant 0 : index
    %c4_69 = arith.constant 4 : index
    %c0_70 = arith.constant 0 : index
    %c0_71 = arith.constant 0 : index
    %122 = vector.load %arg9[%c0_68, %c4_69, %c0_70, %c0_71] : memref<1x8x16x64xbf16, #tpu.memory_space<vmem>>, vector<1x1x16x64xbf16>
    %123 = vector.shape_cast %122 : vector<1x1x16x64xbf16> to vector<16x64xbf16>
    %124 = vector.shape_cast %121 : vector<16x64xbf16> to vector<1x1x16x64xbf16>
    tpu.vector_store %arg9[%c0_68, %c4_69, %c0_70, %c0_71], %124 {strides = array<i32>} : memref<1x8x16x64xbf16, #tpu.memory_space<vmem>>, vector<1x1x16x64xbf16>,
    %c0_72 = arith.constant 0 : index
    %c5 = arith.constant 5 : index
    %c0_73 = arith.constant 0 : index
    %c0_74 = arith.constant 0 : index
    %125 = vector.load %arg3[%c0_72, %c5, %c0_73, %c0_74] : memref<1x8x8x64xf32, #tpu.memory_space<vmem>>, vector<1x1x8x64xf32>
    %126 = vector.shape_cast %125 : vector<1x1x8x64xf32> to vector<8x64xf32>
    %cst_75 = arith.constant dense<0.000000e+00> : vector<16x64xf32>
    %127 = tpu.matmul %1, %126, %cst_75 {dimension_numbers = #tpu.dot_dimension_numbers<[1], [0], [0], [1], [0, 0, 1, 1], [], []>} : vector<16x8xf32>, vector<8x64xf32>, vector<16x64xf32> -> vector<16x64xf32>
    %128 = vector.extract_strided_slice %3 {offsets = [5, 0], sizes = [1, 16], strides = [1, 1]} : vector<8x16xf32> to vector<1x16xf32>
    %129 = vector.broadcast %4 : vector<32x1xf32> to vector<32x16xf32>
    %130 = vector.broadcast %128 : vector<1x16xf32> to vector<32x16xf32>
    %131 = arith.mulf %129, %130 : vector<32x16xf32>
    %132 = vector.broadcast %5 : vector<32x1xf32> to vector<32x16xf32>
    %133 = arith.addf %131, %132 : vector<32x16xf32>
    %cst_76 = arith.constant 0.000000e+00 : f32
    %134 = vector.broadcast %cst_76 : f32 to vector<32x16xf32>
    %135 = arith.maximumf %133, %134 : vector<32x16xf32>
    %136 = tpu.transpose %135, [1, 0] : vector<32x16xf32> -> vector<16x32xf32>
    %cst_77 = arith.constant dense<0.000000e+00> : vector<16x64xf32>
    %137 = tpu.matmul %136, %6, %cst_77 {dimension_numbers = #tpu.dot_dimension_numbers<[1], [0], [0], [1], [0, 0, 1, 1], [], []>} : vector<16x32xf32>, vector<32x64xf32>, vector<16x64xf32> -> vector<16x64xf32>
    %c5_78 = arith.constant 5 : index
    %138 = arith.index_cast %9 : i32 to index
    %c0_79 = arith.constant 0 : index
    %139 = vector.load %arg8[%c5_78, %138, %c0_79] : memref<8x24x64xbf16, #tpu.memory_space<vmem>>, vector<1x16x64xbf16>
    %140 = vector.shape_cast %139 : vector<1x16x64xbf16> to vector<16x64xbf16>
    %141 = arith.extf %140 : vector<16x64xbf16> to vector<16x64xf32>
    %142 = arith.addf %127, %137 : vector<16x64xf32>
    %143 = arith.addf %142, %141 : vector<16x64xf32>
    %144 = arith.truncf %143 : vector<16x64xf32> to vector<16x64xbf16>
    %c0_80 = arith.constant 0 : index
    %c5_81 = arith.constant 5 : index
    %c0_82 = arith.constant 0 : index
    %c0_83 = arith.constant 0 : index
    %145 = vector.load %arg9[%c0_80, %c5_81, %c0_82, %c0_83] : memref<1x8x16x64xbf16, #tpu.memory_space<vmem>>, vector<1x1x16x64xbf16>
    %146 = vector.shape_cast %145 : vector<1x1x16x64xbf16> to vector<16x64xbf16>
    %147 = vector.shape_cast %144 : vector<16x64xbf16> to vector<1x1x16x64xbf16>
    tpu.vector_store %arg9[%c0_80, %c5_81, %c0_82, %c0_83], %147 {strides = array<i32>} : memref<1x8x16x64xbf16, #tpu.memory_space<vmem>>, vector<1x1x16x64xbf16>,
    %c0_84 = arith.constant 0 : index
    %c6 = arith.constant 6 : index
    %c0_85 = arith.constant 0 : index
    %c0_86 = arith.constant 0 : index
    %148 = vector.load %arg3[%c0_84, %c6, %c0_85, %c0_86] : memref<1x8x8x64xf32, #tpu.memory_space<vmem>>, vector<1x1x8x64xf32>
    %149 = vector.shape_cast %148 : vector<1x1x8x64xf32> to vector<8x64xf32>
    %cst_87 = arith.constant dense<0.000000e+00> : vector<16x64xf32>
    %150 = tpu.matmul %1, %149, %cst_87 {dimension_numbers = #tpu.dot_dimension_numbers<[1], [0], [0], [1], [0, 0, 1, 1], [], []>} : vector<16x8xf32>, vector<8x64xf32>, vector<16x64xf32> -> vector<16x64xf32>
    %151 = vector.extract_strided_slice %3 {offsets = [6, 0], sizes = [1, 16], strides = [1, 1]} : vector<8x16xf32> to vector<1x16xf32>
    %152 = vector.broadcast %4 : vector<32x1xf32> to vector<32x16xf32>
    %153 = vector.broadcast %151 : vector<1x16xf32> to vector<32x16xf32>
    %154 = arith.mulf %152, %153 : vector<32x16xf32>
    %155 = vector.broadcast %5 : vector<32x1xf32> to vector<32x16xf32>
    %156 = arith.addf %154, %155 : vector<32x16xf32>
    %cst_88 = arith.constant 0.000000e+00 : f32
    %157 = vector.broadcast %cst_88 : f32 to vector<32x16xf32>
    %158 = arith.maximumf %156, %157 : vector<32x16xf32>
    %159 = tpu.transpose %158, [1, 0] : vector<32x16xf32> -> vector<16x32xf32>
    %cst_89 = arith.constant dense<0.000000e+00> : vector<16x64xf32>
    %160 = tpu.matmul %159, %6, %cst_89 {dimension_numbers = #tpu.dot_dimension_numbers<[1], [0], [0], [1], [0, 0, 1, 1], [], []>} : vector<16x32xf32>, vector<32x64xf32>, vector<16x64xf32> -> vector<16x64xf32>
    %c6_90 = arith.constant 6 : index
    %161 = arith.index_cast %9 : i32 to index
    %c0_91 = arith.constant 0 : index
    %162 = vector.load %arg8[%c6_90, %161, %c0_91] : memref<8x24x64xbf16, #tpu.memory_space<vmem>>, vector<1x16x64xbf16>
    %163 = vector.shape_cast %162 : vector<1x16x64xbf16> to vector<16x64xbf16>
    %164 = arith.extf %163 : vector<16x64xbf16> to vector<16x64xf32>
    %165 = arith.addf %150, %160 : vector<16x64xf32>
    %166 = arith.addf %165, %164 : vector<16x64xf32>
    %167 = arith.truncf %166 : vector<16x64xf32> to vector<16x64xbf16>
    %c0_92 = arith.constant 0 : index
    %c6_93 = arith.constant 6 : index
    %c0_94 = arith.constant 0 : index
    %c0_95 = arith.constant 0 : index
    %168 = vector.load %arg9[%c0_92, %c6_93, %c0_94, %c0_95] : memref<1x8x16x64xbf16, #tpu.memory_space<vmem>>, vector<1x1x16x64xbf16>
    %169 = vector.shape_cast %168 : vector<1x1x16x64xbf16> to vector<16x64xbf16>
    %170 = vector.shape_cast %167 : vector<16x64xbf16> to vector<1x1x16x64xbf16>
    tpu.vector_store %arg9[%c0_92, %c6_93, %c0_94, %c0_95], %170 {strides = array<i32>} : memref<1x8x16x64xbf16, #tpu.memory_space<vmem>>, vector<1x1x16x64xbf16>,
    %c0_96 = arith.constant 0 : index
    %c7 = arith.constant 7 : index
    %c0_97 = arith.constant 0 : index
    %c0_98 = arith.constant 0 : index
    %171 = vector.load %arg3[%c0_96, %c7, %c0_97, %c0_98] : memref<1x8x8x64xf32, #tpu.memory_space<vmem>>, vector<1x1x8x64xf32>
    %172 = vector.shape_cast %171 : vector<1x1x8x64xf32> to vector<8x64xf32>
    %cst_99 = arith.constant dense<0.000000e+00> : vector<16x64xf32>
    %173 = tpu.matmul %1, %172, %cst_99 {dimension_numbers = #tpu.dot_dimension_numbers<[1], [0], [0], [1], [0, 0, 1, 1], [], []>} : vector<16x8xf32>, vector<8x64xf32>, vector<16x64xf32> -> vector<16x64xf32>
    %174 = vector.extract_strided_slice %3 {offsets = [7, 0], sizes = [1, 16], strides = [1, 1]} : vector<8x16xf32> to vector<1x16xf32>
    %175 = vector.broadcast %4 : vector<32x1xf32> to vector<32x16xf32>
    %176 = vector.broadcast %174 : vector<1x16xf32> to vector<32x16xf32>
    %177 = arith.mulf %175, %176 : vector<32x16xf32>
    %178 = vector.broadcast %5 : vector<32x1xf32> to vector<32x16xf32>
    %179 = arith.addf %177, %178 : vector<32x16xf32>
    %cst_100 = arith.constant 0.000000e+00 : f32
    %180 = vector.broadcast %cst_100 : f32 to vector<32x16xf32>
    %181 = arith.maximumf %179, %180 : vector<32x16xf32>
    %182 = tpu.transpose %181, [1, 0] : vector<32x16xf32> -> vector<16x32xf32>
    %cst_101 = arith.constant dense<0.000000e+00> : vector<16x64xf32>
    %183 = tpu.matmul %182, %6, %cst_101 {dimension_numbers = #tpu.dot_dimension_numbers<[1], [0], [0], [1], [0, 0, 1, 1], [], []>} : vector<16x32xf32>, vector<32x64xf32>, vector<16x64xf32> -> vector<16x64xf32>
    %c7_102 = arith.constant 7 : index
    %184 = arith.index_cast %9 : i32 to index
    %c0_103 = arith.constant 0 : index
    %185 = vector.load %arg8[%c7_102, %184, %c0_103] : memref<8x24x64xbf16, #tpu.memory_space<vmem>>, vector<1x16x64xbf16>
    %186 = vector.shape_cast %185 : vector<1x16x64xbf16> to vector<16x64xbf16>
    %187 = arith.extf %186 : vector<16x64xbf16> to vector<16x64xf32>
    %188 = arith.addf %173, %183 : vector<16x64xf32>
    %189 = arith.addf %188, %187 : vector<16x64xf32>
    %190 = arith.truncf %189 : vector<16x64xf32> to vector<16x64xbf16>
    %c0_104 = arith.constant 0 : index
    %c7_105 = arith.constant 7 : index
    %c0_106 = arith.constant 0 : index
    %c0_107 = arith.constant 0 : index
    %191 = vector.load %arg9[%c0_104, %c7_105, %c0_106, %c0_107] : memref<1x8x16x64xbf16, #tpu.memory_space<vmem>>, vector<1x1x16x64xbf16>
    %192 = vector.shape_cast %191 : vector<1x1x16x64xbf16> to vector<16x64xbf16>
    %193 = vector.shape_cast %190 : vector<16x64xbf16> to vector<1x1x16x64xbf16>
    tpu.vector_store %arg9[%c0_104, %c7_105, %c0_106, %c0_107], %193 {strides = array<i32>} : memref<1x8x16x64xbf16, #tpu.memory_space<vmem>>, vector<1x1x16x64xbf16>,
    return
  }
  func.func @transform_0(%arg0: i32, %arg1: i32) -> (i32, i32, i32) {
    %c0_i32 = arith.constant 0 : i32
    %c0_i32_0 = arith.constant 0 : i32
    %c0_i32_1 = arith.constant 0 : i32
    return %arg0, %c0_i32, %c0_i32_0 : i32, i32, i32
  }
  func.func @transform_1(%arg0: i32, %arg1: i32) -> (i32, i32, i32, i32) {
    %c0_i32 = arith.constant 0 : i32
    %c0_i32_0 = arith.constant 0 : i32
    %c0_i32_1 = arith.constant 0 : i32
    return %arg0, %arg1, %c0_i32, %c0_i32_0 : i32, i32, i32, i32
  }
  func.func @transform_2(%arg0: i32, %arg1: i32) -> (i32, i32, i32) {
    %c0_i32 = arith.constant 0 : i32
    %c0_i32_0 = arith.constant 0 : i32
    return %arg0, %arg1, %c0_i32 : i32, i32, i32
  }
  func.func @transform_3(%arg0: i32, %arg1: i32) -> (i32, i32) {
    %c0_i32 = arith.constant 0 : i32
    %c0_i32_0 = arith.constant 0 : i32
    %c0_i32_1 = arith.constant 0 : i32
    return %c0_i32, %c0_i32_0 : i32, i32
  }
  func.func @transform_4(%arg0: i32, %arg1: i32) -> (i32, i32) {
    %c0_i32 = arith.constant 0 : i32
    %c0_i32_0 = arith.constant 0 : i32
    %c0_i32_1 = arith.constant 0 : i32
    return %c0_i32, %c0_i32_0 : i32, i32
  }
  func.func @transform_5(%arg0: i32, %arg1: i32) -> (i32, i32) {
    %c0_i32 = arith.constant 0 : i32
    %c0_i32_0 = arith.constant 0 : i32
    %c0_i32_1 = arith.constant 0 : i32
    return %c0_i32, %c0_i32_0 : i32, i32
  }
  func.func @transform_6(%arg0: i32, %arg1: i32) -> (i32, i32, i32) {
    %c0_i32 = arith.constant 0 : i32
    %c0_i32_0 = arith.constant 0 : i32
    %c0_i32_1 = arith.constant 0 : i32
    %c0_i32_2 = arith.constant 0 : i32
    return %c0_i32, %c0_i32_0, %c0_i32_1 : i32, i32, i32
  }
  func.func @transform_7(%arg0: i32, %arg1: i32) -> (i32, i32, i32, i32) {
    %c0_i32 = arith.constant 0 : i32
    %c0_i32_0 = arith.constant 0 : i32
    %c0_i32_1 = arith.constant 0 : i32
    return %arg0, %arg1, %c0_i32, %c0_i32_0 : i32, i32, i32, i32
  }
}

</mosaic_0001>

<llo_original>
// kernel: tpu_custom_call.1
$region0: #{tpu_custom_call.1}
  #allocation0 [shape = 'u32[]', space=smem, size = 0x4, offset = 0x4, fixed_abs, tag = 'smem constant byte address 0x4 - core index']
  #allocation1 [shape = 'u32[144,128]{1,0:T(1,128)}', space=vmem, size = 0x12000, scoped, tag = 'internal scratch']
  %s0 = inlined_call_operand.vmem [shape: f32[2,16,8], index: 0, kind: input, shape index: {}]
  %s1 = inlined_call_operand.hbm [shape: f32[2,16,8,64], index: 1, kind: input, shape index: {}]
  %s2 = inlined_call_operand.vmem [shape: f32[2,16,16], index: 2, kind: input, shape index: {}]
  %s3 = inlined_call_operand.vmem [shape: f32[32,1], index: 3, kind: input, shape index: {}]
  %s4 = inlined_call_operand.vmem [shape: f32[32,1], index: 4, kind: input, shape index: {}]
  %s5 = inlined_call_operand.hbm [shape: f32[32,64], index: 5, kind: input, shape index: {}]
  %s6 = inlined_call_operand.vmem [shape: bf16[8,24,64], index: 6, kind: input, shape index: {}]
  %s7 = inlined_call_operand.hbm [shape: bf16[2,16,16,64], index: 7, kind: output, shape index: {}]
  %s8 = sld [smem:[#allocation0]]
  $region69: #{tpu_custom_call.1} parent=0
    _
  %s10 = ssub.s32 1, %s8
  %s11 = scalar_select 0, %s10, %s8
  $region1: #{tpu_custom_call.1} parent=0
    #allocation2 [shape = 'u8[65536]{0}', space=vmem, size = 0x10000, scoped, tag = 'input window, operand 1']
    #allocation3 [shape = 's32[2]{0}', space=sflag, size = 0x8, scoped, tag = 'scoped memory for tpu_custom_call.1']
    #allocation4 [shape = 's32[2]{0}', space=sflag, size = 0x8, scoped, tag = 'scoped memory for tpu_custom_call.1']
    #allocation5 [shape = 'u8[16384]{0}', space=vmem, size = 0x4000, scoped, tag = 'input window, operand 5, single buffered']
    #allocation6 [shape = 's32[1]{0}', space=sflag, size = 0x4, scoped, tag = 'scoped memory for tpu_custom_call.1']
    #allocation7 [shape = 'u8[65536]{0}', space=vmem, size = 0x10000, scoped, tag = 'output window, operand 0']
    %12 = vsyncpa [#allocation3], 0
    %s13 = scalar_lea.sflag [#allocation3], 1
    %14 = vsyncpa %s13, 0
    %15 = vsyncpa [#allocation6], 0
    %16 = vsyncpa [#allocation4], 0
    %s17 = scalar_lea.sflag [#allocation4], 1
    %18 = vsyncpa %s17, 0
    loop: start=0, step=1, limit=6
    $region2: #{tpu_custom_call.1} parent=1 // loop_pre_header
      _
    $region3: #{tpu_custom_call.1} parent=1 // loop_header
      %s20 = sphi 0, %s24
      %p21 = scmp.ge.s32.totalorder %s20, 6
      %s27 = sphi 0, %s39
      %s28 = sphi 0, %s35
      %s29 = sphi 0, %s27
      %s30 = sphi 0, %s28
      %s31 = sphi 0, %s29
      %s32 = sphi 0, %s30
      %s42 = sphi 0, %s44
      %s45 = sphi 0, %s42
      %s46 = sphi 0, %s45
      %s62 = sphi 0, %s46
      %s70 = sphi 0, %s72
      %s73 = sphi 0, %s70
      %s74 = sphi 0, %s73
      %s90 = sphi 0, %s74
      %s98 = sphi 0, %s100
      %s101 = sphi 0, %s98
      %s102 = sphi 0, %s101
      %s118 = sphi 0, %s102
      %s122 = sphi 0, %s122
      %s124 = sphi 0, %s122
      %s125 = sphi 0, %s124
      %s139 = sphi 0, %s125
      %s143 = sphi 0, %s143
      %s145 = sphi 0, %s143
      %s146 = sphi 0, %s145
      %s160 = sphi 0, %s146
      %s164 = sphi 0, %s164
      %s166 = sphi 0, %s164
      %s167 = sphi 0, %s166
      %s181 = sphi 0, %s167
      %s185 = sphi 0, %s185
      %s187 = sphi 0, %s185
      %s188 = sphi 0, %s187
      %s202 = sphi 0, %s188
      %s210 = sphi 0, %s212
      %s213 = sphi 0, %s210
      %s214 = sphi 0, %s213
      %s230 = sphi 0, %s214
    $region4: #{tpu_custom_call.1} parent=1 // loop_header_branch
      %23 = sbr.rel (%p21) target = $region8
    $region5: #{tpu_custom_call.1} parent=1 // loop_body
      %s25 = ssub.s32 %s20, 1
      %s26 = ssub.s32 %s20, 2
      %s33 = sadd.s32 1, %s28
      %p34 = scmp.ge.s32.totalorder %s33, 2
      %s35 = scalar_select %p34, 0, %s33
      %s36 = sadd.s32 1, %s27
      %s37 = scalar_select %p34, %s36, %s27
      %p38 = scmp.ge.s32.totalorder %s37, 2
      %s39 = scalar_select %p38, 0, %s37
      %s40 = ssub.s32 %s27, %s39
      %p41 = scmp.eq.s32.totalorder %s40, 0
      %s43 = sadd.s32 %s42, 1
      %s44 = scalar_select %p41, %s42, %s43
      %p47 = pneg %p41
      %p48 = scmp.eq.s32.totalorder %s20, 3
      %p49 = por %p47, %p48
      %p50 = scmp.ne.s32.totalorder %s42, %s45
      %p51 = scmp.eq.s32.totalorder %s20, 0
      %p52 = por %p50, %p51
      %p53 = scmp.ne.s32.totalorder %s42, %s45
      %p54 = scmp.eq.s32.totalorder %s25, 3
      %p55 = por %p53, %p54
      %p56 = scmp.ne.s32.totalorder %s45, %s46
      %p57 = scmp.eq.s32.totalorder %s25, 0
      %p58 = por %p56, %p57
      %p59 = scmp.ne.s32.totalorder %s45, %s46
      %p60 = scmp.eq.s32.totalorder %s26, 3
      %p61 = por %p59, %p60
      %p63 = scmp.ne.s32.totalorder %s46, %s62
      %p64 = scmp.eq.s32.totalorder %s26, 0
      %p65 = por %p63, %p64
      %s66 = ssub.s32 %s27, %s39
      %s67 = ssub.s32 %s28, %s35
      %s68 = sor.u32 %s66, %s67
      %p69 = scmp.eq.s32.totalorder %s68, 0
      %s71 = sadd.s32 %s70, 1
      %s72 = scalar_select %p69, %s70, %s71
      %p75 = pneg %p69
      %p76 = scmp.eq.s32.totalorder %s20, 3
      %p77 = por %p75, %p76
      %p78 = scmp.ne.s32.totalorder %s70, %s73
      %p79 = scmp.eq.s32.totalorder %s20, 0
      %p80 = por %p78, %p79
      %p81 = scmp.ne.s32.totalorder %s70, %s73
      %p82 = scmp.eq.s32.totalorder %s25, 3
      %p83 = por %p81, %p82
      %p84 = scmp.ne.s32.totalorder %s73, %s74
      %p85 = scmp.eq.s32.totalorder %s25, 0
      %p86 = por %p84, %p85
      %p87 = scmp.ne.s32.totalorder %s73, %s74
      %p88 = scmp.eq.s32.totalorder %s26, 3
      %p89 = por %p87, %p88
      %p91 = scmp.ne.s32.totalorder %s74, %s90
      %p92 = scmp.eq.s32.totalorder %s26, 0
      %p93 = por %p91, %p92
      %s94 = ssub.s32 %s27, %s39
      %s95 = ssub.s32 %s28, %s35
      %s96 = sor.u32 %s94, %s95
      %p97 = scmp.eq.s32.totalorder %s96, 0
      %s99 = sadd.s32 %s98, 1
      %s100 = scalar_select %p97, %s98, %s99
      %p103 = pneg %p97
      %p104 = scmp.eq.s32.totalorder %s20, 3
      %p105 = por %p103, %p104
      %p106 = scmp.ne.s32.totalorder %s98, %s101
      %p107 = scmp.eq.s32.totalorder %s20, 0
      %p108 = por %p106, %p107
      %p109 = scmp.ne.s32.totalorder %s98, %s101
      %p110 = scmp.eq.s32.totalorder %s25, 3
      %p111 = por %p109, %p110
      %p112 = scmp.ne.s32.totalorder %s101, %s102
      %p113 = scmp.eq.s32.totalorder %s25, 0
      %p114 = por %p112, %p113
      %p115 = scmp.ne.s32.totalorder %s101, %s102
      %p116 = scmp.eq.s32.totalorder %s26, 3
      %p117 = por %p115, %p116
      %p119 = scmp.ne.s32.totalorder %s102, %s118
      %p120 = scmp.eq.s32.totalorder %s26, 0
      %p121 = por %p119, %p120
      %s123 = sadd.s32 %s122, 1
      %p126 = scmp.eq.s32.totalorder %s20, 3
      %p127 = scmp.ne.s32.totalorder %s122, %s124
      %p128 = scmp.eq.s32.totalorder %s20, 0
      %p129 = por %p127, %p128
      %p130 = scmp.ne.s32.totalorder %s122, %s124
      %p131 = scmp.eq.s32.totalorder %s25, 3
      %p132 = por %p130, %p131
      %p133 = scmp.ne.s32.totalorder %s124, %s125
      %p134 = scmp.eq.s32.totalorder %s25, 0
      %p135 = por %p133, %p134
      %p136 = scmp.ne.s32.totalorder %s124, %s125
      %p137 = scmp.eq.s32.totalorder %s26, 3
      %p138 = por %p136, %p137
      %p140 = scmp.ne.s32.totalorder %s125, %s139
      %p141 = scmp.eq.s32.totalorder %s26, 0
      %p142 = por %p140, %p141
      %s144 = sadd.s32 %s143, 1
      %p147 = scmp.eq.s32.totalorder %s20, 3
      %p148 = scmp.ne.s32.totalorder %s143, %s145
      %p149 = scmp.eq.s32.totalorder %s20, 0
      %p150 = por %p148, %p149
      %p151 = scmp.ne.s32.totalorder %s143, %s145
      %p152 = scmp.eq.s32.totalorder %s25, 3
      %p153 = por %p151, %p152
      %p154 = scmp.ne.s32.totalorder %s145, %s146
      %p155 = scmp.eq.s32.totalorder %s25, 0
      %p156 = por %p154, %p155
      %p157 = scmp.ne.s32.totalorder %s145, %s146
      %p158 = scmp.eq.s32.totalorder %s26, 3
      %p159 = por %p157, %p158
      %p161 = scmp.ne.s32.totalorder %s146, %s160
      %p162 = scmp.eq.s32.totalorder %s26, 0
      %p163 = por %p161, %p162
      %s165 = sadd.s32 %s164, 1
      %p168 = scmp.eq.s32.totalorder %s20, 3
      %p169 = scmp.ne.s32.totalorder %s164, %s166
      %p170 = scmp.eq.s32.totalorder %s20, 0
      %p171 = por %p169, %p170
      %p172 = scmp.ne.s32.totalorder %s164, %s166
      %p173 = scmp.eq.s32.totalorder %s25, 3
      %p174 = por %p172, %p173
      %p175 = scmp.ne.s32.totalorder %s166, %s167
      %p176 = scmp.eq.s32.totalorder %s25, 0
      %p177 = por %p175, %p176
      %p178 = scmp.ne.s32.totalorder %s166, %s167
      %p179 = scmp.eq.s32.totalorder %s26, 3
      %p180 = por %p178, %p179
      %p182 = scmp.ne.s32.totalorder %s167, %s181
      %p183 = scmp.eq.s32.totalorder %s26, 0
      %p184 = por %p182, %p183
      %s186 = sadd.s32 %s185, 1
      %p189 = scmp.eq.s32.totalorder %s20, 3
      %p190 = scmp.ne.s32.totalorder %s185, %s187
      %p191 = scmp.eq.s32.totalorder %s20, 0
      %p192 = por %p190, %p191
      %p193 = scmp.ne.s32.totalorder %s185, %s187
      %p194 = scmp.eq.s32.totalorder %s25, 3
      %p195 = por %p193, %p194
      %p196 = scmp.ne.s32.totalorder %s187, %s188
      %p197 = scmp.eq.s32.totalorder %s25, 0
      %p198 = por %p196, %p197
      %p199 = scmp.ne.s32.totalorder %s187, %s188
      %p200 = scmp.eq.s32.totalorder %s26, 3
      %p201 = por %p199, %p200
      %p203 = scmp.ne.s32.totalorder %s188, %s202
      %p204 = scmp.eq.s32.totalorder %s26, 0
      %p205 = por %p203, %p204
      %s206 = ssub.s32 %s27, %s39
      %s207 = ssub.s32 %s28, %s35
      %s208 = sor.u32 %s206, %s207
      %p209 = scmp.eq.s32.totalorder %s208, 0
      %s211 = sadd.s32 %s210, 1
      %s212 = scalar_select %p209, %s210, %s211
      %p215 = pneg %p209
      %p216 = scmp.eq.s32.totalorder %s20, 3
      %p217 = por %p215, %p216
      %p218 = scmp.ne.s32.totalorder %s210, %s213
      %p219 = scmp.eq.s32.totalorder %s20, 0
      %p220 = por %p218, %p219
      %p221 = scmp.ne.s32.totalorder %s210, %s213
      %p222 = scmp.eq.s32.totalorder %s25, 3
      %p223 = por %p221, %p222
      %p224 = scmp.ne.s32.totalorder %s213, %s214
      %p225 = scmp.eq.s32.totalorder %s25, 0
      %p226 = por %p224, %p225
      %p227 = scmp.ne.s32.totalorder %s213, %s214
      %p228 = scmp.eq.s32.totalorder %s26, 3
      %p229 = por %p227, %p228
      %p231 = scmp.ne.s32.totalorder %s214, %s230
      %p232 = scmp.eq.s32.totalorder %s26, 0
      %p233 = por %p231, %p232
      %p234 = scmp.le.s32.totalorder 1, %s20
      %p235 = scmp.lt.s32.totalorder %s20, 5
      %p236 = pnand %p234, %p235
      %p237 = pneg %p236
      // Predicated region
      $region9: #{tpu_custom_call.1} parent=5 // pred_check
        _
      $region10: #{tpu_custom_call.1} parent=5 // pred_check_branch
        %239 = sbr.rel (%p236) target = $region12
      $region11: #{tpu_custom_call.1} parent=5 // pred_region
        %s240 = ssub.s32 %s20, 1
        // Predicated region
        $region13: #{tpu_custom_call.1} parent=11 // pred_check
          %p241 = pneg %p135
        $region14: #{tpu_custom_call.1} parent=11 // pred_check_branch
          %243 = sbr.rel (%p241) target = $region16
        $region15: #{tpu_custom_call.1} parent=11 // pred_region
          _
        $region16: #{tpu_custom_call.1} parent=11 // pred_fallthru
          _
        // Predicated region
        $region17: #{tpu_custom_call.1} parent=11 // pred_check
          %p244 = pneg %p156
        $region18: #{tpu_custom_call.1} parent=11 // pred_check_branch
          %246 = sbr.rel (%p244) target = $region20
        $region19: #{tpu_custom_call.1} parent=11 // pred_region
          _
        $region20: #{tpu_custom_call.1} parent=11 // pred_fallthru
          _
        // Predicated region
        $region21: #{tpu_custom_call.1} parent=11 // pred_check
          %p247 = pneg %p177
        $region22: #{tpu_custom_call.1} parent=11 // pred_check_branch
          %249 = sbr.rel (%p247) target = $region24
        $region23: #{tpu_custom_call.1} parent=11 // pred_region
          %s251 = ssub.s32 512, 512
          %252 = vsyncadd [#allocation6], %s251
          %s253 = sshll.u32 [#allocation5], 4
          %s254 = int_to_ptr.vmem [resolvable:$true] %s253
          %259 = dma.hbm_to_vmem [thread:$0]  %s5, 512, %s254, [#allocation6], 128, 128, 8
        $region24: #{tpu_custom_call.1} parent=11 // pred_fallthru
          _
        // Predicated region
        $region25: #{tpu_custom_call.1} parent=11 // pred_check
          %p260 = pneg %p198
        $region26: #{tpu_custom_call.1} parent=11 // pred_check_branch
          %262 = sbr.rel (%p260) target = $region28
        $region27: #{tpu_custom_call.1} parent=11 // pred_region
          _
        $region28: #{tpu_custom_call.1} parent=11 // pred_fallthru
          _
      $region12: #{tpu_custom_call.1} parent=5 // pred_fallthru
        _
      %p263 = scmp.lt.s32.totalorder %s20, 4
      // Predicated region
      $region29: #{tpu_custom_call.1} parent=5 // pred_check
        %p264 = pneg %p263
      $region30: #{tpu_custom_call.1} parent=5 // pred_check_branch
        %266 = sbr.rel (%p264) target = $region32
      $region31: #{tpu_custom_call.1} parent=5 // pred_region
        // Predicated region
        $region33: #{tpu_custom_call.1} parent=31 // pred_check
          %p267 = pneg %p52
        $region34: #{tpu_custom_call.1} parent=31 // pred_check_branch
          %269 = sbr.rel (%p267) target = $region36
        $region35: #{tpu_custom_call.1} parent=31 // pred_region
          %p270 = scmp.lt.s32.totalorder %s27, 1
          %s271 = scalar_select %p270, %s27, 1
          %s272 = smul.addr %s271, 2
          %s273 = smul.addr %s272, 8
          %s274 = scalar_lea.vmem %s0, %s273
        $region36: #{tpu_custom_call.1} parent=31 // pred_fallthru
          _
        // Predicated region
        $region37: #{tpu_custom_call.1} parent=31 // pred_check
          %p275 = pneg %p80
        $region38: #{tpu_custom_call.1} parent=31 // pred_check_branch
          %277 = sbr.rel (%p275) target = $region40
        $region39: #{tpu_custom_call.1} parent=31 // pred_region
          %s278 = sand.u32 %s70, 1
          %s279 = scalar_lea.sflag [#allocation3], %s278
          %s280 = sand.u32 %s70, 1
          %s281 = smul.addr %s280, 64
          %s282 = scalar_lea.vmem [#allocation2], %s281
          %s283 = smul.u32 8, %s28
          %s285 = ssub.s32 1024, 1024
          %286 = vsyncadd %s279, %s285
          %s287 = smul.addr %s27, 16
          %s288 = sadd.s32 %s283, %s287
          %s289 = smul.addr %s288, 128
          %s290 = scalar_lea.hbm %s1, %s289
          %s291 = sshll.u32 %s282, 4
          %s292 = int_to_ptr.vmem [resolvable:$true] %s291
          %297 = dma.hbm_to_vmem [thread:$0]  %s290, 1024, %s292, %s279, 128, 128, 8
        $region40: #{tpu_custom_call.1} parent=31 // pred_fallthru
          _
        // Predicated region
        $region41: #{tpu_custom_call.1} parent=31 // pred_check
          %p298 = pneg %p108
        $region42: #{tpu_custom_call.1} parent=31 // pred_check_branch
          %300 = sbr.rel (%p298) target = $region44
        $region43: #{tpu_custom_call.1} parent=31 // pred_region
          %p301 = scmp.lt.s32.totalorder %s27, 1
          %s302 = scalar_select %p301, %s27, 1
          %p303 = scmp.lt.s32.totalorder %s28, 1
          %s304 = scalar_select %p303, %s28, 1
          %s305 = smul.addr %s302, 2
          %s306 = sadd.s32 %s304, %s305
          %s307 = smul.addr %s306, 8
          %s308 = scalar_lea.vmem %s2, %s307
        $region44: #{tpu_custom_call.1} parent=31 // pred_fallthru
          _
      $region32: #{tpu_custom_call.1} parent=5 // pred_fallthru
        _
      %p309 = scmp.le.s32.totalorder 1, %s20
      %p310 = scmp.lt.s32.totalorder %s20, 5
      %p311 = pnand %p309, %p310
      %p312 = pneg %p311
      // Predicated region
      $region45: #{tpu_custom_call.1} parent=5 // pred_check
        _
      $region46: #{tpu_custom_call.1} parent=5 // pred_check_branch
        %314 = sbr.rel (%p311) target = $region48
      $region47: #{tpu_custom_call.1} parent=5 // pred_region
        %s315 = ssub.s32 %s20, 1
        %s316 = sand.u32 %s73, 1
        %s317 = scalar_lea.sflag [#allocation3], %s316
        %s318 = sand.u32 %s73, 1
        %s319 = smul.addr %s318, 64
        %s320 = scalar_lea.vmem [#allocation2], %s319
        // Predicated region
        $region49: #{tpu_custom_call.1} parent=47 // pred_check
          %p321 = pneg %p86
        $region50: #{tpu_custom_call.1} parent=47 // pred_check_branch
          %323 = sbr.rel (%p321) target = $region52
        $region51: #{tpu_custom_call.1} parent=47 // pred_region
          %324 = dma.done %s317, 1024
        $region52: #{tpu_custom_call.1} parent=47 // pred_fallthru
          _
        // Predicated region
        $region53: #{tpu_custom_call.1} parent=47 // pred_check
          %p325 = pneg %p177
        $region54: #{tpu_custom_call.1} parent=47 // pred_check_branch
          %327 = sbr.rel (%p325) target = $region56
        $region55: #{tpu_custom_call.1} parent=47 // pred_region
          %328 = dma.done [#allocation6], 512
        $region56: #{tpu_custom_call.1} parent=47 // pred_fallthru
          _
        %p329 = scmp.lt.s32.totalorder %s29, 1
        %s330 = scalar_select %p329, %s29, 1
        %s331 = smul.addr %s330, 2
        %s332 = smul.addr %s331, 8
        %s333 = scalar_lea.vmem %s0, %s332
        %p334 = pneg %p58
        %p335 = pneg %p55
        %s336 = sand.u32 %s73, 1
        %s337 = scalar_lea.sflag [#allocation3], %s336
        %s338 = sand.u32 %s73, 1
        %s339 = smul.addr %s338, 64
        %s340 = scalar_lea.vmem [#allocation2], %s339
        %p341 = pneg %p86
        %p342 = pneg %p83
        %p343 = scmp.lt.s32.totalorder %s29, 1
        %s344 = scalar_select %p343, %s29, 1
        %p345 = scmp.lt.s32.totalorder %s30, 1
        %s346 = scalar_select %p345, %s30, 1
        %s347 = smul.addr %s344, 2
        %s348 = sadd.s32 %s346, %s347
        %s349 = smul.addr %s348, 8
        %s350 = scalar_lea.vmem %s2, %s349
        %p351 = pneg %p114
        %p352 = pneg %p111
        %p353 = pneg %p135
        %p354 = pneg %p132
        %p355 = pneg %p156
        %p356 = pneg %p153
        %p357 = pneg %p177
        %p358 = pneg %p174
        %p359 = pneg %p198
        %p360 = pneg %p195
        %p361 = pneg %p226
        %p362 = pneg %p223
        %s363 = sand.u32 %s213, 1
        %s364 = scalar_lea.sflag [#allocation4], %s363
        %s365 = sand.u32 %s213, 1
        %s366 = smul.addr %s365, 64
        %s367 = scalar_lea.vmem [#allocation7], %s366
        %p368 = scmp.lt.s32.totalorder %s29, 1
        %s369 = scalar_select %p368, %s29, 1
        %s370 = smul.addr %s369, 2
        %s371 = smul.addr %s370, 8
        %s372 = scalar_lea.vmem %s0, %s371
        %s373 = smul.u32 8, %s30
        %p374 = scmp.lt.s32.totalorder %s29, 1
        %s375 = scalar_select %p374, %s29, 1
        %p376 = scmp.lt.s32.totalorder %s30, 1
        %s377 = scalar_select %p376, %s30, 1
        %s378 = smul.addr %s375, 2
        %s379 = sadd.s32 %s377, %s378
        %s380 = smul.addr %s379, 8
        %s381 = scalar_lea.vmem %s2, %s380
        %s382 = smul.u32 8, %s30
        %v383 = vld [vmem:[%s372] sm:$0xff]
        %v384 = vld [vmem:[%s372 + $0x8] sm:$0xff]
        %v385 = vld [vmem:[%s381] sm:$0xff]
        %v386 = vld [vmem:[%s3] sm:$0xff]
        %v387 = vld [vmem:[%s3 + $0x8] sm:$0xff]
        %v388 = vld [vmem:[%s3 + $0x10] sm:$0xff]
        %v389 = vld [vmem:[%s3 + $0x18] sm:$0xff]
        %v390 = vld [vmem:[%s4] sm:$0xff]
        %v391 = vld [vmem:[%s4 + $0x8] sm:$0xff]
        %v392 = vld [vmem:[%s4 + $0x10] sm:$0xff]
        %v393 = vld [vmem:[%s4 + $0x18] sm:$0xff]
        %v394 = vld [vmem:[#allocation5] sm:$0xff]
        %v395 = vld [vmem:[#allocation5 + $0x8] sm:$0xff]
        %v396 = vld [vmem:[#allocation5 + $0x10] sm:$0xff]
        %v397 = vld [vmem:[#allocation5 + $0x18] sm:$0xff]
        %s398 = smul.u32 %s30, 8
        %s399 = ssub.s32 8, %s398
        %v400 = vld [vmem:[%s320] sm:$0xff]
        %402 = vset.pattern.permute.xlu0 0
        %403 = vperm.xlu0 %402, %v386
        %v404 = vpop.permute.xlu0 %403
        %407 = vset.pattern.permute.xlu0 0
        %408 = vperm.xlu0 %407, %v387
        %v409 = vpop.permute.xlu0 %408
        %412 = vset.pattern.permute.xlu0 0
        %413 = vperm.xlu0 %412, %v388
        %v414 = vpop.permute.xlu0 %413
        %417 = vset.pattern.permute.xlu0 0
        %418 = vperm.xlu0 %417, %v389
        %v419 = vpop.permute.xlu0 %418
        %v421 = vlaneseq
        %v422 = vshrl.u32 %v421, 7
        %v423 = vsub.s32 0, %v422
        %v424 = vrot.slane %v385, %v423
        %v425 = vmul.f32 %v404, %v424
        %v426 = vmul.f32 %v409, %v424
        %v427 = vmul.f32 %v414, %v424
        %v428 = vmul.f32 %v419, %v424
        %430 = vset.pattern.permute.xlu0 0
        %431 = vperm.xlu0 %430, %v390
        %v432 = vpop.permute.xlu0 %431
        %435 = vset.pattern.permute.xlu0 0
        %436 = vperm.xlu0 %435, %v391
        %v437 = vpop.permute.xlu0 %436
        %440 = vset.pattern.permute.xlu0 0
        %441 = vperm.xlu0 %440, %v392
        %v442 = vpop.permute.xlu0 %441
        %445 = vset.pattern.permute.xlu0 0
        %446 = vperm.xlu0 %445, %v393
        %v447 = vpop.permute.xlu0 %446
        %v449 = vadd.f32 %v425, %v432
        %v450 = vadd.f32 %v426, %v437
        %v451 = vadd.f32 %v427, %v442
        %v452 = vadd.f32 %v428, %v447
        %v453 = vmax.f32 %v449, 0.0
        %v454 = vmax.f32 %v450, 0.0
        %v455 = vmax.f32 %v451, 0.0
        %v456 = vmax.f32 %v452, 0.0
        %457 = vxpose.xlu0.b32.start [1/16] %v453, 128
        %458 = vxpose.xlu0.b32.cont [2/16] %v454, 128
        %459 = vxpose.xlu0.b32.cont [3/16] %v455, 128
        %460 = vxpose.xlu0.b32.cont [4/16] %v456, 128
        %461 = vxpose.xlu0.b32.cont [5/16] 0.0, 128
        %462 = vxpose.xlu0.b32.cont [6/16] 0.0, 128
        %463 = vxpose.xlu0.b32.cont [7/16] 0.0, 128
        %464 = vxpose.xlu0.b32.cont [8/16] 0.0, 128
        %465 = vxpose.xlu0.b32.cont [9/16] 0.0, 128
        %466 = vxpose.xlu0.b32.cont [10/16] 0.0, 128
        %467 = vxpose.xlu0.b32.cont [11/16] 0.0, 128
        %468 = vxpose.xlu0.b32.cont [12/16] 0.0, 128
        %469 = vxpose.xlu0.b32.cont [13/16] 0.0, 128
        %470 = vxpose.xlu0.b32.cont [14/16] 0.0, 128
        %471 = vxpose.xlu0.b32.cont [15/16] 0.0, 128
        %472 = vxpose.xlu0.b32.end [16/16] 0.0, 128
        %v473 = vpop.trf.xlu0
        %v474 = vpop.trf.xlu0
        %v475 = vpop.trf.xlu0
        %v476 = vpop.trf.xlu0
        %v477 = vpop.trf.xlu0
        %v478 = vpop.trf.xlu0
        %v479 = vpop.trf.xlu0
        %v480 = vpop.trf.xlu0
        %v481 = vpop.trf.xlu0
        %v482 = vpop.trf.xlu0
        %v483 = vpop.trf.xlu0
        %v484 = vpop.trf.xlu0
        %v485 = vpop.trf.xlu0
        %v486 = vpop.trf.xlu0
        %v487 = vpop.trf.xlu0
        %v488 = vpop.trf.xlu0
        %vm489 = vcmask 261120
        %v491 = vsel %vm489, %v473, 0
        %v494 = vsel %vm489, %v474, 0
        %496 = vmatprep.subr.mxu0 0.0
        %497 = vmatpush1.msra.mxu0 %v394
        %498 = vmatprep.subr.mxu0 0.0
        %499 = vmatpush1.msra.mxu0 %v395
        %500 = vmatprep.subr.mxu0 0.0
        %501 = vmatpush1.msra.mxu0 %v396
        %502 = vmatprep.subr.mxu0 0.0
        %503 = vmatpush1.msra.mxu0 %v397
        %504 = vmatprep.subr.mxu0 0.0
        %505 = vmatpush1.msra.mxu0 0.0
        %506 = vmatprep.subr.mxu0 0.0
        %507 = vmatpush1.msra.mxu0 0.0
        %508 = vmatprep.subr.mxu0 0.0
        %509 = vmatpush1.msra.mxu0 0.0
        %510 = vmatprep.subr.mxu0 0.0
        %511 = vmatpush1.msra.mxu0 0.0
        %512 = vmatprep.subr.mxu0 0.0
        %513 = vmatpush1.msra.mxu0 0.0
        %514 = vmatprep.subr.mxu0 0.0
        %515 = vmatpush1.msra.mxu0 0.0
        %516 = vmatprep.subr.mxu0 0.0
        %517 = vmatpush1.msra.mxu0 0.0
        %518 = vmatprep.subr.mxu0 0.0
        %519 = vmatpush1.msra.mxu0 0.0
        %520 = vmatprep.subr.mxu0 0.0
        %521 = vmatpush1.msra.mxu0 0.0
        %522 = vmatprep.subr.mxu0 0.0
        %523 = vmatpush1.msra.mxu0 0.0
        %524 = vmatprep.subr.mxu0 0.0
        %525 = vmatpush1.msra.mxu0 0.0
        %526 = vmatprep.subr.mxu0 0.0
        %527 = vmatpush1.msra.mxu0 0.0
        %528 = vmatprep.subr.mxu0 0.0
        %529 = vmatpush1.msra.mxu0 0.0
        %530 = vmatprep.subr.mxu0 0.0
        %531 = vmatpush1.msra.mxu0 0.0
        %532 = vmatprep.subr.mxu0 0.0
        %533 = vmatpush1.msra.mxu0 0.0
        %534 = vmatprep.subr.mxu0 0.0
        %535 = vmatpush1.msra.mxu0 0.0
        %536 = vmatprep.subr.mxu0 0.0
        %537 = vmatpush1.msra.mxu0 0.0
        %538 = vmatprep.subr.mxu0 0.0
        %539 = vmatpush1.msra.mxu0 0.0
        %540 = vmatprep.subr.mxu0 0.0
        %541 = vmatpush1.msra.mxu0 0.0
        %542 = vmatprep.subr.mxu0 0.0
        %543 = vmatpush1.msra.mxu0 0.0
        %544 = vmatprep.subr.mxu0 0.0
        %545 = vmatpush1.msra.mxu0 0.0
        %546 = vmatprep.subr.mxu0 0.0
        %547 = vmatpush1.msra.mxu0 0.0
        %548 = vmatprep.subr.mxu0 0.0
        %549 = vmatpush1.msra.mxu0 0.0
        %550 = vmatprep.subr.mxu0 0.0
        %551 = vmatpush1.msra.mxu0 0.0
        %552 = vmatprep.subr.mxu0 0.0
        %553 = vmatpush1.msra.mxu0 0.0
        %554 = vmatprep.subr.mxu0 0.0
        %555 = vmatpush1.msra.mxu0 0.0
        %556 = vmatprep.subr.mxu0 0.0
        %557 = vmatpush1.msra.mxu0 0.0
        %558 = vmatprep.subr.mxu0 0.0
        %559 = vmatpush1.msra.mxu0 0.0
        %560 = vmatprep.mubr.f32.mxu0 0.0
        %561 = vmatmul.mubr.f32.gmra.mrb[0].mxu0 %v491
        %v562 = vpop.f32.mrb[0].mxu0
        %v563 = vadd.f32 0.0, %v562
        %v564 = vpop.f32.mrb[0].mxu0
        %565 = vmatprep.mubr.f32.mxu0 0.0
        %566 = vmatmul.mubr.f32.gmra.mrb[0].mxu0 %v494
        %v567 = vpop.f32.mrb[0].mxu0
        %v568 = vadd.f32 0.0, %v567
        %v569 = vpop.f32.mrb[0].mxu0
        %570 = vdwg.mxu0
        %s571 = sshra.s32 %s399, 3
        %s572 = sand.u32 %s399, 7
        %s573 = smul.addr %s571, 4
        %s574 = scalar_lea.vmem %s6, %s573
        %v575 = vld [vmem:[%s574] sm:$0xf]
        %v576 = vld [vmem:[%s574 + $0x4] sm:$0xf]
        %v577 = vunpack.c.l.bf16 %v575
        %v578 = vunpack.c.l.bf16 %v576
        %vm579 = vcmask 64512
        %v581 = vsel %vm579, %v383, 0
        %v584 = vsel %vm579, %v384, 0
        %586 = vmatprep.subr.mxu0 0.0
        %587 = vmatpush1.msra.mxu0 %v400
        %588 = vmatprep.subr.mxu0 0.0
        %589 = vmatpush1.msra.mxu0 0.0
        %590 = vmatprep.subr.mxu0 0.0
        %591 = vmatpush1.msra.mxu0 0.0
        %592 = vmatprep.subr.mxu0 0.0
        %593 = vmatpush1.msra.mxu0 0.0
        %594 = vmatprep.subr.mxu0 0.0
        %595 = vmatpush1.msra.mxu0 0.0
        %596 = vmatprep.subr.mxu0 0.0
        %597 = vmatpush1.msra.mxu0 0.0
        %598 = vmatprep.subr.mxu0 0.0
        %599 = vmatpush1.msra.mxu0 0.0
        %600 = vmatprep.subr.mxu0 0.0
        %601 = vmatpush1.msra.mxu0 0.0
        %602 = vmatprep.subr.mxu0 0.0
        %603 = vmatpush1.msra.mxu0 0.0
        %604 = vmatprep.subr.mxu0 0.0
        %605 = vmatpush1.msra.mxu0 0.0
        %606 = vmatprep.subr.mxu0 0.0
        %607 = vmatpush1.msra.mxu0 0.0
        %608 = vmatprep.subr.mxu0 0.0
        %609 = vmatpush1.msra.mxu0 0.0
        %610 = vmatprep.subr.mxu0 0.0
        %611 = vmatpush1.msra.mxu0 0.0
        %612 = vmatprep.subr.mxu0 0.0
        %613 = vmatpush1.msra.mxu0 0.0
        %614 = vmatprep.subr.mxu0 0.0
        %615 = vmatpush1.msra.mxu0 0.0
        %616 = vmatprep.subr.mxu0 0.0
        %617 = vmatpush1.msra.mxu0 0.0
        %618 = vmatprep.subr.mxu0 0.0
        %619 = vmatpush1.msra.mxu0 0.0
        %620 = vmatprep.subr.mxu0 0.0
        %621 = vmatpush1.msra.mxu0 0.0
        %622 = vmatprep.subr.mxu0 0.0
        %623 = vmatpush1.msra.mxu0 0.0
        %624 = vmatprep.subr.mxu0 0.0
        %625 = vmatpush1.msra.mxu0 0.0
        %626 = vmatprep.subr.mxu0 0.0
        %627 = vmatpush1.msra.mxu0 0.0
        %628 = vmatprep.subr.mxu0 0.0
        %629 = vmatpush1.msra.mxu0 0.0
        %630 = vmatprep.subr.mxu0 0.0
        %631 = vmatpush1.msra.mxu0 0.0
        %632 = vmatprep.subr.mxu0 0.0
        %633 = vmatpush1.msra.mxu0 0.0
        %634 = vmatprep.subr.mxu0 0.0
        %635 = vmatpush1.msra.mxu0 0.0
        %636 = vmatprep.subr.mxu0 0.0
        %637 = vmatpush1.msra.mxu0 0.0
        %638 = vmatprep.subr.mxu0 0.0
        %639 = vmatpush1.msra.mxu0 0.0
        %640 = vmatprep.subr.mxu0 0.0
        %641 = vmatpush1.msra.mxu0 0.0
        %642 = vmatprep.subr.mxu0 0.0
        %643 = vmatpush1.msra.mxu0 0.0
        %644 = vmatprep.subr.mxu0 0.0
        %645 = vmatpush1.msra.mxu0 0.0
        %646 = vmatprep.subr.mxu0 0.0
        %647 = vmatpush1.msra.mxu0 0.0
        %648 = vmatprep.subr.mxu0 0.0
        %649 = vmatpush1.msra.mxu0 0.0
        %650 = vmatprep.mubr.f32.mxu0 0.0
        %651 = vmatmul.mubr.f32.gmra.mrb[0].mxu0 %v581
        %v652 = vpop.f32.mrb[0].mxu0
        %v653 = vadd.f32 %v563, %v652
        %v654 = vpop.f32.mrb[0].mxu0
        %655 = vmatprep.mubr.f32.mxu0 0.0
        %656 = vmatmul.mubr.f32.gmra.mrb[0].mxu0 %v584
        %v657 = vpop.f32.mrb[0].mxu0
        %v658 = vadd.f32 %v568, %v657
        %v659 = vpop.f32.mrb[0].mxu0
        %660 = vdwg.mxu0
        %v661 = vadd.f32 %v653, %v577
        %v662 = vadd.f32 %v658, %v578
        %v663 = vpack.c.bf16 %v662, %v661
        %v665 = vunpack.c.l.b16 %v663
        %v666 = vunpack.c.h.b16 %v663
        %v667 = vpack.c.b16 %v665, %v665
        %v668 = vpack.c.b16 %v666, %v666
        %vm671 = vcmask 519168
        %672 = vst.msk [vmem:[%s367] sm:$0xf] %vm671, %v667
        %673 = vst.msk [vmem:[%s367 + $0x4] sm:$0xf] %vm671, %v668
        %s674 = scalar_lea.vmem %s320, 8 [#allocation2]
        %v675 = vld [vmem:[%s674] sm:$0xff]
        %v676 = vlaneseq
        %v677 = vshrl.u32 %v676, 7
        %v678 = vsub.s32 1, %v677
        %v679 = vrot.slane %v385, %v678
        %v680 = vmul.f32 %v404, %v679
        %v681 = vmul.f32 %v409, %v679
        %v682 = vmul.f32 %v414, %v679
        %v683 = vmul.f32 %v419, %v679
        %v684 = vadd.f32 %v680, %v432
        %v685 = vadd.f32 %v681, %v437
        %v686 = vadd.f32 %v682, %v442
        %v687 = vadd.f32 %v683, %v447
        %v688 = vmax.f32 %v684, 0.0
        %v689 = vmax.f32 %v685, 0.0
        %v690 = vmax.f32 %v686, 0.0
        %v691 = vmax.f32 %v687, 0.0
        %692 = vxpose.xlu0.b32.start [1/16] %v688, 128
        %693 = vxpose.xlu0.b32.cont [2/16] %v689, 128
        %694 = vxpose.xlu0.b32.cont [3/16] %v690, 128
        %695 = vxpose.xlu0.b32.cont [4/16] %v691, 128
        %696 = vxpose.xlu0.b32.cont [5/16] 0.0, 128
        %697 = vxpose.xlu0.b32.cont [6/16] 0.0, 128
        %698 = vxpose.xlu0.b32.cont [7/16] 0.0, 128
        %699 = vxpose.xlu0.b32.cont [8/16] 0.0, 128
        %700 = vxpose.xlu0.b32.cont [9/16] 0.0, 128
        %701 = vxpose.xlu0.b32.cont [10/16] 0.0, 128
        %702 = vxpose.xlu0.b32.cont [11/16] 0.0, 128
        %703 = vxpose.xlu0.b32.cont [12/16] 0.0, 128
        %704 = vxpose.xlu0.b32.cont [13/16] 0.0, 128
        %705 = vxpose.xlu0.b32.cont [14/16] 0.0, 128
        %706 = vxpose.xlu0.b32.cont [15/16] 0.0, 128
        %707 = vxpose.xlu0.b32.end [16/16] 0.0, 128
        %v708 = vpop.trf.xlu0
        %v709 = vpop.trf.xlu0
        %v710 = vpop.trf.xlu0
        %v711 = vpop.trf.xlu0
        %v712 = vpop.trf.xlu0
        %v713 = vpop.trf.xlu0
        %v714 = vpop.trf.xlu0
        %v715 = vpop.trf.xlu0
        %v716 = vpop.trf.xlu0
        %v717 = vpop.trf.xlu0
        %v718 = vpop.trf.xlu0
        %v719 = vpop.trf.xlu0
        %v720 = vpop.trf.xlu0
        %v721 = vpop.trf.xlu0
        %v722 = vpop.trf.xlu0
        %v723 = vpop.trf.xlu0
        %v725 = vsel %vm489, %v708, 0
        %v728 = vsel %vm489, %v709, 0
        %730 = vmatprep.subr.mxu0 0.0
        %731 = vmatpush1.msra.mxu0 %v394
        %732 = vmatprep.subr.mxu0 0.0
        %733 = vmatpush1.msra.mxu0 %v395
        %734 = vmatprep.subr.mxu0 0.0
        %735 = vmatpush1.msra.mxu0 %v396
        %736 = vmatprep.subr.mxu0 0.0
        %737 = vmatpush1.msra.mxu0 %v397
        %738 = vmatprep.subr.mxu0 0.0
        %739 = vmatpush1.msra.mxu0 0.0
        %740 = vmatprep.subr.mxu0 0.0
        %741 = vmatpush1.msra.mxu0 0.0
        %742 = vmatprep.subr.mxu0 0.0
        %743 = vmatpush1.msra.mxu0 0.0
        %744 = vmatprep.subr.mxu0 0.0
        %745 = vmatpush1.msra.mxu0 0.0
        %746 = vmatprep.subr.mxu0 0.0
        %747 = vmatpush1.msra.mxu0 0.0
        %748 = vmatprep.subr.mxu0 0.0
        %749 = vmatpush1.msra.mxu0 0.0
        %750 = vmatprep.subr.mxu0 0.0
        %751 = vmatpush1.msra.mxu0 0.0
        %752 = vmatprep.subr.mxu0 0.0
        %753 = vmatpush1.msra.mxu0 0.0
        %754 = vmatprep.subr.mxu0 0.0
        %755 = vmatpush1.msra.mxu0 0.0
        %756 = vmatprep.subr.mxu0 0.0
        %757 = vmatpush1.msra.mxu0 0.0
        %758 = vmatprep.subr.mxu0 0.0
        %759 = vmatpush1.msra.mxu0 0.0
        %760 = vmatprep.subr.mxu0 0.0
        %761 = vmatpush1.msra.mxu0 0.0
        %762 = vmatprep.subr.mxu0 0.0
        %763 = vmatpush1.msra.mxu0 0.0
        %764 = vmatprep.subr.mxu0 0.0
        %765 = vmatpush1.msra.mxu0 0.0
        %766 = vmatprep.subr.mxu0 0.0
        %767 = vmatpush1.msra.mxu0 0.0
        %768 = vmatprep.subr.mxu0 0.0
        %769 = vmatpush1.msra.mxu0 0.0
        %770 = vmatprep.subr.mxu0 0.0
        %771 = vmatpush1.msra.mxu0 0.0
        %772 = vmatprep.subr.mxu0 0.0
        %773 = vmatpush1.msra.mxu0 0.0
        %774 = vmatprep.subr.mxu0 0.0
        %775 = vmatpush1.msra.mxu0 0.0
        %776 = vmatprep.subr.mxu0 0.0
        %777 = vmatpush1.msra.mxu0 0.0
        %778 = vmatprep.subr.mxu0 0.0
        %779 = vmatpush1.msra.mxu0 0.0
        %780 = vmatprep.subr.mxu0 0.0
        %781 = vmatpush1.msra.mxu0 0.0
        %782 = vmatprep.subr.mxu0 0.0
        %783 = vmatpush1.msra.mxu0 0.0
        %784 = vmatprep.subr.mxu0 0.0
        %785 = vmatpush1.msra.mxu0 0.0
        %786 = vmatprep.subr.mxu0 0.0
        %787 = vmatpush1.msra.mxu0 0.0
        %788 = vmatprep.subr.mxu0 0.0
        %789 = vmatpush1.msra.mxu0 0.0
        %790 = vmatprep.subr.mxu0 0.0
        %791 = vmatpush1.msra.mxu0 0.0
        %792 = vmatprep.subr.mxu0 0.0
        %793 = vmatpush1.msra.mxu0 0.0
        %794 = vmatprep.mubr.f32.mxu0 0.0
        %795 = vmatmul.mubr.f32.gmra.mrb[0].mxu0 %v725
        %v796 = vpop.f32.mrb[0].mxu0
        %v797 = vadd.f32 0.0, %v796
        %v798 = vpop.f32.mrb[0].mxu0
        %799 = vmatprep.mubr.f32.mxu0 0.0
        %800 = vmatmul.mubr.f32.gmra.mrb[0].mxu0 %v728
        %v801 = vpop.f32.mrb[0].mxu0
        %v802 = vadd.f32 0.0, %v801
        %v803 = vpop.f32.mrb[0].mxu0
        %804 = vdwg.mxu0
        %s805 = sadd.s32 %s571, 3
        %s806 = smul.addr %s805, 4
        %s807 = scalar_lea.vmem %s6, %s806
        %v808 = vld [vmem:[%s807] sm:$0xf]
        %v809 = vld [vmem:[%s807 + $0x4] sm:$0xf]
        %v810 = vunpack.c.l.bf16 %v808
        %v811 = vunpack.c.l.bf16 %v809
        %812 = vmatprep.subr.mxu0 0.0
        %813 = vmatpush1.msra.mxu0 %v675
        %814 = vmatprep.subr.mxu0 0.0
        %815 = vmatpush1.msra.mxu0 0.0
        %816 = vmatprep.subr.mxu0 0.0
        %817 = vmatpush1.msra.mxu0 0.0
        %818 = vmatprep.subr.mxu0 0.0
        %819 = vmatpush1.msra.mxu0 0.0
        %820 = vmatprep.subr.mxu0 0.0
        %821 = vmatpush1.msra.mxu0 0.0
        %822 = vmatprep.subr.mxu0 0.0
        %823 = vmatpush1.msra.mxu0 0.0
        %824 = vmatprep.subr.mxu0 0.0
        %825 = vmatpush1.msra.mxu0 0.0
        %826 = vmatprep.subr.mxu0 0.0
        %827 = vmatpush1.msra.mxu0 0.0
        %828 = vmatprep.subr.mxu0 0.0
        %829 = vmatpush1.msra.mxu0 0.0
        %830 = vmatprep.subr.mxu0 0.0
        %831 = vmatpush1.msra.mxu0 0.0
        %832 = vmatprep.subr.mxu0 0.0
        %833 = vmatpush1.msra.mxu0 0.0
        %834 = vmatprep.subr.mxu0 0.0
        %835 = vmatpush1.msra.mxu0 0.0
        %836 = vmatprep.subr.mxu0 0.0
        %837 = vmatpush1.msra.mxu0 0.0
        %838 = vmatprep.subr.mxu0 0.0
        %839 = vmatpush1.msra.mxu0 0.0
        %840 = vmatprep.subr.mxu0 0.0
        %841 = vmatpush1.msra.mxu0 0.0
        %842 = vmatprep.subr.mxu0 0.0
        %843 = vmatpush1.msra.mxu0 0.0
        %844 = vmatprep.subr.mxu0 0.0
        %845 = vmatpush1.msra.mxu0 0.0
        %846 = vmatprep.subr.mxu0 0.0
        %847 = vmatpush1.msra.mxu0 0.0
        %848 = vmatprep.subr.mxu0 0.0
        %849 = vmatpush1.msra.mxu0 0.0
        %850 = vmatprep.subr.mxu0 0.0
        %851 = vmatpush1.msra.mxu0 0.0
        %852 = vmatprep.subr.mxu0 0.0
        %853 = vmatpush1.msra.mxu0 0.0
        %854 = vmatprep.subr.mxu0 0.0
        %855 = vmatpush1.msra.mxu0 0.0
        %856 = vmatprep.subr.mxu0 0.0
        %857 = vmatpush1.msra.mxu0 0.0
        %858 = vmatprep.subr.mxu0 0.0
        %859 = vmatpush1.msra.mxu0 0.0
        %860 = vmatprep.subr.mxu0 0.0
        %861 = vmatpush1.msra.mxu0 0.0
        %862 = vmatprep.subr.mxu0 0.0
        %863 = vmatpush1.msra.mxu0 0.0
        %864 = vmatprep.subr.mxu0 0.0
        %865 = vmatpush1.msra.mxu0 0.0
        %866 = vmatprep.subr.mxu0 0.0
        %867 = vmatpush1.msra.mxu0 0.0
        %868 = vmatprep.subr.mxu0 0.0
        %869 = vmatpush1.msra.mxu0 0.0
        %870 = vmatprep.subr.mxu0 0.0
        %871 = vmatpush1.msra.mxu0 0.0
        %872 = vmatprep.subr.mxu0 0.0
        %873 = vmatpush1.msra.mxu0 0.0
        %874 = vmatprep.subr.mxu0 0.0
        %875 = vmatpush1.msra.mxu0 0.0
        %876 = vmatprep.mubr.f32.mxu0 0.0
        %877 = vmatmul.mubr.f32.gmra.mrb[0].mxu0 %v581
        %v878 = vpop.f32.mrb[0].mxu0
        %v879 = vadd.f32 %v797, %v878
        %v880 = vpop.f32.mrb[0].mxu0
        %881 = vmatprep.mubr.f32.mxu0 0.0
        %882 = vmatmul.mubr.f32.gmra.mrb[0].mxu0 %v584
        %v883 = vpop.f32.mrb[0].mxu0
        %v884 = vadd.f32 %v802, %v883
        %v885 = vpop.f32.mrb[0].mxu0
        %886 = vdwg.mxu0
        %v887 = vadd.f32 %v879, %v810
        %v888 = vadd.f32 %v884, %v811
        %v889 = vpack.c.bf16 %v888, %v887
        %v891 = vunpack.c.l.b16 %v889
        %v892 = vunpack.c.h.b16 %v889
        %v893 = vpack.c.b16 %v891, %v891
        %v894 = vpack.c.b16 %v892, %v892
        %s897 = scalar_lea.vmem %s367, 8 [#allocation7]
        %898 = vst.msk [vmem:[%s897] sm:$0xf] %vm671, %v893
        %899 = vst.msk [vmem:[%s897 + $0x4] sm:$0xf] %vm671, %v894
        %s900 = scalar_lea.vmem %s320, 16 [#allocation2]
        %v901 = vld [vmem:[%s900] sm:$0xff]
        %v902 = vlaneseq
        %v903 = vshrl.u32 %v902, 7
        %v904 = vsub.s32 2, %v903
        %v905 = vrot.slane %v385, %v904
        %v906 = vmul.f32 %v404, %v905
        %v907 = vmul.f32 %v409, %v905
        %v908 = vmul.f32 %v414, %v905
        %v909 = vmul.f32 %v419, %v905
        %v910 = vadd.f32 %v906, %v432
        %v911 = vadd.f32 %v907, %v437
        %v912 = vadd.f32 %v908, %v442
        %v913 = vadd.f32 %v909, %v447
        %v914 = vmax.f32 %v910, 0.0
        %v915 = vmax.f32 %v911, 0.0
        %v916 = vmax.f32 %v912, 0.0
        %v917 = vmax.f32 %v913, 0.0
        %918 = vxpose.xlu0.b32.start [1/16] %v914, 128
        %919 = vxpose.xlu0.b32.cont [2/16] %v915, 128
        %920 = vxpose.xlu0.b32.cont [3/16] %v916, 128
        %921 = vxpose.xlu0.b32.cont [4/16] %v917, 128
        %922 = vxpose.xlu0.b32.cont [5/16] 0.0, 128
        %923 = vxpose.xlu0.b32.cont [6/16] 0.0, 128
        %924 = vxpose.xlu0.b32.cont [7/16] 0.0, 128
        %925 = vxpose.xlu0.b32.cont [8/16] 0.0, 128
        %926 = vxpose.xlu0.b32.cont [9/16] 0.0, 128
        %927 = vxpose.xlu0.b32.cont [10/16] 0.0, 128
        %928 = vxpose.xlu0.b32.cont [11/16] 0.0, 128
        %929 = vxpose.xlu0.b32.cont [12/16] 0.0, 128
        %930 = vxpose.xlu0.b32.cont [13/16] 0.0, 128
        %931 = vxpose.xlu0.b32.cont [14/16] 0.0, 128
        %932 = vxpose.xlu0.b32.cont [15/16] 0.0, 128
        %933 = vxpose.xlu0.b32.end [16/16] 0.0, 128
        %v934 = vpop.trf.xlu0
        %v935 = vpop.trf.xlu0
        %v936 = vpop.trf.xlu0
        %v937 = vpop.trf.xlu0
        %v938 = vpop.trf.xlu0
        %v939 = vpop.trf.xlu0
        %v940 = vpop.trf.xlu0
        %v941 = vpop.trf.xlu0
        %v942 = vpop.trf.xlu0
        %v943 = vpop.trf.xlu0
        %v944 = vpop.trf.xlu0
        %v945 = vpop.trf.xlu0
        %v946 = vpop.trf.xlu0
        %v947 = vpop.trf.xlu0
        %v948 = vpop.trf.xlu0
        %v949 = vpop.trf.xlu0
        %v951 = vsel %vm489, %v934, 0
        %v954 = vsel %vm489, %v935, 0
        %956 = vmatprep.subr.mxu0 0.0
        %957 = vmatpush1.msra.mxu0 %v394
        %958 = vmatprep.subr.mxu0 0.0
        %959 = vmatpush1.msra.mxu0 %v395
        %960 = vmatprep.subr.mxu0 0.0
        %961 = vmatpush1.msra.mxu0 %v396
        %962 = vmatprep.subr.mxu0 0.0
        %963 = vmatpush1.msra.mxu0 %v397
        %964 = vmatprep.subr.mxu0 0.0
        %965 = vmatpush1.msra.mxu0 0.0
        %966 = vmatprep.subr.mxu0 0.0
        %967 = vmatpush1.msra.mxu0 0.0
        %968 = vmatprep.subr.mxu0 0.0
        %969 = vmatpush1.msra.mxu0 0.0
        %970 = vmatprep.subr.mxu0 0.0
        %971 = vmatpush1.msra.mxu0 0.0
        %972 = vmatprep.subr.mxu0 0.0
        %973 = vmatpush1.msra.mxu0 0.0
        %974 = vmatprep.subr.mxu0 0.0
        %975 = vmatpush1.msra.mxu0 0.0
        %976 = vmatprep.subr.mxu0 0.0
        %977 = vmatpush1.msra.mxu0 0.0
        %978 = vmatprep.subr.mxu0 0.0
        %979 = vmatpush1.msra.mxu0 0.0
        %980 = vmatprep.subr.mxu0 0.0
        %981 = vmatpush1.msra.mxu0 0.0
        %982 = vmatprep.subr.mxu0 0.0
        %983 = vmatpush1.msra.mxu0 0.0
        %984 = vmatprep.subr.mxu0 0.0
        %985 = vmatpush1.msra.mxu0 0.0
        %986 = vmatprep.subr.mxu0 0.0
        %987 = vmatpush1.msra.mxu0 0.0
        %988 = vmatprep.subr.mxu0 0.0
        %989 = vmatpush1.msra.mxu0 0.0
        %990 = vmatprep.subr.mxu0 0.0
        %991 = vmatpush1.msra.mxu0 0.0
        %992 = vmatprep.subr.mxu0 0.0
        %993 = vmatpush1.msra.mxu0 0.0
        %994 = vmatprep.subr.mxu0 0.0
        %995 = vmatpush1.msra.mxu0 0.0
        %996 = vmatprep.subr.mxu0 0.0
        %997 = vmatpush1.msra.mxu0 0.0
        %998 = vmatprep.subr.mxu0 0.0
        %999 = vmatpush1.msra.mxu0 0.0
        %1000 = vmatprep.subr.mxu0 0.0
        %1001 = vmatpush1.msra.mxu0 0.0
        %1002 = vmatprep.subr.mxu0 0.0
        %1003 = vmatpush1.msra.mxu0 0.0
        %1004 = vmatprep.subr.mxu0 0.0
        %1005 = vmatpush1.msra.mxu0 0.0
        %1006 = vmatprep.subr.mxu0 0.0
        %1007 = vmatpush1.msra.mxu0 0.0
        %1008 = vmatprep.subr.mxu0 0.0
        %1009 = vmatpush1.msra.mxu0 0.0
        %1010 = vmatprep.subr.mxu0 0.0
        %1011 = vmatpush1.msra.mxu0 0.0
        %1012 = vmatprep.subr.mxu0 0.0
        %1013 = vmatpush1.msra.mxu0 0.0
        %1014 = vmatprep.subr.mxu0 0.0
        %1015 = vmatpush1.msra.mxu0 0.0
        %1016 = vmatprep.subr.mxu0 0.0
        %1017 = vmatpush1.msra.mxu0 0.0
        %1018 = vmatprep.subr.mxu0 0.0
        %1019 = vmatpush1.msra.mxu0 0.0
        %1020 = vmatprep.mubr.f32.mxu0 0.0
        %1021 = vmatmul.mubr.f32.gmra.mrb[0].mxu0 %v951
        %v1022 = vpop.f32.mrb[0].mxu0
        %v1023 = vadd.f32 0.0, %v1022
        %v1024 = vpop.f32.mrb[0].mxu0
        %1025 = vmatprep.mubr.f32.mxu0 0.0
        %1026 = vmatmul.mubr.f32.gmra.mrb[0].mxu0 %v954
        %v1027 = vpop.f32.mrb[0].mxu0
        %v1028 = vadd.f32 0.0, %v1027
        %v1029 = vpop.f32.mrb[0].mxu0
        %1030 = vdwg.mxu0
        %s1031 = sadd.s32 %s571, 6
        %s1032 = smul.addr %s1031, 4
        %s1033 = scalar_lea.vmem %s6, %s1032
        %v1034 = vld [vmem:[%s1033] sm:$0xf]
        %v1035 = vld [vmem:[%s1033 + $0x4] sm:$0xf]
        %v1036 = vunpack.c.l.bf16 %v1034
        %v1037 = vunpack.c.l.bf16 %v1035
        %1038 = vmatprep.subr.mxu0 0.0
        %1039 = vmatpush1.msra.mxu0 %v901
        %1040 = vmatprep.subr.mxu0 0.0
        %1041 = vmatpush1.msra.mxu0 0.0
        %1042 = vmatprep.subr.mxu0 0.0
        %1043 = vmatpush1.msra.mxu0 0.0
        %1044 = vmatprep.subr.mxu0 0.0
        %1045 = vmatpush1.msra.mxu0 0.0
        %1046 = vmatprep.subr.mxu0 0.0
        %1047 = vmatpush1.msra.mxu0 0.0
        %1048 = vmatprep.subr.mxu0 0.0
        %1049 = vmatpush1.msra.mxu0 0.0
        %1050 = vmatprep.subr.mxu0 0.0
        %1051 = vmatpush1.msra.mxu0 0.0
        %1052 = vmatprep.subr.mxu0 0.0
        %1053 = vmatpush1.msra.mxu0 0.0
        %1054 = vmatprep.subr.mxu0 0.0
        %1055 = vmatpush1.msra.mxu0 0.0
        %1056 = vmatprep.subr.mxu0 0.0
        %1057 = vmatpush1.msra.mxu0 0.0
        %1058 = vmatprep.subr.mxu0 0.0
        %1059 = vmatpush1.msra.mxu0 0.0
        %1060 = vmatprep.subr.mxu0 0.0
        %1061 = vmatpush1.msra.mxu0 0.0
        %1062 = vmatprep.subr.mxu0 0.0
        %1063 = vmatpush1.msra.mxu0 0.0
        %1064 = vmatprep.subr.mxu0 0.0
        %1065 = vmatpush1.msra.mxu0 0.0
        %1066 = vmatprep.subr.mxu0 0.0
        %1067 = vmatpush1.msra.mxu0 0.0
        %1068 = vmatprep.subr.mxu0 0.0
        %1069 = vmatpush1.msra.mxu0 0.0
        %1070 = vmatprep.subr.mxu0 0.0
        %1071 = vmatpush1.msra.mxu0 0.0
        %1072 = vmatprep.subr.mxu0 0.0
        %1073 = vmatpush1.msra.mxu0 0.0
        %1074 = vmatprep.subr.mxu0 0.0
        %1075 = vmatpush1.msra.mxu0 0.0
        %1076 = vmatprep.subr.mxu0 0.0
        %1077 = vmatpush1.msra.mxu0 0.0
        %1078 = vmatprep.subr.mxu0 0.0
        %1079 = vmatpush1.msra.mxu0 0.0
        %1080 = vmatprep.subr.mxu0 0.0
        %1081 = vmatpush1.msra.mxu0 0.0
        %1082 = vmatprep.subr.mxu0 0.0
        %1083 = vmatpush1.msra.mxu0 0.0
        %1084 = vmatprep.subr.mxu0 0.0
        %1085 = vmatpush1.msra.mxu0 0.0
        %1086 = vmatprep.subr.mxu0 0.0
        %1087 = vmatpush1.msra.mxu0 0.0
        %1088 = vmatprep.subr.mxu0 0.0
        %1089 = vmatpush1.msra.mxu0 0.0
        %1090 = vmatprep.subr.mxu0 0.0
        %1091 = vmatpush1.msra.mxu0 0.0
        %1092 = vmatprep.subr.mxu0 0.0
        %1093 = vmatpush1.msra.mxu0 0.0
        %1094 = vmatprep.subr.mxu0 0.0
        %1095 = vmatpush1.msra.mxu0 0.0
        %1096 = vmatprep.subr.mxu0 0.0
        %1097 = vmatpush1.msra.mxu0 0.0
        %1098 = vmatprep.subr.mxu0 0.0
        %1099 = vmatpush1.msra.mxu0 0.0
        %1100 = vmatprep.subr.mxu0 0.0
        %1101 = vmatpush1.msra.mxu0 0.0
        %1102 = vmatprep.mubr.f32.mxu0 0.0
        %1103 = vmatmul.mubr.f32.gmra.mrb[0].mxu0 %v581
        %v1104 = vpop.f32.mrb[0].mxu0
        %v1105 = vadd.f32 %v1023, %v1104
        %v1106 = vpop.f32.mrb[0].mxu0
        %1107 = vmatprep.mubr.f32.mxu0 0.0
        %1108 = vmatmul.mubr.f32.gmra.mrb[0].mxu0 %v584
        %v1109 = vpop.f32.mrb[0].mxu0
        %v1110 = vadd.f32 %v1028, %v1109
        %v1111 = vpop.f32.mrb[0].mxu0
        %1112 = vdwg.mxu0
        %v1113 = vadd.f32 %v1105, %v1036
        %v1114 = vadd.f32 %v1110, %v1037
        %v1115 = vpack.c.bf16 %v1114, %v1113
        %v1117 = vunpack.c.l.b16 %v1115
        %v1118 = vunpack.c.h.b16 %v1115
        %v1119 = vpack.c.b16 %v1117, %v1117
        %v1120 = vpack.c.b16 %v1118, %v1118
        %s1123 = scalar_lea.vmem %s367, 16 [#allocation7]
        %1124 = vst.msk [vmem:[%s1123] sm:$0xf] %vm671, %v1119
        %1125 = vst.msk [vmem:[%s1123 + $0x4] sm:$0xf] %vm671, %v1120
        %s1126 = scalar_lea.vmem %s320, 24 [#allocation2]
        %v1127 = vld [vmem:[%s1126] sm:$0xff]
        %v1128 = vlaneseq
        %v1129 = vshrl.u32 %v1128, 7
        %v1130 = vsub.s32 3, %v1129
        %v1131 = vrot.slane %v385, %v1130
        %v1132 = vmul.f32 %v404, %v1131
        %v1133 = vmul.f32 %v409, %v1131
        %v1134 = vmul.f32 %v414, %v1131
        %v1135 = vmul.f32 %v419, %v1131
        %v1136 = vadd.f32 %v1132, %v432
        %v1137 = vadd.f32 %v1133, %v437
        %v1138 = vadd.f32 %v1134, %v442
        %v1139 = vadd.f32 %v1135, %v447
        %v1140 = vmax.f32 %v1136, 0.0
        %v1141 = vmax.f32 %v1137, 0.0
        %v1142 = vmax.f32 %v1138, 0.0
        %v1143 = vmax.f32 %v1139, 0.0
        %1144 = vxpose.xlu0.b32.start [1/16] %v1140, 128
        %1145 = vxpose.xlu0.b32.cont [2/16] %v1141, 128
        %1146 = vxpose.xlu0.b32.cont [3/16] %v1142, 128
        %1147 = vxpose.xlu0.b32.cont [4/16] %v1143, 128
        %1148 = vxpose.xlu0.b32.cont [5/16] 0.0, 128
        %1149 = vxpose.xlu0.b32.cont [6/16] 0.0, 128
        %1150 = vxpose.xlu0.b32.cont [7/16] 0.0, 128
        %1151 = vxpose.xlu0.b32.cont [8/16] 0.0, 128
        %1152 = vxpose.xlu0.b32.cont [9/16] 0.0, 128
        %1153 = vxpose.xlu0.b32.cont [10/16] 0.0, 128
        %1154 = vxpose.xlu0.b32.cont [11/16] 0.0, 128
        %1155 = vxpose.xlu0.b32.cont [12/16] 0.0, 128
        %1156 = vxpose.xlu0.b32.cont [13/16] 0.0, 128
        %1157 = vxpose.xlu0.b32.cont [14/16] 0.0, 128
        %1158 = vxpose.xlu0.b32.cont [15/16] 0.0, 128
        %1159 = vxpose.xlu0.b32.end [16/16] 0.0, 128
        %v1160 = vpop.trf.xlu0
        %v1161 = vpop.trf.xlu0
        %v1162 = vpop.trf.xlu0
        %v1163 = vpop.trf.xlu0
        %v1164 = vpop.trf.xlu0
        %v1165 = vpop.trf.xlu0
        %v1166 = vpop.trf.xlu0
        %v1167 = vpop.trf.xlu0
        %v1168 = vpop.trf.xlu0
        %v1169 = vpop.trf.xlu0
        %v1170 = vpop.trf.xlu0
        %v1171 = vpop.trf.xlu0
        %v1172 = vpop.trf.xlu0
        %v1173 = vpop.trf.xlu0
        %v1174 = vpop.trf.xlu0
        %v1175 = vpop.trf.xlu0
        %v1177 = vsel %vm489, %v1160, 0
        %v1180 = vsel %vm489, %v1161, 0
        %1182 = vmatprep.subr.mxu0 0.0
        %1183 = vmatpush1.msra.mxu0 %v394
        %1184 = vmatprep.subr.mxu0 0.0
        %1185 = vmatpush1.msra.mxu0 %v395
        %1186 = vmatprep.subr.mxu0 0.0
        %1187 = vmatpush1.msra.mxu0 %v396
        %1188 = vmatprep.subr.mxu0 0.0
        %1189 = vmatpush1.msra.mxu0 %v397
        %1190 = vmatprep.subr.mxu0 0.0
        %1191 = vmatpush1.msra.mxu0 0.0
        %1192 = vmatprep.subr.mxu0 0.0
        %1193 = vmatpush1.msra.mxu0 0.0
        %1194 = vmatprep.subr.mxu0 0.0
        %1195 = vmatpush1.msra.mxu0 0.0
        %1196 = vmatprep.subr.mxu0 0.0
        %1197 = vmatpush1.msra.mxu0 0.0
        %1198 = vmatprep.subr.mxu0 0.0
        %1199 = vmatpush1.msra.mxu0 0.0
        %1200 = vmatprep.subr.mxu0 0.0
        %1201 = vmatpush1.msra.mxu0 0.0
        %1202 = vmatprep.subr.mxu0 0.0
        %1203 = vmatpush1.msra.mxu0 0.0
        %1204 = vmatprep.subr.mxu0 0.0
        %1205 = vmatpush1.msra.mxu0 0.0
        %1206 = vmatprep.subr.mxu0 0.0
        %1207 = vmatpush1.msra.mxu0 0.0
        %1208 = vmatprep.subr.mxu0 0.0
        %1209 = vmatpush1.msra.mxu0 0.0
        %1210 = vmatprep.subr.mxu0 0.0
        %1211 = vmatpush1.msra.mxu0 0.0
        %1212 = vmatprep.subr.mxu0 0.0
        %1213 = vmatpush1.msra.mxu0 0.0
        %1214 = vmatprep.subr.mxu0 0.0
        %1215 = vmatpush1.msra.mxu0 0.0
        %1216 = vmatprep.subr.mxu0 0.0
        %1217 = vmatpush1.msra.mxu0 0.0
        %1218 = vmatprep.subr.mxu0 0.0
        %1219 = vmatpush1.msra.mxu0 0.0
        %1220 = vmatprep.subr.mxu0 0.0
        %1221 = vmatpush1.msra.mxu0 0.0
        %1222 = vmatprep.subr.mxu0 0.0
        %1223 = vmatpush1.msra.mxu0 0.0
        %1224 = vmatprep.subr.mxu0 0.0
        %1225 = vmatpush1.msra.mxu0 0.0
        %1226 = vmatprep.subr.mxu0 0.0
        %1227 = vmatpush1.msra.mxu0 0.0
        %1228 = vmatprep.subr.mxu0 0.0
        %1229 = vmatpush1.msra.mxu0 0.0
        %1230 = vmatprep.subr.mxu0 0.0
        %1231 = vmatpush1.msra.mxu0 0.0
        %1232 = vmatprep.subr.mxu0 0.0
        %1233 = vmatpush1.msra.mxu0 0.0
        %1234 = vmatprep.subr.mxu0 0.0
        %1235 = vmatpush1.msra.mxu0 0.0
        %1236 = vmatprep.subr.mxu0 0.0
        %1237 = vmatpush1.msra.mxu0 0.0
        %1238 = vmatprep.subr.mxu0 0.0
        %1239 = vmatpush1.msra.mxu0 0.0
        %1240 = vmatprep.subr.mxu0 0.0
        %1241 = vmatpush1.msra.mxu0 0.0
        %1242 = vmatprep.subr.mxu0 0.0
        %1243 = vmatpush1.msra.mxu0 0.0
        %1244 = vmatprep.subr.mxu0 0.0
        %1245 = vmatpush1.msra.mxu0 0.0
        %1246 = vmatprep.mubr.f32.mxu0 0.0
        %1247 = vmatmul.mubr.f32.gmra.mrb[0].mxu0 %v1177
        %v1248 = vpop.f32.mrb[0].mxu0
        %v1249 = vadd.f32 0.0, %v1248
        %v1250 = vpop.f32.mrb[0].mxu0
        %1251 = vmatprep.mubr.f32.mxu0 0.0
        %1252 = vmatmul.mubr.f32.gmra.mrb[0].mxu0 %v1180
        %v1253 = vpop.f32.mrb[0].mxu0
        %v1254 = vadd.f32 0.0, %v1253
        %v1255 = vpop.f32.mrb[0].mxu0
        %1256 = vdwg.mxu0
        %s1257 = sadd.s32 %s571, 9
        %s1258 = smul.addr %s1257, 4
        %s1259 = scalar_lea.vmem %s6, %s1258
        %v1260 = vld [vmem:[%s1259] sm:$0xf]
        %v1261 = vld [vmem:[%s1259 + $0x4] sm:$0xf]
        %v1262 = vunpack.c.l.bf16 %v1260
        %v1263 = vunpack.c.l.bf16 %v1261
        %1264 = vmatprep.subr.mxu0 0.0
        %1265 = vmatpush1.msra.mxu0 %v1127
        %1266 = vmatprep.subr.mxu0 0.0
        %1267 = vmatpush1.msra.mxu0 0.0
        %1268 = vmatprep.subr.mxu0 0.0
        %1269 = vmatpush1.msra.mxu0 0.0
        %1270 = vmatprep.subr.mxu0 0.0
        %1271 = vmatpush1.msra.mxu0 0.0
        %1272 = vmatprep.subr.mxu0 0.0
        %1273 = vmatpush1.msra.mxu0 0.0
        %1274 = vmatprep.subr.mxu0 0.0
        %1275 = vmatpush1.msra.mxu0 0.0
        %1276 = vmatprep.subr.mxu0 0.0
        %1277 = vmatpush1.msra.mxu0 0.0
        %1278 = vmatprep.subr.mxu0 0.0
        %1279 = vmatpush1.msra.mxu0 0.0
        %1280 = vmatprep.subr.mxu0 0.0
        %1281 = vmatpush1.msra.mxu0 0.0
        %1282 = vmatprep.subr.mxu0 0.0
        %1283 = vmatpush1.msra.mxu0 0.0
        %1284 = vmatprep.subr.mxu0 0.0
        %1285 = vmatpush1.msra.mxu0 0.0
        %1286 = vmatprep.subr.mxu0 0.0
        %1287 = vmatpush1.msra.mxu0 0.0
        %1288 = vmatprep.subr.mxu0 0.0
        %1289 = vmatpush1.msra.mxu0 0.0
        %1290 = vmatprep.subr.mxu0 0.0
        %1291 = vmatpush1.msra.mxu0 0.0
        %1292 = vmatprep.subr.mxu0 0.0
        %1293 = vmatpush1.msra.mxu0 0.0
        %1294 = vmatprep.subr.mxu0 0.0
        %1295 = vmatpush1.msra.mxu0 0.0
        %1296 = vmatprep.subr.mxu0 0.0
        %1297 = vmatpush1.msra.mxu0 0.0
        %1298 = vmatprep.subr.mxu0 0.0
        %1299 = vmatpush1.msra.mxu0 0.0
        %1300 = vmatprep.subr.mxu0 0.0
        %1301 = vmatpush1.msra.mxu0 0.0
        %1302 = vmatprep.subr.mxu0 0.0
        %1303 = vmatpush1.msra.mxu0 0.0
        %1304 = vmatprep.subr.mxu0 0.0
        %1305 = vmatpush1.msra.mxu0 0.0
        %1306 = vmatprep.subr.mxu0 0.0
        %1307 = vmatpush1.msra.mxu0 0.0
        %1308 = vmatprep.subr.mxu0 0.0
        %1309 = vmatpush1.msra.mxu0 0.0
        %1310 = vmatprep.subr.mxu0 0.0
        %1311 = vmatpush1.msra.mxu0 0.0
        %1312 = vmatprep.subr.mxu0 0.0
        %1313 = vmatpush1.msra.mxu0 0.0
        %1314 = vmatprep.subr.mxu0 0.0
        %1315 = vmatpush1.msra.mxu0 0.0
        %1316 = vmatprep.subr.mxu0 0.0
        %1317 = vmatpush1.msra.mxu0 0.0
        %1318 = vmatprep.subr.mxu0 0.0
        %1319 = vmatpush1.msra.mxu0 0.0
        %1320 = vmatprep.subr.mxu0 0.0
        %1321 = vmatpush1.msra.mxu0 0.0
        %1322 = vmatprep.subr.mxu0 0.0
        %1323 = vmatpush1.msra.mxu0 0.0
        %1324 = vmatprep.subr.mxu0 0.0
        %1325 = vmatpush1.msra.mxu0 0.0
        %1326 = vmatprep.subr.mxu0 0.0
        %1327 = vmatpush1.msra.mxu0 0.0
        %1328 = vmatprep.mubr.f32.mxu0 0.0
        %1329 = vmatmul.mubr.f32.gmra.mrb[0].mxu0 %v581
        %v1330 = vpop.f32.mrb[0].mxu0
        %v1331 = vadd.f32 %v1249, %v1330
        %v1332 = vpop.f32.mrb[0].mxu0
        %1333 = vmatprep.mubr.f32.mxu0 0.0
        %1334 = vmatmul.mubr.f32.gmra.mrb[0].mxu0 %v584
        %v1335 = vpop.f32.mrb[0].mxu0
        %v1336 = vadd.f32 %v1254, %v1335
        %v1337 = vpop.f32.mrb[0].mxu0
        %1338 = vdwg.mxu0
        %v1339 = vadd.f32 %v1331, %v1262
        %v1340 = vadd.f32 %v1336, %v1263
        %v1341 = vpack.c.bf16 %v1340, %v1339
        %v1343 = vunpack.c.l.b16 %v1341
        %v1344 = vunpack.c.h.b16 %v1341
        %v1345 = vpack.c.b16 %v1343, %v1343
        %v1346 = vpack.c.b16 %v1344, %v1344
        %s1349 = scalar_lea.vmem %s367, 24 [#allocation7]
        %1350 = vst.msk [vmem:[%s1349] sm:$0xf] %vm671, %v1345
        %1351 = vst.msk [vmem:[%s1349 + $0x4] sm:$0xf] %vm671, %v1346
        %s1352 = scalar_lea.vmem %s320, 32 [#allocation2]
        %v1353 = vld [vmem:[%s1352] sm:$0xff]
        %v1354 = vlaneseq
        %v1355 = vshrl.u32 %v1354, 7
        %v1356 = vsub.s32 4, %v1355
        %v1357 = vrot.slane %v385, %v1356
        %v1358 = vmul.f32 %v404, %v1357
        %v1359 = vmul.f32 %v409, %v1357
        %v1360 = vmul.f32 %v414, %v1357
        %v1361 = vmul.f32 %v419, %v1357
        %v1362 = vadd.f32 %v1358, %v432
        %v1363 = vadd.f32 %v1359, %v437
        %v1364 = vadd.f32 %v1360, %v442
        %v1365 = vadd.f32 %v1361, %v447
        %v1366 = vmax.f32 %v1362, 0.0
        %v1367 = vmax.f32 %v1363, 0.0
        %v1368 = vmax.f32 %v1364, 0.0
        %v1369 = vmax.f32 %v1365, 0.0
        %1370 = vxpose.xlu0.b32.start [1/16] %v1366, 128
        %1371 = vxpose.xlu0.b32.cont [2/16] %v1367, 128
        %1372 = vxpose.xlu0.b32.cont [3/16] %v1368, 128
        %1373 = vxpose.xlu0.b32.cont [4/16] %v1369, 128
        %1374 = vxpose.xlu0.b32.cont [5/16] 0.0, 128
        %1375 = vxpose.xlu0.b32.cont [6/16] 0.0, 128
        %1376 = vxpose.xlu0.b32.cont [7/16] 0.0, 128
        %1377 = vxpose.xlu0.b32.cont [8/16] 0.0, 128
        %1378 = vxpose.xlu0.b32.cont [9/16] 0.0, 128
        %1379 = vxpose.xlu0.b32.cont [10/16] 0.0, 128
        %1380 = vxpose.xlu0.b32.cont [11/16] 0.0, 128
        %1381 = vxpose.xlu0.b32.cont [12/16] 0.0, 128
        %1382 = vxpose.xlu0.b32.cont [13/16] 0.0, 128
        %1383 = vxpose.xlu0.b32.cont [14/16] 0.0, 128
        %1384 = vxpose.xlu0.b32.cont [15/16] 0.0, 128
        %1385 = vxpose.xlu0.b32.end [16/16] 0.0, 128
        %v1386 = vpop.trf.xlu0
        %v1387 = vpop.trf.xlu0
        %v1388 = vpop.trf.xlu0
        %v1389 = vpop.trf.xlu0
        %v1390 = vpop.trf.xlu0
        %v1391 = vpop.trf.xlu0
        %v1392 = vpop.trf.xlu0
        %v1393 = vpop.trf.xlu0
        %v1394 = vpop.trf.xlu0
        %v1395 = vpop.trf.xlu0
        %v1396 = vpop.trf.xlu0
        %v1397 = vpop.trf.xlu0
        %v1398 = vpop.trf.xlu0
        %v1399 = vpop.trf.xlu0
        %v1400 = vpop.trf.xlu0
        %v1401 = vpop.trf.xlu0
        %v1403 = vsel %vm489, %v1386, 0
        %v1406 = vsel %vm489, %v1387, 0
        %1408 = vmatprep.subr.mxu0 0.0
        %1409 = vmatpush1.msra.mxu0 %v394
        %1410 = vmatprep.subr.mxu0 0.0
        %1411 = vmatpush1.msra.mxu0 %v395
        %1412 = vmatprep.subr.mxu0 0.0
        %1413 = vmatpush1.msra.mxu0 %v396
        %1414 = vmatprep.subr.mxu0 0.0
        %1415 = vmatpush1.msra.mxu0 %v397
        %1416 = vmatprep.subr.mxu0 0.0
        %1417 = vmatpush1.msra.mxu0 0.0
        %1418 = vmatprep.subr.mxu0 0.0
        %1419 = vmatpush1.msra.mxu0 0.0
        %1420 = vmatprep.subr.mxu0 0.0
        %1421 = vmatpush1.msra.mxu0 0.0
        %1422 = vmatprep.subr.mxu0 0.0
        %1423 = vmatpush1.msra.mxu0 0.0
        %1424 = vmatprep.subr.mxu0 0.0
        %1425 = vmatpush1.msra.mxu0 0.0
        %1426 = vmatprep.subr.mxu0 0.0
        %1427 = vmatpush1.msra.mxu0 0.0
        %1428 = vmatprep.subr.mxu0 0.0
        %1429 = vmatpush1.msra.mxu0 0.0
        %1430 = vmatprep.subr.mxu0 0.0
        %1431 = vmatpush1.msra.mxu0 0.0
        %1432 = vmatprep.subr.mxu0 0.0
        %1433 = vmatpush1.msra.mxu0 0.0
        %1434 = vmatprep.subr.mxu0 0.0
        %1435 = vmatpush1.msra.mxu0 0.0
        %1436 = vmatprep.subr.mxu0 0.0
        %1437 = vmatpush1.msra.mxu0 0.0
        %1438 = vmatprep.subr.mxu0 0.0
        %1439 = vmatpush1.msra.mxu0 0.0
        %1440 = vmatprep.subr.mxu0 0.0
        %1441 = vmatpush1.msra.mxu0 0.0
        %1442 = vmatprep.subr.mxu0 0.0
        %1443 = vmatpush1.msra.mxu0 0.0
        %1444 = vmatprep.subr.mxu0 0.0
        %1445 = vmatpush1.msra.mxu0 0.0
        %1446 = vmatprep.subr.mxu0 0.0
        %1447 = vmatpush1.msra.mxu0 0.0
        %1448 = vmatprep.subr.mxu0 0.0
        %1449 = vmatpush1.msra.mxu0 0.0
        %1450 = vmatprep.subr.mxu0 0.0
        %1451 = vmatpush1.msra.mxu0 0.0
        %1452 = vmatprep.subr.mxu0 0.0
        %1453 = vmatpush1.msra.mxu0 0.0
        %1454 = vmatprep.subr.mxu0 0.0
        %1455 = vmatpush1.msra.mxu0 0.0
        %1456 = vmatprep.subr.mxu0 0.0
        %1457 = vmatpush1.msra.mxu0 0.0
        %1458 = vmatprep.subr.mxu0 0.0
        %1459 = vmatpush1.msra.mxu0 0.0
        %1460 = vmatprep.subr.mxu0 0.0
        %1461 = vmatpush1.msra.mxu0 0.0
        %1462 = vmatprep.subr.mxu0 0.0
        %1463 = vmatpush1.msra.mxu0 0.0
        %1464 = vmatprep.subr.mxu0 0.0
        %1465 = vmatpush1.msra.mxu0 0.0
        %1466 = vmatprep.subr.mxu0 0.0
        %1467 = vmatpush1.msra.mxu0 0.0
        %1468 = vmatprep.subr.mxu0 0.0
        %1469 = vmatpush1.msra.mxu0 0.0
        %1470 = vmatprep.subr.mxu0 0.0
        %1471 = vmatpush1.msra.mxu0 0.0
        %1472 = vmatprep.mubr.f32.mxu0 0.0
        %1473 = vmatmul.mubr.f32.gmra.mrb[0].mxu0 %v1403
        %v1474 = vpop.f32.mrb[0].mxu0
        %v1475 = vadd.f32 0.0, %v1474
        %v1476 = vpop.f32.mrb[0].mxu0
        %1477 = vmatprep.mubr.f32.mxu0 0.0
        %1478 = vmatmul.mubr.f32.gmra.mrb[0].mxu0 %v1406
        %v1479 = vpop.f32.mrb[0].mxu0
        %v1480 = vadd.f32 0.0, %v1479
        %v1481 = vpop.f32.mrb[0].mxu0
        %1482 = vdwg.mxu0
        %s1483 = sadd.s32 %s571, 12
        %s1484 = smul.addr %s1483, 4
        %s1485 = scalar_lea.vmem %s6, %s1484
        %v1486 = vld [vmem:[%s1485] sm:$0xf]
        %v1487 = vld [vmem:[%s1485 + $0x4] sm:$0xf]
        %v1488 = vunpack.c.l.bf16 %v1486
        %v1489 = vunpack.c.l.bf16 %v1487
        %1490 = vmatprep.subr.mxu0 0.0
        %1491 = vmatpush1.msra.mxu0 %v1353
        %1492 = vmatprep.subr.mxu0 0.0
        %1493 = vmatpush1.msra.mxu0 0.0
        %1494 = vmatprep.subr.mxu0 0.0
        %1495 = vmatpush1.msra.mxu0 0.0
        %1496 = vmatprep.subr.mxu0 0.0
        %1497 = vmatpush1.msra.mxu0 0.0
        %1498 = vmatprep.subr.mxu0 0.0
        %1499 = vmatpush1.msra.mxu0 0.0
        %1500 = vmatprep.subr.mxu0 0.0
        %1501 = vmatpush1.msra.mxu0 0.0
        %1502 = vmatprep.subr.mxu0 0.0
        %1503 = vmatpush1.msra.mxu0 0.0
        %1504 = vmatprep.subr.mxu0 0.0
        %1505 = vmatpush1.msra.mxu0 0.0
        %1506 = vmatprep.subr.mxu0 0.0
        %1507 = vmatpush1.msra.mxu0 0.0
        %1508 = vmatprep.subr.mxu0 0.0
        %1509 = vmatpush1.msra.mxu0 0.0
        %1510 = vmatprep.subr.mxu0 0.0
        %1511 = vmatpush1.msra.mxu0 0.0
        %1512 = vmatprep.subr.mxu0 0.0
        %1513 = vmatpush1.msra.mxu0 0.0
        %1514 = vmatprep.subr.mxu0 0.0
        %1515 = vmatpush1.msra.mxu0 0.0
        %1516 = vmatprep.subr.mxu0 0.0
        %1517 = vmatpush1.msra.mxu0 0.0
        %1518 = vmatprep.subr.mxu0 0.0
        %1519 = vmatpush1.msra.mxu0 0.0
        %1520 = vmatprep.subr.mxu0 0.0
        %1521 = vmatpush1.msra.mxu0 0.0
        %1522 = vmatprep.subr.mxu0 0.0
        %1523 = vmatpush1.msra.mxu0 0.0
        %1524 = vmatprep.subr.mxu0 0.0
        %1525 = vmatpush1.msra.mxu0 0.0
        %1526 = vmatprep.subr.mxu0 0.0
        %1527 = vmatpush1.msra.mxu0 0.0
        %1528 = vmatprep.subr.mxu0 0.0
        %1529 = vmatpush1.msra.mxu0 0.0
        %1530 = vmatprep.subr.mxu0 0.0
        %1531 = vmatpush1.msra.mxu0 0.0
        %1532 = vmatprep.subr.mxu0 0.0
        %1533 = vmatpush1.msra.mxu0 0.0
        %1534 = vmatprep.subr.mxu0 0.0
        %1535 = vmatpush1.msra.mxu0 0.0
        %1536 = vmatprep.subr.mxu0 0.0
        %1537 = vmatpush1.msra.mxu0 0.0
        %1538 = vmatprep.subr.mxu0 0.0
        %1539 = vmatpush1.msra.mxu0 0.0
        %1540 = vmatprep.subr.mxu0 0.0
        %1541 = vmatpush1.msra.mxu0 0.0
        %1542 = vmatprep.subr.mxu0 0.0
        %1543 = vmatpush1.msra.mxu0 0.0
        %1544 = vmatprep.subr.mxu0 0.0
        %1545 = vmatpush1.msra.mxu0 0.0
        %1546 = vmatprep.subr.mxu0 0.0
        %1547 = vmatpush1.msra.mxu0 0.0
        %1548 = vmatprep.subr.mxu0 0.0
        %1549 = vmatpush1.msra.mxu0 0.0
        %1550 = vmatprep.subr.mxu0 0.0
        %1551 = vmatpush1.msra.mxu0 0.0
        %1552 = vmatprep.subr.mxu0 0.0
        %1553 = vmatpush1.msra.mxu0 0.0
        %1554 = vmatprep.mubr.f32.mxu0 0.0
        %1555 = vmatmul.mubr.f32.gmra.mrb[0].mxu0 %v581
        %v1556 = vpop.f32.mrb[0].mxu0
        %v1557 = vadd.f32 %v1475, %v1556
        %v1558 = vpop.f32.mrb[0].mxu0
        %1559 = vmatprep.mubr.f32.mxu0 0.0
        %1560 = vmatmul.mubr.f32.gmra.mrb[0].mxu0 %v584
        %v1561 = vpop.f32.mrb[0].mxu0
        %v1562 = vadd.f32 %v1480, %v1561
        %v1563 = vpop.f32.mrb[0].mxu0
        %1564 = vdwg.mxu0
        %v1565 = vadd.f32 %v1557, %v1488
        %v1566 = vadd.f32 %v1562, %v1489
        %v1567 = vpack.c.bf16 %v1566, %v1565
        %v1569 = vunpack.c.l.b16 %v1567
        %v1570 = vunpack.c.h.b16 %v1567
        %v1571 = vpack.c.b16 %v1569, %v1569
        %v1572 = vpack.c.b16 %v1570, %v1570
        %s1575 = scalar_lea.vmem %s367, 32 [#allocation7]
        %1576 = vst.msk [vmem:[%s1575] sm:$0xf] %vm671, %v1571
        %1577 = vst.msk [vmem:[%s1575 + $0x4] sm:$0xf] %vm671, %v1572
        %s1578 = scalar_lea.vmem %s320, 40 [#allocation2]
        %v1579 = vld [vmem:[%s1578] sm:$0xff]
        %v1580 = vlaneseq
        %v1581 = vshrl.u32 %v1580, 7
        %v1582 = vsub.s32 5, %v1581
        %v1583 = vrot.slane %v385, %v1582
        %v1584 = vmul.f32 %v404, %v1583
        %v1585 = vmul.f32 %v409, %v1583
        %v1586 = vmul.f32 %v414, %v1583
        %v1587 = vmul.f32 %v419, %v1583
        %v1588 = vadd.f32 %v1584, %v432
        %v1589 = vadd.f32 %v1585, %v437
        %v1590 = vadd.f32 %v1586, %v442
        %v1591 = vadd.f32 %v1587, %v447
        %v1592 = vmax.f32 %v1588, 0.0
        %v1593 = vmax.f32 %v1589, 0.0
        %v1594 = vmax.f32 %v1590, 0.0
        %v1595 = vmax.f32 %v1591, 0.0
        %1596 = vxpose.xlu0.b32.start [1/16] %v1592, 128
        %1597 = vxpose.xlu0.b32.cont [2/16] %v1593, 128
        %1598 = vxpose.xlu0.b32.cont [3/16] %v1594, 128
        %1599 = vxpose.xlu0.b32.cont [4/16] %v1595, 128
        %1600 = vxpose.xlu0.b32.cont [5/16] 0.0, 128
        %1601 = vxpose.xlu0.b32.cont [6/16] 0.0, 128
        %1602 = vxpose.xlu0.b32.cont [7/16] 0.0, 128
        %1603 = vxpose.xlu0.b32.cont [8/16] 0.0, 128
        %1604 = vxpose.xlu0.b32.cont [9/16] 0.0, 128
        %1605 = vxpose.xlu0.b32.cont [10/16] 0.0, 128
        %1606 = vxpose.xlu0.b32.cont [11/16] 0.0, 128
        %1607 = vxpose.xlu0.b32.cont [12/16] 0.0, 128
        %1608 = vxpose.xlu0.b32.cont [13/16] 0.0, 128
        %1609 = vxpose.xlu0.b32.cont [14/16] 0.0, 128
        %1610 = vxpose.xlu0.b32.cont [15/16] 0.0, 128
        %1611 = vxpose.xlu0.b32.end [16/16] 0.0, 128
        %v1612 = vpop.trf.xlu0
        %v1613 = vpop.trf.xlu0
        %v1614 = vpop.trf.xlu0
        %v1615 = vpop.trf.xlu0
        %v1616 = vpop.trf.xlu0
        %v1617 = vpop.trf.xlu0
        %v1618 = vpop.trf.xlu0
        %v1619 = vpop.trf.xlu0
        %v1620 = vpop.trf.xlu0
        %v1621 = vpop.trf.xlu0
        %v1622 = vpop.trf.xlu0
        %v1623 = vpop.trf.xlu0
        %v1624 = vpop.trf.xlu0
        %v1625 = vpop.trf.xlu0
        %v1626 = vpop.trf.xlu0
        %v1627 = vpop.trf.xlu0
        %v1629 = vsel %vm489, %v1612, 0
        %v1632 = vsel %vm489, %v1613, 0
        %1634 = vmatprep.subr.mxu0 0.0
        %1635 = vmatpush1.msra.mxu0 %v394
        %1636 = vmatprep.subr.mxu0 0.0
        %1637 = vmatpush1.msra.mxu0 %v395
        %1638 = vmatprep.subr.mxu0 0.0
        %1639 = vmatpush1.msra.mxu0 %v396
        %1640 = vmatprep.subr.mxu0 0.0
        %1641 = vmatpush1.msra.mxu0 %v397
        %1642 = vmatprep.subr.mxu0 0.0
        %1643 = vmatpush1.msra.mxu0 0.0
        %1644 = vmatprep.subr.mxu0 0.0
        %1645 = vmatpush1.msra.mxu0 0.0
        %1646 = vmatprep.subr.mxu0 0.0
        %1647 = vmatpush1.msra.mxu0 0.0
        %1648 = vmatprep.subr.mxu0 0.0
        %1649 = vmatpush1.msra.mxu0 0.0
        %1650 = vmatprep.subr.mxu0 0.0
        %1651 = vmatpush1.msra.mxu0 0.0
        %1652 = vmatprep.subr.mxu0 0.0
        %1653 = vmatpush1.msra.mxu0 0.0
        %1654 = vmatprep.subr.mxu0 0.0
        %1655 = vmatpush1.msra.mxu0 0.0
        %1656 = vmatprep.subr.mxu0 0.0
        %1657 = vmatpush1.msra.mxu0 0.0
        %1658 = vmatprep.subr.mxu0 0.0
        %1659 = vmatpush1.msra.mxu0 0.0
        %1660 = vmatprep.subr.mxu0 0.0
        %1661 = vmatpush1.msra.mxu0 0.0
        %1662 = vmatprep.subr.mxu0 0.0
        %1663 = vmatpush1.msra.mxu0 0.0
        %1664 = vmatprep.subr.mxu0 0.0
        %1665 = vmatpush1.msra.mxu0 0.0
        %1666 = vmatprep.subr.mxu0 0.0
        %1667 = vmatpush1.msra.mxu0 0.0
        %1668 = vmatprep.subr.mxu0 0.0
        %1669 = vmatpush1.msra.mxu0 0.0
        %1670 = vmatprep.subr.mxu0 0.0
        %1671 = vmatpush1.msra.mxu0 0.0
        %1672 = vmatprep.subr.mxu0 0.0
        %1673 = vmatpush1.msra.mxu0 0.0
        %1674 = vmatprep.subr.mxu0 0.0
        %1675 = vmatpush1.msra.mxu0 0.0
        %1676 = vmatprep.subr.mxu0 0.0
        %1677 = vmatpush1.msra.mxu0 0.0
        %1678 = vmatprep.subr.mxu0 0.0
        %1679 = vmatpush1.msra.mxu0 0.0
        %1680 = vmatprep.subr.mxu0 0.0
        %1681 = vmatpush1.msra.mxu0 0.0
        %1682 = vmatprep.subr.mxu0 0.0
        %1683 = vmatpush1.msra.mxu0 0.0
        %1684 = vmatprep.subr.mxu0 0.0
        %1685 = vmatpush1.msra.mxu0 0.0
        %1686 = vmatprep.subr.mxu0 0.0
        %1687 = vmatpush1.msra.mxu0 0.0
        %1688 = vmatprep.subr.mxu0 0.0
        %1689 = vmatpush1.msra.mxu0 0.0
        %1690 = vmatprep.subr.mxu0 0.0
        %1691 = vmatpush1.msra.mxu0 0.0
        %1692 = vmatprep.subr.mxu0 0.0
        %1693 = vmatpush1.msra.mxu0 0.0
        %1694 = vmatprep.subr.mxu0 0.0
        %1695 = vmatpush1.msra.mxu0 0.0
        %1696 = vmatprep.subr.mxu0 0.0
        %1697 = vmatpush1.msra.mxu0 0.0
        %1698 = vmatprep.mubr.f32.mxu0 0.0
        %1699 = vmatmul.mubr.f32.gmra.mrb[0].mxu0 %v1629
        %v1700 = vpop.f32.mrb[0].mxu0
        %v1701 = vadd.f32 0.0, %v1700
        %v1702 = vpop.f32.mrb[0].mxu0
        %1703 = vmatprep.mubr.f32.mxu0 0.0
        %1704 = vmatmul.mubr.f32.gmra.mrb[0].mxu0 %v1632
        %v1705 = vpop.f32.mrb[0].mxu0
        %v1706 = vadd.f32 0.0, %v1705
        %v1707 = vpop.f32.mrb[0].mxu0
        %1708 = vdwg.mxu0
        %s1709 = sadd.s32 %s571, 15
        %s1710 = smul.addr %s1709, 4
        %s1711 = scalar_lea.vmem %s6, %s1710
        %v1712 = vld [vmem:[%s1711] sm:$0xf]
        %v1713 = vld [vmem:[%s1711 + $0x4] sm:$0xf]
        %v1714 = vunpack.c.l.bf16 %v1712
        %v1715 = vunpack.c.l.bf16 %v1713
        %1716 = vmatprep.subr.mxu0 0.0
        %1717 = vmatpush1.msra.mxu0 %v1579
        %1718 = vmatprep.subr.mxu0 0.0
        %1719 = vmatpush1.msra.mxu0 0.0
        %1720 = vmatprep.subr.mxu0 0.0
        %1721 = vmatpush1.msra.mxu0 0.0
        %1722 = vmatprep.subr.mxu0 0.0
        %1723 = vmatpush1.msra.mxu0 0.0
        %1724 = vmatprep.subr.mxu0 0.0
        %1725 = vmatpush1.msra.mxu0 0.0
        %1726 = vmatprep.subr.mxu0 0.0
        %1727 = vmatpush1.msra.mxu0 0.0
        %1728 = vmatprep.subr.mxu0 0.0
        %1729 = vmatpush1.msra.mxu0 0.0
        %1730 = vmatprep.subr.mxu0 0.0
        %1731 = vmatpush1.msra.mxu0 0.0
        %1732 = vmatprep.subr.mxu0 0.0
        %1733 = vmatpush1.msra.mxu0 0.0
        %1734 = vmatprep.subr.mxu0 0.0
        %1735 = vmatpush1.msra.mxu0 0.0
        %1736 = vmatprep.subr.mxu0 0.0
        %1737 = vmatpush1.msra.mxu0 0.0
        %1738 = vmatprep.subr.mxu0 0.0
        %1739 = vmatpush1.msra.mxu0 0.0
        %1740 = vmatprep.subr.mxu0 0.0
        %1741 = vmatpush1.msra.mxu0 0.0
        %1742 = vmatprep.subr.mxu0 0.0
        %1743 = vmatpush1.msra.mxu0 0.0
        %1744 = vmatprep.subr.mxu0 0.0
        %1745 = vmatpush1.msra.mxu0 0.0
        %1746 = vmatprep.subr.mxu0 0.0
        %1747 = vmatpush1.msra.mxu0 0.0
        %1748 = vmatprep.subr.mxu0 0.0
        %1749 = vmatpush1.msra.mxu0 0.0
        %1750 = vmatprep.subr.mxu0 0.0
        %1751 = vmatpush1.msra.mxu0 0.0
        %1752 = vmatprep.subr.mxu0 0.0
        %1753 = vmatpush1.msra.mxu0 0.0
        %1754 = vmatprep.subr.mxu0 0.0
        %1755 = vmatpush1.msra.mxu0 0.0
        %1756 = vmatprep.subr.mxu0 0.0
        %1757 = vmatpush1.msra.mxu0 0.0
        %1758 = vmatprep.subr.mxu0 0.0
        %1759 = vmatpush1.msra.mxu0 0.0
        %1760 = vmatprep.subr.mxu0 0.0
        %1761 = vmatpush1.msra.mxu0 0.0
        %1762 = vmatprep.subr.mxu0 0.0
        %1763 = vmatpush1.msra.mxu0 0.0
        %1764 = vmatprep.subr.mxu0 0.0
        %1765 = vmatpush1.msra.mxu0 0.0
        %1766 = vmatprep.subr.mxu0 0.0
        %1767 = vmatpush1.msra.mxu0 0.0
        %1768 = vmatprep.subr.mxu0 0.0
        %1769 = vmatpush1.msra.mxu0 0.0
        %1770 = vmatprep.subr.mxu0 0.0
        %1771 = vmatpush1.msra.mxu0 0.0
        %1772 = vmatprep.subr.mxu0 0.0
        %1773 = vmatpush1.msra.mxu0 0.0
        %1774 = vmatprep.subr.mxu0 0.0
        %1775 = vmatpush1.msra.mxu0 0.0
        %1776 = vmatprep.subr.mxu0 0.0
        %1777 = vmatpush1.msra.mxu0 0.0
        %1778 = vmatprep.subr.mxu0 0.0
        %1779 = vmatpush1.msra.mxu0 0.0
        %1780 = vmatprep.mubr.f32.mxu0 0.0
        %1781 = vmatmul.mubr.f32.gmra.mrb[0].mxu0 %v581
        %v1782 = vpop.f32.mrb[0].mxu0
        %v1783 = vadd.f32 %v1701, %v1782
        %v1784 = vpop.f32.mrb[0].mxu0
        %1785 = vmatprep.mubr.f32.mxu0 0.0
        %1786 = vmatmul.mubr.f32.gmra.mrb[0].mxu0 %v584
        %v1787 = vpop.f32.mrb[0].mxu0
        %v1788 = vadd.f32 %v1706, %v1787
        %v1789 = vpop.f32.mrb[0].mxu0
        %1790 = vdwg.mxu0
        %v1791 = vadd.f32 %v1783, %v1714
        %v1792 = vadd.f32 %v1788, %v1715
        %v1793 = vpack.c.bf16 %v1792, %v1791
        %v1795 = vunpack.c.l.b16 %v1793
        %v1796 = vunpack.c.h.b16 %v1793
        %v1797 = vpack.c.b16 %v1795, %v1795
        %v1798 = vpack.c.b16 %v1796, %v1796
        %s1801 = scalar_lea.vmem %s367, 40 [#allocation7]
        %1802 = vst.msk [vmem:[%s1801] sm:$0xf] %vm671, %v1797
        %1803 = vst.msk [vmem:[%s1801 + $0x4] sm:$0xf] %vm671, %v1798
        %s1804 = scalar_lea.vmem %s320, 48 [#allocation2]
        %v1805 = vld [vmem:[%s1804] sm:$0xff]
        %v1806 = vlaneseq
        %v1807 = vshrl.u32 %v1806, 7
        %v1808 = vsub.s32 6, %v1807
        %v1809 = vrot.slane %v385, %v1808
        %v1810 = vmul.f32 %v404, %v1809
        %v1811 = vmul.f32 %v409, %v1809
        %v1812 = vmul.f32 %v414, %v1809
        %v1813 = vmul.f32 %v419, %v1809
        %v1814 = vadd.f32 %v1810, %v432
        %v1815 = vadd.f32 %v1811, %v437
        %v1816 = vadd.f32 %v1812, %v442
        %v1817 = vadd.f32 %v1813, %v447
        %v1818 = vmax.f32 %v1814, 0.0
        %v1819 = vmax.f32 %v1815, 0.0
        %v1820 = vmax.f32 %v1816, 0.0
        %v1821 = vmax.f32 %v1817, 0.0
        %1822 = vxpose.xlu0.b32.start [1/16] %v1818, 128
        %1823 = vxpose.xlu0.b32.cont [2/16] %v1819, 128
        %1824 = vxpose.xlu0.b32.cont [3/16] %v1820, 128
        %1825 = vxpose.xlu0.b32.cont [4/16] %v1821, 128
        %1826 = vxpose.xlu0.b32.cont [5/16] 0.0, 128
        %1827 = vxpose.xlu0.b32.cont [6/16] 0.0, 128
        %1828 = vxpose.xlu0.b32.cont [7/16] 0.0, 128
        %1829 = vxpose.xlu0.b32.cont [8/16] 0.0, 128
        %1830 = vxpose.xlu0.b32.cont [9/16] 0.0, 128
        %1831 = vxpose.xlu0.b32.cont [10/16] 0.0, 128
        %1832 = vxpose.xlu0.b32.cont [11/16] 0.0, 128
        %1833 = vxpose.xlu0.b32.cont [12/16] 0.0, 128
        %1834 = vxpose.xlu0.b32.cont [13/16] 0.0, 128
        %1835 = vxpose.xlu0.b32.cont [14/16] 0.0, 128
        %1836 = vxpose.xlu0.b32.cont [15/16] 0.0, 128
        %1837 = vxpose.xlu0.b32.end [16/16] 0.0, 128
        %v1838 = vpop.trf.xlu0
        %v1839 = vpop.trf.xlu0
        %v1840 = vpop.trf.xlu0
        %v1841 = vpop.trf.xlu0
        %v1842 = vpop.trf.xlu0
        %v1843 = vpop.trf.xlu0
        %v1844 = vpop.trf.xlu0
        %v1845 = vpop.trf.xlu0
        %v1846 = vpop.trf.xlu0
        %v1847 = vpop.trf.xlu0
        %v1848 = vpop.trf.xlu0
        %v1849 = vpop.trf.xlu0
        %v1850 = vpop.trf.xlu0
        %v1851 = vpop.trf.xlu0
        %v1852 = vpop.trf.xlu0
        %v1853 = vpop.trf.xlu0
        %v1855 = vsel %vm489, %v1838, 0
        %v1858 = vsel %vm489, %v1839, 0
        %1860 = vmatprep.subr.mxu0 0.0
        %1861 = vmatpush1.msra.mxu0 %v394
        %1862 = vmatprep.subr.mxu0 0.0
        %1863 = vmatpush1.msra.mxu0 %v395
        %1864 = vmatprep.subr.mxu0 0.0
        %1865 = vmatpush1.msra.mxu0 %v396
        %1866 = vmatprep.subr.mxu0 0.0
        %1867 = vmatpush1.msra.mxu0 %v397
        %1868 = vmatprep.subr.mxu0 0.0
        %1869 = vmatpush1.msra.mxu0 0.0
        %1870 = vmatprep.subr.mxu0 0.0
        %1871 = vmatpush1.msra.mxu0 0.0
        %1872 = vmatprep.subr.mxu0 0.0
        %1873 = vmatpush1.msra.mxu0 0.0
        %1874 = vmatprep.subr.mxu0 0.0
        %1875 = vmatpush1.msra.mxu0 0.0
        %1876 = vmatprep.subr.mxu0 0.0
        %1877 = vmatpush1.msra.mxu0 0.0
        %1878 = vmatprep.subr.mxu0 0.0
        %1879 = vmatpush1.msra.mxu0 0.0
        %1880 = vmatprep.subr.mxu0 0.0
        %1881 = vmatpush1.msra.mxu0 0.0
        %1882 = vmatprep.subr.mxu0 0.0
        %1883 = vmatpush1.msra.mxu0 0.0
        %1884 = vmatprep.subr.mxu0 0.0
        %1885 = vmatpush1.msra.mxu0 0.0
        %1886 = vmatprep.subr.mxu0 0.0
        %1887 = vmatpush1.msra.mxu0 0.0
        %1888 = vmatprep.subr.mxu0 0.0
        %1889 = vmatpush1.msra.mxu0 0.0
        %1890 = vmatprep.subr.mxu0 0.0
        %1891 = vmatpush1.msra.mxu0 0.0
        %1892 = vmatprep.subr.mxu0 0.0
        %1893 = vmatpush1.msra.mxu0 0.0
        %1894 = vmatprep.subr.mxu0 0.0
        %1895 = vmatpush1.msra.mxu0 0.0
        %1896 = vmatprep.subr.mxu0 0.0
        %1897 = vmatpush1.msra.mxu0 0.0
        %1898 = vmatprep.subr.mxu0 0.0
        %1899 = vmatpush1.msra.mxu0 0.0
        %1900 = vmatprep.subr.mxu0 0.0
        %1901 = vmatpush1.msra.mxu0 0.0
        %1902 = vmatprep.subr.mxu0 0.0
        %1903 = vmatpush1.msra.mxu0 0.0
        %1904 = vmatprep.subr.mxu0 0.0
        %1905 = vmatpush1.msra.mxu0 0.0
        %1906 = vmatprep.subr.mxu0 0.0
        %1907 = vmatpush1.msra.mxu0 0.0
        %1908 = vmatprep.subr.mxu0 0.0
        %1909 = vmatpush1.msra.mxu0 0.0
        %1910 = vmatprep.subr.mxu0 0.0
        %1911 = vmatpush1.msra.mxu0 0.0
        %1912 = vmatprep.subr.mxu0 0.0
        %1913 = vmatpush1.msra.mxu0 0.0
        %1914 = vmatprep.subr.mxu0 0.0
        %1915 = vmatpush1.msra.mxu0 0.0
        %1916 = vmatprep.subr.mxu0 0.0
        %1917 = vmatpush1.msra.mxu0 0.0
        %1918 = vmatprep.subr.mxu0 0.0
        %1919 = vmatpush1.msra.mxu0 0.0
        %1920 = vmatprep.subr.mxu0 0.0
        %1921 = vmatpush1.msra.mxu0 0.0
        %1922 = vmatprep.subr.mxu0 0.0
        %1923 = vmatpush1.msra.mxu0 0.0
        %1924 = vmatprep.mubr.f32.mxu0 0.0
        %1925 = vmatmul.mubr.f32.gmra.mrb[0].mxu0 %v1855
        %v1926 = vpop.f32.mrb[0].mxu0
        %v1927 = vadd.f32 0.0, %v1926
        %v1928 = vpop.f32.mrb[0].mxu0
        %1929 = vmatprep.mubr.f32.mxu0 0.0
        %1930 = vmatmul.mubr.f32.gmra.mrb[0].mxu0 %v1858
        %v1931 = vpop.f32.mrb[0].mxu0
        %v1932 = vadd.f32 0.0, %v1931
        %v1933 = vpop.f32.mrb[0].mxu0
        %1934 = vdwg.mxu0
        %s1935 = sadd.s32 %s571, 18
        %s1936 = smul.addr %s1935, 4
        %s1937 = scalar_lea.vmem %s6, %s1936
        %v1938 = vld [vmem:[%s1937] sm:$0xf]
        %v1939 = vld [vmem:[%s1937 + $0x4] sm:$0xf]
        %v1940 = vunpack.c.l.bf16 %v1938
        %v1941 = vunpack.c.l.bf16 %v1939
        %1942 = vmatprep.subr.mxu0 0.0
        %1943 = vmatpush1.msra.mxu0 %v1805
        %1944 = vmatprep.subr.mxu0 0.0
        %1945 = vmatpush1.msra.mxu0 0.0
        %1946 = vmatprep.subr.mxu0 0.0
        %1947 = vmatpush1.msra.mxu0 0.0
        %1948 = vmatprep.subr.mxu0 0.0
        %1949 = vmatpush1.msra.mxu0 0.0
        %1950 = vmatprep.subr.mxu0 0.0
        %1951 = vmatpush1.msra.mxu0 0.0
        %1952 = vmatprep.subr.mxu0 0.0
        %1953 = vmatpush1.msra.mxu0 0.0
        %1954 = vmatprep.subr.mxu0 0.0
        %1955 = vmatpush1.msra.mxu0 0.0
        %1956 = vmatprep.subr.mxu0 0.0
        %1957 = vmatpush1.msra.mxu0 0.0
        %1958 = vmatprep.subr.mxu0 0.0
        %1959 = vmatpush1.msra.mxu0 0.0
        %1960 = vmatprep.subr.mxu0 0.0
        %1961 = vmatpush1.msra.mxu0 0.0
        %1962 = vmatprep.subr.mxu0 0.0
        %1963 = vmatpush1.msra.mxu0 0.0
        %1964 = vmatprep.subr.mxu0 0.0
        %1965 = vmatpush1.msra.mxu0 0.0
        %1966 = vmatprep.subr.mxu0 0.0
        %1967 = vmatpush1.msra.mxu0 0.0
        %1968 = vmatprep.subr.mxu0 0.0
        %1969 = vmatpush1.msra.mxu0 0.0
        %1970 = vmatprep.subr.mxu0 0.0
        %1971 = vmatpush1.msra.mxu0 0.0
        %1972 = vmatprep.subr.mxu0 0.0
        %1973 = vmatpush1.msra.mxu0 0.0
        %1974 = vmatprep.subr.mxu0 0.0
        %1975 = vmatpush1.msra.mxu0 0.0
        %1976 = vmatprep.subr.mxu0 0.0
        %1977 = vmatpush1.msra.mxu0 0.0
        %1978 = vmatprep.subr.mxu0 0.0
        %1979 = vmatpush1.msra.mxu0 0.0
        %1980 = vmatprep.subr.mxu0 0.0
        %1981 = vmatpush1.msra.mxu0 0.0
        %1982 = vmatprep.subr.mxu0 0.0
        %1983 = vmatpush1.msra.mxu0 0.0
        %1984 = vmatprep.subr.mxu0 0.0
        %1985 = vmatpush1.msra.mxu0 0.0
        %1986 = vmatprep.subr.mxu0 0.0
        %1987 = vmatpush1.msra.mxu0 0.0
        %1988 = vmatprep.subr.mxu0 0.0
        %1989 = vmatpush1.msra.mxu0 0.0
        %1990 = vmatprep.subr.mxu0 0.0
        %1991 = vmatpush1.msra.mxu0 0.0
        %1992 = vmatprep.subr.mxu0 0.0
        %1993 = vmatpush1.msra.mxu0 0.0
        %1994 = vmatprep.subr.mxu0 0.0
        %1995 = vmatpush1.msra.mxu0 0.0
        %1996 = vmatprep.subr.mxu0 0.0
        %1997 = vmatpush1.msra.mxu0 0.0
        %1998 = vmatprep.subr.mxu0 0.0
        %1999 = vmatpush1.msra.mxu0 0.0
        %2000 = vmatprep.subr.mxu0 0.0
        %2001 = vmatpush1.msra.mxu0 0.0
        %2002 = vmatprep.subr.mxu0 0.0
        %2003 = vmatpush1.msra.mxu0 0.0
        %2004 = vmatprep.subr.mxu0 0.0
        %2005 = vmatpush1.msra.mxu0 0.0
        %2006 = vmatprep.mubr.f32.mxu0 0.0
        %2007 = vmatmul.mubr.f32.gmra.mrb[0].mxu0 %v581
        %v2008 = vpop.f32.mrb[0].mxu0
        %v2009 = vadd.f32 %v1927, %v2008
        %v2010 = vpop.f32.mrb[0].mxu0
        %2011 = vmatprep.mubr.f32.mxu0 0.0
        %2012 = vmatmul.mubr.f32.gmra.mrb[0].mxu0 %v584
        %v2013 = vpop.f32.mrb[0].mxu0
        %v2014 = vadd.f32 %v1932, %v2013
        %v2015 = vpop.f32.mrb[0].mxu0
        %2016 = vdwg.mxu0
        %v2017 = vadd.f32 %v2009, %v1940
        %v2018 = vadd.f32 %v2014, %v1941
        %v2019 = vpack.c.bf16 %v2018, %v2017
        %v2021 = vunpack.c.l.b16 %v2019
        %v2022 = vunpack.c.h.b16 %v2019
        %v2023 = vpack.c.b16 %v2021, %v2021
        %v2024 = vpack.c.b16 %v2022, %v2022
        %s2027 = scalar_lea.vmem %s367, 48 [#allocation7]
        %2028 = vst.msk [vmem:[%s2027] sm:$0xf] %vm671, %v2023
        %2029 = vst.msk [vmem:[%s2027 + $0x4] sm:$0xf] %vm671, %v2024
        %s2030 = scalar_lea.vmem %s320, 56 [#allocation2]
        %v2031 = vld [vmem:[%s2030] sm:$0xff]
        %v2032 = vlaneseq
        %v2033 = vshrl.u32 %v2032, 7
        %v2034 = vsub.s32 7, %v2033
        %v2035 = vrot.slane %v385, %v2034
        %v2036 = vmul.f32 %v404, %v2035
        %v2037 = vmul.f32 %v409, %v2035
        %v2038 = vmul.f32 %v414, %v2035
        %v2039 = vmul.f32 %v419, %v2035
        %v2040 = vadd.f32 %v2036, %v432
        %v2041 = vadd.f32 %v2037, %v437
        %v2042 = vadd.f32 %v2038, %v442
        %v2043 = vadd.f32 %v2039, %v447
        %v2044 = vmax.f32 %v2040, 0.0
        %v2045 = vmax.f32 %v2041, 0.0
        %v2046 = vmax.f32 %v2042, 0.0
        %v2047 = vmax.f32 %v2043, 0.0
        %2048 = vxpose.xlu0.b32.start [1/16] %v2044, 128
        %2049 = vxpose.xlu0.b32.cont [2/16] %v2045, 128
        %2050 = vxpose.xlu0.b32.cont [3/16] %v2046, 128
        %2051 = vxpose.xlu0.b32.cont [4/16] %v2047, 128
        %2052 = vxpose.xlu0.b32.cont [5/16] 0.0, 128
        %2053 = vxpose.xlu0.b32.cont [6/16] 0.0, 128
        %2054 = vxpose.xlu0.b32.cont [7/16] 0.0, 128
        %2055 = vxpose.xlu0.b32.cont [8/16] 0.0, 128
        %2056 = vxpose.xlu0.b32.cont [9/16] 0.0, 128
        %2057 = vxpose.xlu0.b32.cont [10/16] 0.0, 128
        %2058 = vxpose.xlu0.b32.cont [11/16] 0.0, 128
        %2059 = vxpose.xlu0.b32.cont [12/16] 0.0, 128
        %2060 = vxpose.xlu0.b32.cont [13/16] 0.0, 128
        %2061 = vxpose.xlu0.b32.cont [14/16] 0.0, 128
        %2062 = vxpose.xlu0.b32.cont [15/16] 0.0, 128
        %2063 = vxpose.xlu0.b32.end [16/16] 0.0, 128
        %v2064 = vpop.trf.xlu0
        %v2065 = vpop.trf.xlu0
        %v2066 = vpop.trf.xlu0
        %v2067 = vpop.trf.xlu0
        %v2068 = vpop.trf.xlu0
        %v2069 = vpop.trf.xlu0
        %v2070 = vpop.trf.xlu0
        %v2071 = vpop.trf.xlu0
        %v2072 = vpop.trf.xlu0
        %v2073 = vpop.trf.xlu0
        %v2074 = vpop.trf.xlu0
        %v2075 = vpop.trf.xlu0
        %v2076 = vpop.trf.xlu0
        %v2077 = vpop.trf.xlu0
        %v2078 = vpop.trf.xlu0
        %v2079 = vpop.trf.xlu0
        %v2081 = vsel %vm489, %v2064, 0
        %v2084 = vsel %vm489, %v2065, 0
        %2086 = vmatprep.subr.mxu0 0.0
        %2087 = vmatpush1.msra.mxu0 %v394
        %2088 = vmatprep.subr.mxu0 0.0
        %2089 = vmatpush1.msra.mxu0 %v395
        %2090 = vmatprep.subr.mxu0 0.0
        %2091 = vmatpush1.msra.mxu0 %v396
        %2092 = vmatprep.subr.mxu0 0.0
        %2093 = vmatpush1.msra.mxu0 %v397
        %2094 = vmatprep.subr.mxu0 0.0
        %2095 = vmatpush1.msra.mxu0 0.0
        %2096 = vmatprep.subr.mxu0 0.0
        %2097 = vmatpush1.msra.mxu0 0.0
        %2098 = vmatprep.subr.mxu0 0.0
        %2099 = vmatpush1.msra.mxu0 0.0
        %2100 = vmatprep.subr.mxu0 0.0
        %2101 = vmatpush1.msra.mxu0 0.0
        %2102 = vmatprep.subr.mxu0 0.0
        %2103 = vmatpush1.msra.mxu0 0.0
        %2104 = vmatprep.subr.mxu0 0.0
        %2105 = vmatpush1.msra.mxu0 0.0
        %2106 = vmatprep.subr.mxu0 0.0
        %2107 = vmatpush1.msra.mxu0 0.0
        %2108 = vmatprep.subr.mxu0 0.0
        %2109 = vmatpush1.msra.mxu0 0.0
        %2110 = vmatprep.subr.mxu0 0.0
        %2111 = vmatpush1.msra.mxu0 0.0
        %2112 = vmatprep.subr.mxu0 0.0
        %2113 = vmatpush1.msra.mxu0 0.0
        %2114 = vmatprep.subr.mxu0 0.0
        %2115 = vmatpush1.msra.mxu0 0.0
        %2116 = vmatprep.subr.mxu0 0.0
        %2117 = vmatpush1.msra.mxu0 0.0
        %2118 = vmatprep.subr.mxu0 0.0
        %2119 = vmatpush1.msra.mxu0 0.0
        %2120 = vmatprep.subr.mxu0 0.0
        %2121 = vmatpush1.msra.mxu0 0.0
        %2122 = vmatprep.subr.mxu0 0.0
        %2123 = vmatpush1.msra.mxu0 0.0
        %2124 = vmatprep.subr.mxu0 0.0
        %2125 = vmatpush1.msra.mxu0 0.0
        %2126 = vmatprep.subr.mxu0 0.0
        %2127 = vmatpush1.msra.mxu0 0.0
        %2128 = vmatprep.subr.mxu0 0.0
        %2129 = vmatpush1.msra.mxu0 0.0
        %2130 = vmatprep.subr.mxu0 0.0
        %2131 = vmatpush1.msra.mxu0 0.0
        %2132 = vmatprep.subr.mxu0 0.0
        %2133 = vmatpush1.msra.mxu0 0.0
        %2134 = vmatprep.subr.mxu0 0.0
        %2135 = vmatpush1.msra.mxu0 0.0
        %2136 = vmatprep.subr.mxu0 0.0
        %2137 = vmatpush1.msra.mxu0 0.0
        %2138 = vmatprep.subr.mxu0 0.0
        %2139 = vmatpush1.msra.mxu0 0.0
        %2140 = vmatprep.subr.mxu0 0.0
        %2141 = vmatpush1.msra.mxu0 0.0
        %2142 = vmatprep.subr.mxu0 0.0
        %2143 = vmatpush1.msra.mxu0 0.0
        %2144 = vmatprep.subr.mxu0 0.0
        %2145 = vmatpush1.msra.mxu0 0.0
        %2146 = vmatprep.subr.mxu0 0.0
        %2147 = vmatpush1.msra.mxu0 0.0
        %2148 = vmatprep.subr.mxu0 0.0
        %2149 = vmatpush1.msra.mxu0 0.0
        %2150 = vmatprep.mubr.f32.mxu0 0.0
        %2151 = vmatmul.mubr.f32.gmra.mrb[0].mxu0 %v2081
        %v2152 = vpop.f32.mrb[0].mxu0
        %v2153 = vadd.f32 0.0, %v2152
        %v2154 = vpop.f32.mrb[0].mxu0
        %2155 = vmatprep.mubr.f32.mxu0 0.0
        %2156 = vmatmul.mubr.f32.gmra.mrb[0].mxu0 %v2084
        %v2157 = vpop.f32.mrb[0].mxu0
        %v2158 = vadd.f32 0.0, %v2157
        %v2159 = vpop.f32.mrb[0].mxu0
        %2160 = vdwg.mxu0
        %s2161 = sadd.s32 %s571, 21
        %s2162 = smul.addr %s2161, 4
        %s2163 = scalar_lea.vmem %s6, %s2162
        %v2164 = vld [vmem:[%s2163] sm:$0xf]
        %v2165 = vld [vmem:[%s2163 + $0x4] sm:$0xf]
        %v2166 = vunpack.c.l.bf16 %v2164
        %v2167 = vunpack.c.l.bf16 %v2165
        %2168 = vmatprep.subr.mxu0 0.0
        %2169 = vmatpush1.msra.mxu0 %v2031
        %2170 = vmatprep.subr.mxu0 0.0
        %2171 = vmatpush1.msra.mxu0 0.0
        %2172 = vmatprep.subr.mxu0 0.0
        %2173 = vmatpush1.msra.mxu0 0.0
        %2174 = vmatprep.subr.mxu0 0.0
        %2175 = vmatpush1.msra.mxu0 0.0
        %2176 = vmatprep.subr.mxu0 0.0
        %2177 = vmatpush1.msra.mxu0 0.0
        %2178 = vmatprep.subr.mxu0 0.0
        %2179 = vmatpush1.msra.mxu0 0.0
        %2180 = vmatprep.subr.mxu0 0.0
        %2181 = vmatpush1.msra.mxu0 0.0
        %2182 = vmatprep.subr.mxu0 0.0
        %2183 = vmatpush1.msra.mxu0 0.0
        %2184 = vmatprep.subr.mxu0 0.0
        %2185 = vmatpush1.msra.mxu0 0.0
        %2186 = vmatprep.subr.mxu0 0.0
        %2187 = vmatpush1.msra.mxu0 0.0
        %2188 = vmatprep.subr.mxu0 0.0
        %2189 = vmatpush1.msra.mxu0 0.0
        %2190 = vmatprep.subr.mxu0 0.0
        %2191 = vmatpush1.msra.mxu0 0.0
        %2192 = vmatprep.subr.mxu0 0.0
        %2193 = vmatpush1.msra.mxu0 0.0
        %2194 = vmatprep.subr.mxu0 0.0
        %2195 = vmatpush1.msra.mxu0 0.0
        %2196 = vmatprep.subr.mxu0 0.0
        %2197 = vmatpush1.msra.mxu0 0.0
        %2198 = vmatprep.subr.mxu0 0.0
        %2199 = vmatpush1.msra.mxu0 0.0
        %2200 = vmatprep.subr.mxu0 0.0
        %2201 = vmatpush1.msra.mxu0 0.0
        %2202 = vmatprep.subr.mxu0 0.0
        %2203 = vmatpush1.msra.mxu0 0.0
        %2204 = vmatprep.subr.mxu0 0.0
        %2205 = vmatpush1.msra.mxu0 0.0
        %2206 = vmatprep.subr.mxu0 0.0
        %2207 = vmatpush1.msra.mxu0 0.0
        %2208 = vmatprep.subr.mxu0 0.0
        %2209 = vmatpush1.msra.mxu0 0.0
        %2210 = vmatprep.subr.mxu0 0.0
        %2211 = vmatpush1.msra.mxu0 0.0
        %2212 = vmatprep.subr.mxu0 0.0
        %2213 = vmatpush1.msra.mxu0 0.0
        %2214 = vmatprep.subr.mxu0 0.0
        %2215 = vmatpush1.msra.mxu0 0.0
        %2216 = vmatprep.subr.mxu0 0.0
        %2217 = vmatpush1.msra.mxu0 0.0
        %2218 = vmatprep.subr.mxu0 0.0
        %2219 = vmatpush1.msra.mxu0 0.0
        %2220 = vmatprep.subr.mxu0 0.0
        %2221 = vmatpush1.msra.mxu0 0.0
        %2222 = vmatprep.subr.mxu0 0.0
        %2223 = vmatpush1.msra.mxu0 0.0
        %2224 = vmatprep.subr.mxu0 0.0
        %2225 = vmatpush1.msra.mxu0 0.0
        %2226 = vmatprep.subr.mxu0 0.0
        %2227 = vmatpush1.msra.mxu0 0.0
        %2228 = vmatprep.subr.mxu0 0.0
        %2229 = vmatpush1.msra.mxu0 0.0
        %2230 = vmatprep.subr.mxu0 0.0
        %2231 = vmatpush1.msra.mxu0 0.0
        %2232 = vmatprep.mubr.f32.mxu0 0.0
        %2233 = vmatmul.mubr.f32.gmra.mrb[0].mxu0 %v581
        %v2234 = vpop.f32.mrb[0].mxu0
        %v2235 = vadd.f32 %v2153, %v2234
        %v2236 = vpop.f32.mrb[0].mxu0
        %2237 = vmatprep.mubr.f32.mxu0 0.0
        %2238 = vmatmul.mubr.f32.gmra.mrb[0].mxu0 %v584
        %v2239 = vpop.f32.mrb[0].mxu0
        %v2240 = vadd.f32 %v2158, %v2239
        %v2241 = vpop.f32.mrb[0].mxu0
        %2242 = vdwg.mxu0
        %v2243 = vadd.f32 %v2235, %v2166
        %v2244 = vadd.f32 %v2240, %v2167
        %v2245 = vpack.c.bf16 %v2244, %v2243
        %v2247 = vunpack.c.l.b16 %v2245
        %v2248 = vunpack.c.h.b16 %v2245
        %v2249 = vpack.c.b16 %v2247, %v2247
        %v2250 = vpack.c.b16 %v2248, %v2248
        %s2253 = scalar_lea.vmem %s367, 56 [#allocation7]
        %2254 = vst.msk [vmem:[%s2253] sm:$0xf] %vm671, %v2249
        %2255 = vst.msk [vmem:[%s2253 + $0x4] sm:$0xf] %vm671, %v2250
        %s2256 = sand.u32 %s213, 1
        %s2257 = scalar_lea.sflag [#allocation4], %s2256
        %s2258 = sand.u32 %s213, 1
        %s2259 = smul.addr %s2258, 64
        %s2260 = scalar_lea.vmem [#allocation7], %s2259
        // Predicated region
        $region57: #{tpu_custom_call.1} parent=47 // pred_check
          %p2261 = pneg %p223
        $region58: #{tpu_custom_call.1} parent=47 // pred_check_branch
          %2263 = sbr.rel (%p2261) target = $region60
        $region59: #{tpu_custom_call.1} parent=47 // pred_region
          %s2264 = smul.u32 8, %s30
          %s2266 = ssub.s32 1024, 1024
          %2267 = vsyncadd %s2257, %s2266
          %s2268 = smul.addr %s2264, 2
          %s2269 = smul.addr %s29, 32
          %s2270 = sadd.s32 %s2268, %s2269
          %s2271 = smul.addr %s2270, 64
          %s2272 = scalar_lea.hbm %s7, %s2271
          %s2273 = sshll.u32 %s2260, 4
          %s2274 = int_to_ptr.vmem [resolvable:$true] %s2273
          %2279 = dma.vmem_to_hbm [thread:$0]  %s2274, 1024, %s2272, %s2257, 64, 64, 4
        $region60: #{tpu_custom_call.1} parent=47 // pred_fallthru
          _
      $region48: #{tpu_custom_call.1} parent=5 // pred_fallthru
        _
      %p2280 = scmp.le.s32.totalorder 2, %s20
      // Predicated region
      $region61: #{tpu_custom_call.1} parent=5 // pred_check
        %p2281 = pneg %p2280
      $region62: #{tpu_custom_call.1} parent=5 // pred_check_branch
        %2283 = sbr.rel (%p2281) target = $region64
      $region63: #{tpu_custom_call.1} parent=5 // pred_region
        %s2284 = ssub.s32 %s20, 2
        // Predicated region
        $region65: #{tpu_custom_call.1} parent=63 // pred_check
          %p2285 = pneg %p229
        $region66: #{tpu_custom_call.1} parent=63 // pred_check_branch
          %2287 = sbr.rel (%p2285) target = $region68
        $region67: #{tpu_custom_call.1} parent=63 // pred_region
          %s2288 = sand.u32 %s214, 1
          %s2289 = scalar_lea.sflag [#allocation4], %s2288
          %s2290 = sand.u32 %s214, 1
          %s2291 = smul.addr %s2290, 64
          %s2292 = scalar_lea.vmem [#allocation7], %s2291
          %2293 = dma.done %s2289, 1024
        $region68: #{tpu_custom_call.1} parent=63 // pred_fallthru
          _
      $region64: #{tpu_custom_call.1} parent=5 // pred_fallthru
        _
    $region6: #{tpu_custom_call.1} parent=1 // loop_footer
      %s24 = sadd.s32 1, %s20
    $region7: #{tpu_custom_call.1} parent=1 // loop_footer_branch
      %19 = sbr.rel target = $region3
    $region8: #{tpu_custom_call.1} parent=1 // loop_exit
      _
    %2294 = vsyncpa [#allocation3], 1
    %s2295 = scalar_lea.sflag [#allocation3], 1
    %2296 = vsyncpa %s2295, 1
    %2297 = vsyncpa [#allocation6], 1
    %2298 = vsyncpa [#allocation4], 1
    %s2299 = scalar_lea.sflag [#allocation4], 1
    %2300 = vsyncpa %s2299, 1

// kernel: tpu_custom_call.1
$region0: #{tpu_custom_call.1}
  #allocation0 [shape = 'u32[]', space=smem, size = 0x4, offset = 0x4, fixed_abs, tag = 'smem constant byte address 0x4 - core index']
  #allocation1 [shape = 'u32[144,128]{1,0:T(1,128)}', space=vmem, size = 0x12000, scoped, tag = 'internal scratch']
  %s0 = inlined_call_operand.vmem [shape: f32[2,16,8], index: 0, kind: input, shape index: {}]
  %s1 = inlined_call_operand.hbm [shape: f32[2,16,8,64], index: 1, kind: input, shape index: {}]
  %s2 = inlined_call_operand.vmem [shape: f32[2,16,16], index: 2, kind: input, shape index: {}]
  %s3 = inlined_call_operand.vmem [shape: f32[32,1], index: 3, kind: input, shape index: {}]
  %s4 = inlined_call_operand.vmem [shape: f32[32,1], index: 4, kind: input, shape index: {}]
  %s5 = inlined_call_operand.hbm [shape: f32[32,64], index: 5, kind: input, shape index: {}]
  %s6 = inlined_call_operand.vmem [shape: bf16[8,24,64], index: 6, kind: input, shape index: {}]
  %s7 = inlined_call_operand.hbm [shape: bf16[2,16,16,64], index: 7, kind: output, shape index: {}]
  %s8 = sld [smem:[#allocation0]]
  $region69: #{tpu_custom_call.1} parent=0
    _
  %s10 = ssub.s32 1, %s8
  %s11 = scalar_select 0, %s10, %s8
  $region1: #{tpu_custom_call.1} parent=0
    #allocation2 [shape = 'u8[65536]{0}', space=vmem, size = 0x10000, scoped, tag = 'input window, operand 1']
    #allocation3 [shape = 's32[2]{0}', space=sflag, size = 0x8, scoped, tag = 'scoped memory for tpu_custom_call.1']
    #allocation4 [shape = 's32[2]{0}', space=sflag, size = 0x8, scoped, tag = 'scoped memory for tpu_custom_call.1']
    #allocation5 [shape = 'u8[16384]{0}', space=vmem, size = 0x4000, scoped, tag = 'input window, operand 5, single buffered']
    #allocation6 [shape = 's32[1]{0}', space=sflag, size = 0x4, scoped, tag = 'scoped memory for tpu_custom_call.1']
    #allocation7 [shape = 'u8[65536]{0}', space=vmem, size = 0x10000, scoped, tag = 'output window, operand 0']
    %12 = vsyncpa [#allocation3], 0
    %s13 = scalar_lea.sflag [#allocation3], 1
    %14 = vsyncpa %s13, 0
    %15 = vsyncpa [#allocation6], 0
    %16 = vsyncpa [#allocation4], 0
    %s17 = scalar_lea.sflag [#allocation4], 1
    %18 = vsyncpa %s17, 0
    loop: start=0, step=1, limit=6
    $region2: #{tpu_custom_call.1} parent=1 // loop_pre_header
      _
    $region3: #{tpu_custom_call.1} parent=1 // loop_header
      %s20 = sphi 0, %s24
      %p21 = scmp.ge.s32.totalorder %s20, 6
      %s27 = sphi 0, %s39
      %s28 = sphi 0, %s35
      %s29 = sphi 0, %s27
      %s30 = sphi 0, %s28
      %s31 = sphi 0, %s29
      %s32 = sphi 0, %s30
      %s42 = sphi 0, %s44
      %s45 = sphi 0, %s42
      %s46 = sphi 0, %s45
      %s62 = sphi 0, %s46
      %s70 = sphi 0, %s72
      %s73 = sphi 0, %s70
      %s74 = sphi 0, %s73
      %s90 = sphi 0, %s74
      %s98 = sphi 0, %s100
      %s101 = sphi 0, %s98
      %s102 = sphi 0, %s101
      %s118 = sphi 0, %s102
      %s122 = sphi 0, %s122
      %s124 = sphi 0, %s122
      %s125 = sphi 0, %s124
      %s139 = sphi 0, %s125
      %s143 = sphi 0, %s143
      %s145 = sphi 0, %s143
      %s146 = sphi 0, %s145
      %s160 = sphi 0, %s146
      %s164 = sphi 0, %s164
      %s166 = sphi 0, %s164
      %s167 = sphi 0, %s166
      %s181 = sphi 0, %s167
      %s185 = sphi 0, %s185
      %s187 = sphi 0, %s185
      %s188 = sphi 0, %s187
      %s202 = sphi 0, %s188
      %s210 = sphi 0, %s212
      %s213 = sphi 0, %s210
      %s214 = sphi 0, %s213
      %s230 = sphi 0, %s214
    $region4: #{tpu_custom_call.1} parent=1 // loop_header_branch
      %23 = sbr.rel (%p21) target = $region8
    $region5: #{tpu_custom_call.1} parent=1 // loop_body
      %s25 = ssub.s32 %s20, 1
      %s26 = ssub.s32 %s20, 2
      %s33 = sadd.s32 1, %s28
      %p34 = scmp.ge.s32.totalorder %s33, 2
      %s35 = scalar_select %p34, 0, %s33
      %s36 = sadd.s32 1, %s27
      %s37 = scalar_select %p34, %s36, %s27
      %p38 = scmp.ge.s32.totalorder %s37, 2
      %s39 = scalar_select %p38, 0, %s37
      %s40 = ssub.s32 %s27, %s39
      %p41 = scmp.eq.s32.totalorder %s40, 0
      %s43 = sadd.s32 %s42, 1
      %s44 = scalar_select %p41, %s42, %s43
      %p47 = pneg %p41
      %p48 = scmp.eq.s32.totalorder %s20, 3
      %p49 = por %p47, %p48
      %p50 = scmp.ne.s32.totalorder %s42, %s45
      %p51 = scmp.eq.s32.totalorder %s20, 0
      %p52 = por %p50, %p51
      %p53 = scmp.ne.s32.totalorder %s42, %s45
      %p54 = scmp.eq.s32.totalorder %s25, 3
      %p55 = por %p53, %p54
      %p56 = scmp.ne.s32.totalorder %s45, %s46
      %p57 = scmp.eq.s32.totalorder %s25, 0
      %p58 = por %p56, %p57
      %p59 = scmp.ne.s32.totalorder %s45, %s46
      %p60 = scmp.eq.s32.totalorder %s26, 3
      %p61 = por %p59, %p60
      %p63 = scmp.ne.s32.totalorder %s46, %s62
      %p64 = scmp.eq.s32.totalorder %s26, 0
      %p65 = por %p63, %p64
      %s66 = ssub.s32 %s27, %s39
      %s67 = ssub.s32 %s28, %s35
      %s68 = sor.u32 %s66, %s67
      %p69 = scmp.eq.s32.totalorder %s68, 0
      %s71 = sadd.s32 %s70, 1
      %s72 = scalar_select %p69, %s70, %s71
      %p75 = pneg %p69
      %p76 = scmp.eq.s32.totalorder %s20, 3
      %p77 = por %p75, %p76
      %p78 = scmp.ne.s32.totalorder %s70, %s73
      %p79 = scmp.eq.s32.totalorder %s20, 0
      %p80 = por %p78, %p79
      %p81 = scmp.ne.s32.totalorder %s70, %s73
      %p82 = scmp.eq.s32.totalorder %s25, 3
      %p83 = por %p81, %p82
      %p84 = scmp.ne.s32.totalorder %s73, %s74
      %p85 = scmp.eq.s32.totalorder %s25, 0
      %p86 = por %p84, %p85
      %p87 = scmp.ne.s32.totalorder %s73, %s74
      %p88 = scmp.eq.s32.totalorder %s26, 3
      %p89 = por %p87, %p88
      %p91 = scmp.ne.s32.totalorder %s74, %s90
      %p92 = scmp.eq.s32.totalorder %s26, 0
      %p93 = por %p91, %p92
      %s94 = ssub.s32 %s27, %s39
      %s95 = ssub.s32 %s28, %s35
      %s96 = sor.u32 %s94, %s95
      %p97 = scmp.eq.s32.totalorder %s96, 0
      %s99 = sadd.s32 %s98, 1
      %s100 = scalar_select %p97, %s98, %s99
      %p103 = pneg %p97
      %p104 = scmp.eq.s32.totalorder %s20, 3
      %p105 = por %p103, %p104
      %p106 = scmp.ne.s32.totalorder %s98, %s101
      %p107 = scmp.eq.s32.totalorder %s20, 0
      %p108 = por %p106, %p107
      %p109 = scmp.ne.s32.totalorder %s98, %s101
      %p110 = scmp.eq.s32.totalorder %s25, 3
      %p111 = por %p109, %p110
      %p112 = scmp.ne.s32.totalorder %s101, %s102
      %p113 = scmp.eq.s32.totalorder %s25, 0
      %p114 = por %p112, %p113
      %p115 = scmp.ne.s32.totalorder %s101, %s102
      %p116 = scmp.eq.s32.totalorder %s26, 3
      %p117 = por %p115, %p116
      %p119 = scmp.ne.s32.totalorder %s102, %s118
      %p120 = scmp.eq.s32.totalorder %s26, 0
      %p121 = por %p119, %p120
      %s123 = sadd.s32 %s122, 1
      %p126 = scmp.eq.s32.totalorder %s20, 3
      %p127 = scmp.ne.s32.totalorder %s122, %s124
      %p128 = scmp.eq.s32.totalorder %s20, 0
      %p129 = por %p127, %p128
      %p130 = scmp.ne.s32.totalorder %s122, %s124
      %p131 = scmp.eq.s32.totalorder %s25, 3
      %p132 = por %p130, %p131
      %p133 = scmp.ne.s32.totalorder %s124, %s125
      %p134 = scmp.eq.s32.totalorder %s25, 0
      %p135 = por %p133, %p134
      %p136 = scmp.ne.s32.totalorder %s124, %s125
      %p137 = scmp.eq.s32.totalorder %s26, 3
      %p138 = por %p136, %p137
      %p140 = scmp.ne.s32.totalorder %s125, %s139
      %p141 = scmp.eq.s32.totalorder %s26, 0
      %p142 = por %p140, %p141
      %s144 = sadd.s32 %s143, 1
      %p147 = scmp.eq.s32.totalorder %s20, 3
      %p148 = scmp.ne.s32.totalorder %s143, %s145
      %p149 = scmp.eq.s32.totalorder %s20, 0
      %p150 = por %p148, %p149
      %p151 = scmp.ne.s32.totalorder %s143, %s145
      %p152 = scmp.eq.s32.totalorder %s25, 3
      %p153 = por %p151, %p152
      %p154 = scmp.ne.s32.totalorder %s145, %s146
      %p155 = scmp.eq.s32.totalorder %s25, 0
      %p156 = por %p154, %p155
      %p157 = scmp.ne.s32.totalorder %s145, %s146
      %p158 = scmp.eq.s32.totalorder %s26, 3
      %p159 = por %p157, %p158
      %p161 = scmp.ne.s32.totalorder %s146, %s160
      %p162 = scmp.eq.s32.totalorder %s26, 0
      %p163 = por %p161, %p162
      %s165 = sadd.s32 %s164, 1
      %p168 = scmp.eq.s32.totalorder %s20, 3
      %p169 = scmp.ne.s32.totalorder %s164, %s166
      %p170 = scmp.eq.s32.totalorder %s20, 0
      %p171 = por %p169, %p170
      %p172 = scmp.ne.s32.totalorder %s164, %s166
      %p173 = scmp.eq.s32.totalorder %s25, 3
      %p174 = por %p172, %p173
      %p175 = scmp.ne.s32.totalorder %s166, %s167
      %p176 = scmp.eq.s32.totalorder %s25, 0
      %p177 = por %p175, %p176
      %p178 = scmp.ne.s32.totalorder %s166, %s167
      %p179 = scmp.eq.s32.totalorder %s26, 3
      %p180 = por %p178, %p179
      %p182 = scmp.ne.s32.totalorder %s167, %s181
      %p183 = scmp.eq.s32.totalorder %s26, 0
      %p184 = por %p182, %p183
      %s186 = sadd.s32 %s185, 1
      %p189 = scmp.eq.s32.totalorder %s20, 3
      %p190 = scmp.ne.s32.totalorder %s185, %s187
      %p191 = scmp.eq.s32.totalorder %s20, 0
      %p192 = por %p190, %p191
      %p193 = scmp.ne.s32.totalorder %s185, %s187
      %p194 = scmp.eq.s32.totalorder %s25, 3
      %p195 = por %p193, %p194
      %p196 = scmp.ne.s32.totalorder %s187, %s188
      %p197 = scmp.eq.s32.totalorder %s25, 0
      %p198 = por %p196, %p197
      %p199 = scmp.ne.s32.totalorder %s187, %s188
      %p200 = scmp.eq.s32.totalorder %s26, 3
      %p201 = por %p199, %p200
      %p203 = scmp.ne.s32.totalorder %s188, %s202
      %p204 = scmp.eq.s32.totalorder %s26, 0
      %p205 = por %p203, %p204
      %s206 = ssub.s32 %s27, %s39
      %s207 = ssub.s32 %s28, %s35
      %s208 = sor.u32 %s206, %s207
      %p209 = scmp.eq.s32.totalorder %s208, 0
      %s211 = sadd.s32 %s210, 1
      %s212 = scalar_select %p209, %s210, %s211
      %p215 = pneg %p209
      %p216 = scmp.eq.s32.totalorder %s20, 3
      %p217 = por %p215, %p216
      %p218 = scmp.ne.s32.totalorder %s210, %s213
      %p219 = scmp.eq.s32.totalorder %s20, 0
      %p220 = por %p218, %p219
      %p221 = scmp.ne.s32.totalorder %s210, %s213
      %p222 = scmp.eq.s32.totalorder %s25, 3
      %p223 = por %p221, %p222
      %p224 = scmp.ne.s32.totalorder %s213, %s214
      %p225 = scmp.eq.s32.totalorder %s25, 0
      %p226 = por %p224, %p225
      %p227 = scmp.ne.s32.totalorder %s213, %s214
      %p228 = scmp.eq.s32.totalorder %s26, 3
      %p229 = por %p227, %p228
      %p231 = scmp.ne.s32.totalorder %s214, %s230
      %p232 = scmp.eq.s32.totalorder %s26, 0
      %p233 = por %p231, %p232
      %p234 = scmp.le.s32.totalorder 1, %s20
      %p235 = scmp.lt.s32.totalorder %s20, 5
      %p236 = pnand %p234, %p235
      %p237 = pneg %p236
      // Predicated region
      $region9: #{tpu_custom_call.1} parent=5 // pred_check
        _
      $region10: #{tpu_custom_call.1} parent=5 // pred_check_branch
        %239 = sbr.rel (%p236) target = $region12
      $region11: #{tpu_custom_call.1} parent=5 // pred_region
        %s240 = ssub.s32 %s20, 1
        // Predicated region
        $region13: #{tpu_custom_call.1} parent=11 // pred_check
          %p241 = pneg %p135
        $region14: #{tpu_custom_call.1} parent=11 // pred_check_branch
          %243 = sbr.rel (%p241) target = $region16
        $region15: #{tpu_custom_call.1} parent=11 // pred_region
          _
        $region16: #{tpu_custom_call.1} parent=11 // pred_fallthru
          _
        // Predicated region
        $region17: #{tpu_custom_call.1} parent=11 // pred_check
          %p244 = pneg %p156
        $region18: #{tpu_custom_call.1} parent=11 // pred_check_branch
          %246 = sbr.rel (%p244) target = $region20
        $region19: #{tpu_custom_call.1} parent=11 // pred_region
          _
        $region20: #{tpu_custom_call.1} parent=11 // pred_fallthru
          _
        // Predicated region
        $region21: #{tpu_custom_call.1} parent=11 // pred_check
          %p247 = pneg %p177
        $region22: #{tpu_custom_call.1} parent=11 // pred_check_branch
          %249 = sbr.rel (%p247) target = $region24
        $region23: #{tpu_custom_call.1} parent=11 // pred_region
          %s251 = ssub.s32 512, 512
          %252 = vsyncadd [#allocation6], %s251
          %s253 = sshll.u32 [#allocation5], 4
          %s254 = int_to_ptr.vmem [resolvable:$true] %s253
          %259 = dma.hbm_to_vmem [thread:$0]  %s5, 512, %s254, [#allocation6], 128, 128, 8
        $region24: #{tpu_custom_call.1} parent=11 // pred_fallthru
          _
        // Predicated region
        $region25: #{tpu_custom_call.1} parent=11 // pred_check
          %p260 = pneg %p198
        $region26: #{tpu_custom_call.1} parent=11 // pred_check_branch
          %262 = sbr.rel (%p260) target = $region28
        $region27: #{tpu_custom_call.1} parent=11 // pred_region
          _
        $region28: #{tpu_custom_call.1} parent=11 // pred_fallthru
          _
      $region12: #{tpu_custom_call.1} parent=5 // pred_fallthru
        _
      %p263 = scmp.lt.s32.totalorder %s20, 4
      // Predicated region
      $region29: #{tpu_custom_call.1} parent=5 // pred_check
        %p264 = pneg %p263
      $region30: #{tpu_custom_call.1} parent=5 // pred_check_branch
        %266 = sbr.rel (%p264) target = $region32
      $region31: #{tpu_custom_call.1} parent=5 // pred_region
        // Predicated region
        $region33: #{tpu_custom_call.1} parent=31 // pred_check
          %p267 = pneg %p52
        $region34: #{tpu_custom_call.1} parent=31 // pred_check_branch
          %269 = sbr.rel (%p267) target = $region36
        $region35: #{tpu_custom_call.1} parent=31 // pred_region
          %p270 = scmp.lt.s32.totalorder %s27, 1
          %s271 = scalar_select %p270, %s27, 1
          %s272 = smul.addr %s271, 2
          %s273 = smul.addr %s272, 8
          %s274 = scalar_lea.vmem %s0, %s273
        $region36: #{tpu_custom_call.1} parent=31 // pred_fallthru
          _
        // Predicated region
        $region37: #{tpu_custom_call.1} parent=31 // pred_check
          %p275 = pneg %p80
        $region38: #{tpu_custom_call.1} parent=31 // pred_check_branch
          %277 = sbr.rel (%p275) target = $region40
        $region39: #{tpu_custom_call.1} parent=31 // pred_region
          %s278 = sand.u32 %s70, 1
          %s279 = scalar_lea.sflag [#allocation3], %s278
          %s280 = sand.u32 %s70, 1
          %s281 = smul.addr %s280, 64
          %s282 = scalar_lea.vmem [#allocation2], %s281
          %s283 = smul.u32 8, %s28
          %s285 = ssub.s32 1024, 1024
          %286 = vsyncadd %s279, %s285
          %s287 = smul.addr %s27, 16
          %s288 = sadd.s32 %s283, %s287
          %s289 = smul.addr %s288, 128
          %s290 = scalar_lea.hbm %s1, %s289
          %s291 = sshll.u32 %s282, 4
          %s292 = int_to_ptr.vmem [resolvable:$true] %s291
          %297 = dma.hbm_to_vmem [thread:$0]  %s290, 1024, %s292, %s279, 128, 128, 8
        $region40: #{tpu_custom_call.1} parent=31 // pred_fallthru
          _
        // Predicated region
        $region41: #{tpu_custom_call.1} parent=31 // pred_check
          %p298 = pneg %p108
        $region42: #{tpu_custom_call.1} parent=31 // pred_check_branch
          %300 = sbr.rel (%p298) target = $region44
        $region43: #{tpu_custom_call.1} parent=31 // pred_region
          %p301 = scmp.lt.s32.totalorder %s27, 1
          %s302 = scalar_select %p301, %s27, 1
          %p303 = scmp.lt.s32.totalorder %s28, 1
          %s304 = scalar_select %p303, %s28, 1
          %s305 = smul.addr %s302, 2
          %s306 = sadd.s32 %s304, %s305
          %s307 = smul.addr %s306, 8
          %s308 = scalar_lea.vmem %s2, %s307
        $region44: #{tpu_custom_call.1} parent=31 // pred_fallthru
          _
      $region32: #{tpu_custom_call.1} parent=5 // pred_fallthru
        _
      %p309 = scmp.le.s32.totalorder 1, %s20
      %p310 = scmp.lt.s32.totalorder %s20, 5
      %p311 = pnand %p309, %p310
      %p312 = pneg %p311
      // Predicated region
      $region45: #{tpu_custom_call.1} parent=5 // pred_check
        _
      $region46: #{tpu_custom_call.1} parent=5 // pred_check_branch
        %314 = sbr.rel (%p311) target = $region48
      $region47: #{tpu_custom_call.1} parent=5 // pred_region
        %s315 = ssub.s32 %s20, 1
        %s316 = sand.u32 %s73, 1
        %s317 = scalar_lea.sflag [#allocation3], %s316
        %s318 = sand.u32 %s73, 1
        %s319 = smul.addr %s318, 64
        %s320 = scalar_lea.vmem [#allocation2], %s319
        // Predicated region
        $region49: #{tpu_custom_call.1} parent=47 // pred_check
          %p321 = pneg %p86
        $region50: #{tpu_custom_call.1} parent=47 // pred_check_branch
          %323 = sbr.rel (%p321) target = $region52
        $region51: #{tpu_custom_call.1} parent=47 // pred_region
          %324 = dma.done %s317, 1024
        $region52: #{tpu_custom_call.1} parent=47 // pred_fallthru
          _
        // Predicated region
        $region53: #{tpu_custom_call.1} parent=47 // pred_check
          %p325 = pneg %p177
        $region54: #{tpu_custom_call.1} parent=47 // pred_check_branch
          %327 = sbr.rel (%p325) target = $region56
        $region55: #{tpu_custom_call.1} parent=47 // pred_region
          %328 = dma.done [#allocation6], 512
        $region56: #{tpu_custom_call.1} parent=47 // pred_fallthru
          _
        %p329 = scmp.lt.s32.totalorder %s29, 1
        %s330 = scalar_select %p329, %s29, 1
        %s331 = smul.addr %s330, 2
        %s332 = smul.addr %s331, 8
        %s333 = scalar_lea.vmem %s0, %s332
        %p334 = pneg %p58
        %p335 = pneg %p55
        %s336 = sand.u32 %s73, 1
        %s337 = scalar_lea.sflag [#allocation3], %s336
        %s338 = sand.u32 %s73, 1
        %s339 = smul.addr %s338, 64
        %s340 = scalar_lea.vmem [#allocation2], %s339
        %p341 = pneg %p86
        %p342 = pneg %p83
        %p343 = scmp.lt.s32.totalorder %s29, 1
        %s344 = scalar_select %p343, %s29, 1
        %p345 = scmp.lt.s32.totalorder %s30, 1
        %s346 = scalar_select %p345, %s30, 1
        %s347 = smul.addr %s344, 2
        %s348 = sadd.s32 %s346, %s347
        %s349 = smul.addr %s348, 8
        %s350 = scalar_lea.vmem %s2, %s349
        %p351 = pneg %p114
        %p352 = pneg %p111
        %p353 = pneg %p135
        %p354 = pneg %p132
        %p355 = pneg %p156
        %p356 = pneg %p153
        %p357 = pneg %p177
        %p358 = pneg %p174
        %p359 = pneg %p198
        %p360 = pneg %p195
        %p361 = pneg %p226
        %p362 = pneg %p223
        %s363 = sand.u32 %s213, 1
        %s364 = scalar_lea.sflag [#allocation4], %s363
        %s365 = sand.u32 %s213, 1
        %s366 = smul.addr %s365, 64
        %s367 = scalar_lea.vmem [#allocation7], %s366
        %p368 = scmp.lt.s32.totalorder %s29, 1
        %s369 = scalar_select %p368, %s29, 1
        %s370 = smul.addr %s369, 2
        %s371 = smul.addr %s370, 8
        %s372 = scalar_lea.vmem %s0, %s371
        %s373 = smul.u32 8, %s30
        %p374 = scmp.lt.s32.totalorder %s29, 1
        %s375 = scalar_select %p374, %s29, 1
        %p376 = scmp.lt.s32.totalorder %s30, 1
        %s377 = scalar_select %p376, %s30, 1
        %s378 = smul.addr %s375, 2
        %s379 = sadd.s32 %s377, %s378
        %s380 = smul.addr %s379, 8
        %s381 = scalar_lea.vmem %s2, %s380
        %s382 = smul.u32 8, %s30
        %v383 = vld [vmem:[%s372] sm:$0xff]
        %v384 = vld [vmem:[%s372 + $0x8] sm:$0xff]
        %v385 = vld [vmem:[%s381] sm:$0xff]
        %v386 = vld [vmem:[%s3] sm:$0xff]
        %v387 = vld [vmem:[%s3 + $0x8] sm:$0xff]
        %v388 = vld [vmem:[%s3 + $0x10] sm:$0xff]
        %v389 = vld [vmem:[%s3 + $0x18] sm:$0xff]
        %v390 = vld [vmem:[%s4] sm:$0xff]
        %v391 = vld [vmem:[%s4 + $0x8] sm:$0xff]
        %v392 = vld [vmem:[%s4 + $0x10] sm:$0xff]
        %v393 = vld [vmem:[%s4 + $0x18] sm:$0xff]
        %v394 = vld [vmem:[#allocation5] sm:$0xff]
        %v395 = vld [vmem:[#allocation5 + $0x8] sm:$0xff]
        %v396 = vld [vmem:[#allocation5 + $0x10] sm:$0xff]
        %v397 = vld [vmem:[#allocation5 + $0x18] sm:$0xff]
        %s398 = smul.u32 %s30, 8
        %s399 = ssub.s32 8, %s398
        %v400 = vld [vmem:[%s320] sm:$0xff]
        %402 = vset.pattern.permute.xlu0 0
        %403 = vperm.xlu0 %402, %v386
        %v404 = vpop.permute.xlu0 %403
        %407 = vset.pattern.permute.xlu0 0
        %408 = vperm.xlu0 %407, %v387
        %v409 = vpop.permute.xlu0 %408
        %412 = vset.pattern.permute.xlu0 0
        %413 = vperm.xlu0 %412, %v388
        %v414 = vpop.permute.xlu0 %413
        %417 = vset.pattern.permute.xlu0 0
        %418 = vperm.xlu0 %417, %v389
        %v419 = vpop.permute.xlu0 %418
        %v421 = vlaneseq
        %v422 = vshrl.u32 %v421, 7
        %v423 = vsub.s32 0, %v422
        %v424 = vrot.slane %v385, %v423
        %v425 = vmul.f32 %v404, %v424
        %v426 = vmul.f32 %v409, %v424
        %v427 = vmul.f32 %v414, %v424
        %v428 = vmul.f32 %v419, %v424
        %430 = vset.pattern.permute.xlu0 0
        %431 = vperm.xlu0 %430, %v390
        %v432 = vpop.permute.xlu0 %431
        %435 = vset.pattern.permute.xlu0 0
        %436 = vperm.xlu0 %435, %v391
        %v437 = vpop.permute.xlu0 %436
        %440 = vset.pattern.permute.xlu0 0
        %441 = vperm.xlu0 %440, %v392
        %v442 = vpop.permute.xlu0 %441
        %445 = vset.pattern.permute.xlu0 0
        %446 = vperm.xlu0 %445, %v393
        %v447 = vpop.permute.xlu0 %446
        %v449 = vadd.f32 %v425, %v432
        %v450 = vadd.f32 %v426, %v437
        %v451 = vadd.f32 %v427, %v442
        %v452 = vadd.f32 %v428, %v447
        %v453 = vmax.f32 %v449, 0.0
        %v454 = vmax.f32 %v450, 0.0
        %v455 = vmax.f32 %v451, 0.0
        %v456 = vmax.f32 %v452, 0.0
        %457 = vxpose.xlu0.b32.start [1/16] %v453, 128
        %458 = vxpose.xlu0.b32.cont [2/16] %v454, 128
        %459 = vxpose.xlu0.b32.cont [3/16] %v455, 128
        %460 = vxpose.xlu0.b32.cont [4/16] %v456, 128
        %461 = vxpose.xlu0.b32.cont [5/16] 0.0, 128
        %462 = vxpose.xlu0.b32.cont [6/16] 0.0, 128
        %463 = vxpose.xlu0.b32.cont [7/16] 0.0, 128
        %464 = vxpose.xlu0.b32.cont [8/16] 0.0, 128
        %465 = vxpose.xlu0.b32.cont [9/16] 0.0, 128
        %466 = vxpose.xlu0.b32.cont [10/16] 0.0, 128
        %467 = vxpose.xlu0.b32.cont [11/16] 0.0, 128
        %468 = vxpose.xlu0.b32.cont [12/16] 0.0, 128
        %469 = vxpose.xlu0.b32.cont [13/16] 0.0, 128
        %470 = vxpose.xlu0.b32.cont [14/16] 0.0, 128
        %471 = vxpose.xlu0.b32.cont [15/16] 0.0, 128
        %472 = vxpose.xlu0.b32.end [16/16] 0.0, 128
        %v473 = vpop.trf.xlu0
        %v474 = vpop.trf.xlu0
        %v475 = vpop.trf.xlu0
        %v476 = vpop.trf.xlu0
        %v477 = vpop.trf.xlu0
        %v478 = vpop.trf.xlu0
        %v479 = vpop.trf.xlu0
        %v480 = vpop.trf.xlu0
        %v481 = vpop.trf.xlu0
        %v482 = vpop.trf.xlu0
        %v483 = vpop.trf.xlu0
        %v484 = vpop.trf.xlu0
        %v485 = vpop.trf.xlu0
        %v486 = vpop.trf.xlu0
        %v487 = vpop.trf.xlu0
        %v488 = vpop.trf.xlu0
        %vm489 = vcmask 261120
        %v491 = vsel %vm489, %v473, 0
        %v494 = vsel %vm489, %v474, 0
        %496 = vmatprep.subr.mxu0 0.0
        %497 = vmatpush1.msra.mxu0 %v394
        %498 = vmatprep.subr.mxu0 0.0
        %499 = vmatpush1.msra.mxu0 %v395
        %500 = vmatprep.subr.mxu0 0.0
        %501 = vmatpush1.msra.mxu0 %v396
        %502 = vmatprep.subr.mxu0 0.0
        %503 = vmatpush1.msra.mxu0 %v397
        %504 = vmatprep.subr.mxu0 0.0
        %505 = vmatpush1.msra.mxu0 0.0
        %506 = vmatprep.subr.mxu0 0.0
        %507 = vmatpush1.msra.mxu0 0.0
        %508 = vmatprep.subr.mxu0 0.0
        %509 = vmatpush1.msra.mxu0 0.0
        %510 = vmatprep.subr.mxu0 0.0
        %511 = vmatpush1.msra.mxu0 0.0
        %512 = vmatprep.subr.mxu0 0.0
        %513 = vmatpush1.msra.mxu0 0.0
        %514 = vmatprep.subr.mxu0 0.0
        %515 = vmatpush1.msra.mxu0 0.0
        %516 = vmatprep.subr.mxu0 0.0
        %517 = vmatpush1.msra.mxu0 0.0
        %518 = vmatprep.subr.mxu0 0.0
        %519 = vmatpush1.msra.mxu0 0.0
        %520 = vmatprep.subr.mxu0 0.0
        %521 = vmatpush1.msra.mxu0 0.0
        %522 = vmatprep.subr.mxu0 0.0
        %523 = vmatpush1.msra.mxu0 0.0
        %524 = vmatprep.subr.mxu0 0.0
        %525 = vmatpush1.msra.mxu0 0.0
        %526 = vmatprep.subr.mxu0 0.0
        %527 = vmatpush1.msra.mxu0 0.0
        %528 = vmatprep.subr.mxu0 0.0
        %529 = vmatpush1.msra.mxu0 0.0
        %530 = vmatprep.subr.mxu0 0.0
        %531 = vmatpush1.msra.mxu0 0.0
        %532 = vmatprep.subr.mxu0 0.0
        %533 = vmatpush1.msra.mxu0 0.0
        %534 = vmatprep.subr.mxu0 0.0
        %535 = vmatpush1.msra.mxu0 0.0
        %536 = vmatprep.subr.mxu0 0.0
        %537 = vmatpush1.msra.mxu0 0.0
        %538 = vmatprep.subr.mxu0 0.0
        %539 = vmatpush1.msra.mxu0 0.0
        %540 = vmatprep.subr.mxu0 0.0
        %541 = vmatpush1.msra.mxu0 0.0
        %542 = vmatprep.subr.mxu0 0.0
        %543 = vmatpush1.msra.mxu0 0.0
        %544 = vmatprep.subr.mxu0 0.0
        %545 = vmatpush1.msra.mxu0 0.0
        %546 = vmatprep.subr.mxu0 0.0
        %547 = vmatpush1.msra.mxu0 0.0
        %548 = vmatprep.subr.mxu0 0.0
        %549 = vmatpush1.msra.mxu0 0.0
        %550 = vmatprep.subr.mxu0 0.0
        %551 = vmatpush1.msra.mxu0 0.0
        %552 = vmatprep.subr.mxu0 0.0
        %553 = vmatpush1.msra.mxu0 0.0
        %554 = vmatprep.subr.mxu0 0.0
        %555 = vmatpush1.msra.mxu0 0.0
        %556 = vmatprep.subr.mxu0 0.0
        %557 = vmatpush1.msra.mxu0 0.0
        %558 = vmatprep.subr.mxu0 0.0
        %559 = vmatpush1.msra.mxu0 0.0
        %560 = vmatprep.mubr.f32.mxu0 0.0
        %561 = vmatmul.mubr.f32.gmra.mrb[0].mxu0 %v491
        %v562 = vpop.f32.mrb[0].mxu0
        %v563 = vadd.f32 0.0, %v562
        %v564 = vpop.f32.mrb[0].mxu0
        %565 = vmatprep.mubr.f32.mxu0 0.0
        %566 = vmatmul.mubr.f32.gmra.mrb[0].mxu0 %v494
        %v567 = vpop.f32.mrb[0].mxu0
        %v568 = vadd.f32 0.0, %v567
        %v569 = vpop.f32.mrb[0].mxu0
        %570 = vdwg.mxu0
        %s571 = sshra.s32 %s399, 3
        %s572 = sand.u32 %s399, 7
        %s573 = smul.addr %s571, 4
        %s574 = scalar_lea.vmem %s6, %s573
        %v575 = vld [vmem:[%s574] sm:$0xf]
        %v576 = vld [vmem:[%s574 + $0x4] sm:$0xf]
        %v577 = vunpack.c.l.bf16 %v575
        %v578 = vunpack.c.l.bf16 %v576
        %vm579 = vcmask 64512
        %v581 = vsel %vm579, %v383, 0
        %v584 = vsel %vm579, %v384, 0
        %586 = vmatprep.subr.mxu0 0.0
        %587 = vmatpush1.msra.mxu0 %v400
        %588 = vmatprep.subr.mxu0 0.0
        %589 = vmatpush1.msra.mxu0 0.0
        %590 = vmatprep.subr.mxu0 0.0
        %591 = vmatpush1.msra.mxu0 0.0
        %592 = vmatprep.subr.mxu0 0.0
        %593 = vmatpush1.msra.mxu0 0.0
        %594 = vmatprep.subr.mxu0 0.0
        %595 = vmatpush1.msra.mxu0 0.0
        %596 = vmatprep.subr.mxu0 0.0
        %597 = vmatpush1.msra.mxu0 0.0
        %598 = vmatprep.subr.mxu0 0.0
        %599 = vmatpush1.msra.mxu0 0.0
        %600 = vmatprep.subr.mxu0 0.0
        %601 = vmatpush1.msra.mxu0 0.0
        %602 = vmatprep.subr.mxu0 0.0
        %603 = vmatpush1.msra.mxu0 0.0
        %604 = vmatprep.subr.mxu0 0.0
        %605 = vmatpush1.msra.mxu0 0.0
        %606 = vmatprep.subr.mxu0 0.0
        %607 = vmatpush1.msra.mxu0 0.0
        %608 = vmatprep.subr.mxu0 0.0
        %609 = vmatpush1.msra.mxu0 0.0
        %610 = vmatprep.subr.mxu0 0.0
        %611 = vmatpush1.msra.mxu0 0.0
        %612 = vmatprep.subr.mxu0 0.0
        %613 = vmatpush1.msra.mxu0 0.0
        %614 = vmatprep.subr.mxu0 0.0
        %615 = vmatpush1.msra.mxu0 0.0
        %616 = vmatprep.subr.mxu0 0.0
        %617 = vmatpush1.msra.mxu0 0.0
        %618 = vmatprep.subr.mxu0 0.0
        %619 = vmatpush1.msra.mxu0 0.0
        %620 = vmatprep.subr.mxu0 0.0
        %621 = vmatpush1.msra.mxu0 0.0
        %622 = vmatprep.subr.mxu0 0.0
        %623 = vmatpush1.msra.mxu0 0.0
        %624 = vmatprep.subr.mxu0 0.0
        %625 = vmatpush1.msra.mxu0 0.0
        %626 = vmatprep.subr.mxu0 0.0
        %627 = vmatpush1.msra.mxu0 0.0
        %628 = vmatprep.subr.mxu0 0.0
        %629 = vmatpush1.msra.mxu0 0.0
        %630 = vmatprep.subr.mxu0 0.0
        %631 = vmatpush1.msra.mxu0 0.0
        %632 = vmatprep.subr.mxu0 0.0
        %633 = vmatpush1.msra.mxu0 0.0
        %634 = vmatprep.subr.mxu0 0.0
        %635 = vmatpush1.msra.mxu0 0.0
        %636 = vmatprep.subr.mxu0 0.0
        %637 = vmatpush1.msra.mxu0 0.0
        %638 = vmatprep.subr.mxu0 0.0
        %639 = vmatpush1.msra.mxu0 0.0
        %640 = vmatprep.subr.mxu0 0.0
        %641 = vmatpush1.msra.mxu0 0.0
        %642 = vmatprep.subr.mxu0 0.0
        %643 = vmatpush1.msra.mxu0 0.0
        %644 = vmatprep.subr.mxu0 0.0
        %645 = vmatpush1.msra.mxu0 0.0
        %646 = vmatprep.subr.mxu0 0.0
        %647 = vmatpush1.msra.mxu0 0.0
        %648 = vmatprep.subr.mxu0 0.0
        %649 = vmatpush1.msra.mxu0 0.0
        %650 = vmatprep.mubr.f32.mxu0 0.0
        %651 = vmatmul.mubr.f32.gmra.mrb[0].mxu0 %v581
        %v652 = vpop.f32.mrb[0].mxu0
        %v653 = vadd.f32 %v563, %v652
        %v654 = vpop.f32.mrb[0].mxu0
        %655 = vmatprep.mubr.f32.mxu0 0.0
        %656 = vmatmul.mubr.f32.gmra.mrb[0].mxu0 %v584
        %v657 = vpop.f32.mrb[0].mxu0
        %v658 = vadd.f32 %v568, %v657
        %v659 = vpop.f32.mrb[0].mxu0
        %660 = vdwg.mxu0
        %v661 = vadd.f32 %v653, %v577
        %v662 = vadd.f32 %v658, %v578
        %v663 = vpack.c.bf16 %v662, %v661
        %v665 = vunpack.c.l.b16 %v663
        %v666 = vunpack.c.h.b16 %v663
        %v667 = vpack.c.b16 %v665, %v665
        %v668 = vpack.c.b16 %v666, %v666
        %vm671 = vcmask 519168
        %672 = vst.msk [vmem:[%s367] sm:$0xf] %vm671, %v667
        %673 = vst.msk [vmem:[%s367 + $0x4] sm:$0xf] %vm671, %v668
        %s674 = scalar_lea.vmem %s320, 8 [#allocation2]
        %v675 = vld [vmem:[%s674] sm:$0xff]
        %v676 = vlaneseq
        %v677 = vshrl.u32 %v676, 7
        %v678 = vsub.s32 1, %v677
        %v679 = vrot.slane %v385, %v678
        %v680 = vmul.f32 %v404, %v679
        %v681 = vmul.f32 %v409, %v679
        %v682 = vmul.f32 %v414, %v679
        %v683 = vmul.f32 %v419, %v679
        %v684 = vadd.f32 %v680, %v432
        %v685 = vadd.f32 %v681, %v437
        %v686 = vadd.f32 %v682, %v442
        %v687 = vadd.f32 %v683, %v447
        %v688 = vmax.f32 %v684, 0.0
        %v689 = vmax.f32 %v685, 0.0
        %v690 = vmax.f32 %v686, 0.0
        %v691 = vmax.f32 %v687, 0.0
        %692 = vxpose.xlu0.b32.start [1/16] %v688, 128
        %693 = vxpose.xlu0.b32.cont [2/16] %v689, 128
        %694 = vxpose.xlu0.b32.cont [3/16] %v690, 128
        %695 = vxpose.xlu0.b32.cont [4/16] %v691, 128
        %696 = vxpose.xlu0.b32.cont [5/16] 0.0, 128
        %697 = vxpose.xlu0.b32.cont [6/16] 0.0, 128
        %698 = vxpose.xlu0.b32.cont [7/16] 0.0, 128
        %699 = vxpose.xlu0.b32.cont [8/16] 0.0, 128
        %700 = vxpose.xlu0.b32.cont [9/16] 0.0, 128
        %701 = vxpose.xlu0.b32.cont [10/16] 0.0, 128
        %702 = vxpose.xlu0.b32.cont [11/16] 0.0, 128
        %703 = vxpose.xlu0.b32.cont [12/16] 0.0, 128
        %704 = vxpose.xlu0.b32.cont [13/16] 0.0, 128
        %705 = vxpose.xlu0.b32.cont [14/16] 0.0, 128
        %706 = vxpose.xlu0.b32.cont [15/16] 0.0, 128
        %707 = vxpose.xlu0.b32.end [16/16] 0.0, 128
        %v708 = vpop.trf.xlu0
        %v709 = vpop.trf.xlu0
        %v710 = vpop.trf.xlu0
        %v711 = vpop.trf.xlu0
        %v712 = vpop.trf.xlu0
        %v713 = vpop.trf.xlu0
        %v714 = vpop.trf.xlu0
        %v715 = vpop.trf.xlu0
        %v716 = vpop.trf.xlu0
        %v717 = vpop.trf.xlu0
        %v718 = vpop.trf.xlu0
        %v719 = vpop.trf.xlu0
        %v720 = vpop.trf.xlu0
        %v721 = vpop.trf.xlu0
        %v722 = vpop.trf.xlu0
        %v723 = vpop.trf.xlu0
        %v725 = vsel %vm489, %v708, 0
        %v728 = vsel %vm489, %v709, 0
        %730 = vmatprep.subr.mxu0 0.0
        %731 = vmatpush1.msra.mxu0 %v394
        %732 = vmatprep.subr.mxu0 0.0
        %733 = vmatpush1.msra.mxu0 %v395
        %734 = vmatprep.subr.mxu0 0.0
        %735 = vmatpush1.msra.mxu0 %v396
        %736 = vmatprep.subr.mxu0 0.0
        %737 = vmatpush1.msra.mxu0 %v397
        %738 = vmatprep.subr.mxu0 0.0
        %739 = vmatpush1.msra.mxu0 0.0
        %740 = vmatprep.subr.mxu0 0.0
        %741 = vmatpush1.msra.mxu0 0.0
        %742 = vmatprep.subr.mxu0 0.0
        %743 = vmatpush1.msra.mxu0 0.0
        %744 = vmatprep.subr.mxu0 0.0
        %745 = vmatpush1.msra.mxu0 0.0
        %746 = vmatprep.subr.mxu0 0.0
        %747 = vmatpush1.msra.mxu0 0.0
        %748 = vmatprep.subr.mxu0 0.0
        %749 = vmatpush1.msra.mxu0 0.0
        %750 = vmatprep.subr.mxu0 0.0
        %751 = vmatpush1.msra.mxu0 0.0
        %752 = vmatprep.subr.mxu0 0.0
        %753 = vmatpush1.msra.mxu0 0.0
        %754 = vmatprep.subr.mxu0 0.0
        %755 = vmatpush1.msra.mxu0 0.0
        %756 = vmatprep.subr.mxu0 0.0
        %757 = vmatpush1.msra.mxu0 0.0
        %758 = vmatprep.subr.mxu0 0.0
        %759 = vmatpush1.msra.mxu0 0.0
        %760 = vmatprep.subr.mxu0 0.0
        %761 = vmatpush1.msra.mxu0 0.0
        %762 = vmatprep.subr.mxu0 0.0
        %763 = vmatpush1.msra.mxu0 0.0
        %764 = vmatprep.subr.mxu0 0.0
        %765 = vmatpush1.msra.mxu0 0.0
        %766 = vmatprep.subr.mxu0 0.0
        %767 = vmatpush1.msra.mxu0 0.0
        %768 = vmatprep.subr.mxu0 0.0
        %769 = vmatpush1.msra.mxu0 0.0
        %770 = vmatprep.subr.mxu0 0.0
        %771 = vmatpush1.msra.mxu0 0.0
        %772 = vmatprep.subr.mxu0 0.0
        %773 = vmatpush1.msra.mxu0 0.0
        %774 = vmatprep.subr.mxu0 0.0
        %775 = vmatpush1.msra.mxu0 0.0
        %776 = vmatprep.subr.mxu0 0.0
        %777 = vmatpush1.msra.mxu0 0.0
        %778 = vmatprep.subr.mxu0 0.0
        %779 = vmatpush1.msra.mxu0 0.0
        %780 = vmatprep.subr.mxu0 0.0
        %781 = vmatpush1.msra.mxu0 0.0
        %782 = vmatprep.subr.mxu0 0.0
        %783 = vmatpush1.msra.mxu0 0.0
        %784 = vmatprep.subr.mxu0 0.0
        %785 = vmatpush1.msra.mxu0 0.0
        %786 = vmatprep.subr.mxu0 0.0
        %787 = vmatpush1.msra.mxu0 0.0
        %788 = vmatprep.subr.mxu0 0.0
        %789 = vmatpush1.msra.mxu0 0.0
        %790 = vmatprep.subr.mxu0 0.0
        %791 = vmatpush1.msra.mxu0 0.0
        %792 = vmatprep.subr.mxu0 0.0
        %793 = vmatpush1.msra.mxu0 0.0
        %794 = vmatprep.mubr.f32.mxu0 0.0
        %795 = vmatmul.mubr.f32.gmra.mrb[0].mxu0 %v725
        %v796 = vpop.f32.mrb[0].mxu0
        %v797 = vadd.f32 0.0, %v796
        %v798 = vpop.f32.mrb[0].mxu0
        %799 = vmatprep.mubr.f32.mxu0 0.0
        %800 = vmatmul.mubr.f32.gmra.mrb[0].mxu0 %v728
        %v801 = vpop.f32.mrb[0].mxu0
        %v802 = vadd.f32 0.0, %v801
        %v803 = vpop.f32.mrb[0].mxu0
        %804 = vdwg.mxu0
        %s805 = sadd.s32 %s571, 3
        %s806 = smul.addr %s805, 4
        %s807 = scalar_lea.vmem %s6, %s806
        %v808 = vld [vmem:[%s807] sm:$0xf]
        %v809 = vld [vmem:[%s807 + $0x4] sm:$0xf]
        %v810 = vunpack.c.l.bf16 %v808
        %v811 = vunpack.c.l.bf16 %v809
        %812 = vmatprep.subr.mxu0 0.0
        %813 = vmatpush1.msra.mxu0 %v675
        %814 = vmatprep.subr.mxu0 0.0
        %815 = vmatpush1.msra.mxu0 0.0
        %816 = vmatprep.subr.mxu0 0.0
        %817 = vmatpush1.msra.mxu0 0.0
        %818 = vmatprep.subr.mxu0 0.0
        %819 = vmatpush1.msra.mxu0 0.0
        %820 = vmatprep.subr.mxu0 0.0
        %821 = vmatpush1.msra.mxu0 0.0
        %822 = vmatprep.subr.mxu0 0.0
        %823 = vmatpush1.msra.mxu0 0.0
        %824 = vmatprep.subr.mxu0 0.0
        %825 = vmatpush1.msra.mxu0 0.0
        %826 = vmatprep.subr.mxu0 0.0
        %827 = vmatpush1.msra.mxu0 0.0
        %828 = vmatprep.subr.mxu0 0.0
        %829 = vmatpush1.msra.mxu0 0.0
        %830 = vmatprep.subr.mxu0 0.0
        %831 = vmatpush1.msra.mxu0 0.0
        %832 = vmatprep.subr.mxu0 0.0
        %833 = vmatpush1.msra.mxu0 0.0
        %834 = vmatprep.subr.mxu0 0.0
        %835 = vmatpush1.msra.mxu0 0.0
        %836 = vmatprep.subr.mxu0 0.0
        %837 = vmatpush1.msra.mxu0 0.0
        %838 = vmatprep.subr.mxu0 0.0
        %839 = vmatpush1.msra.mxu0 0.0
        %840 = vmatprep.subr.mxu0 0.0
        %841 = vmatpush1.msra.mxu0 0.0
        %842 = vmatprep.subr.mxu0 0.0
        %843 = vmatpush1.msra.mxu0 0.0
        %844 = vmatprep.subr.mxu0 0.0
        %845 = vmatpush1.msra.mxu0 0.0
        %846 = vmatprep.subr.mxu0 0.0
        %847 = vmatpush1.msra.mxu0 0.0
        %848 = vmatprep.subr.mxu0 0.0
        %849 = vmatpush1.msra.mxu0 0.0
        %850 = vmatprep.subr.mxu0 0.0
        %851 = vmatpush1.msra.mxu0 0.0
        %852 = vmatprep.subr.mxu0 0.0
        %853 = vmatpush1.msra.mxu0 0.0
        %854 = vmatprep.subr.mxu0 0.0
        %855 = vmatpush1.msra.mxu0 0.0
        %856 = vmatprep.subr.mxu0 0.0
        %857 = vmatpush1.msra.mxu0 0.0
        %858 = vmatprep.subr.mxu0 0.0
        %859 = vmatpush1.msra.mxu0 0.0
        %860 = vmatprep.subr.mxu0 0.0
        %861 = vmatpush1.msra.mxu0 0.0
        %862 = vmatprep.subr.mxu0 0.0
        %863 = vmatpush1.msra.mxu0 0.0
        %864 = vmatprep.subr.mxu0 0.0
        %865 = vmatpush1.msra.mxu0 0.0
        %866 = vmatprep.subr.mxu0 0.0
        %867 = vmatpush1.msra.mxu0 0.0
        %868 = vmatprep.subr.mxu0 0.0
        %869 = vmatpush1.msra.mxu0 0.0
        %870 = vmatprep.subr.mxu0 0.0
        %871 = vmatpush1.msra.mxu0 0.0
        %872 = vmatprep.subr.mxu0 0.0
        %873 = vmatpush1.msra.mxu0 0.0
        %874 = vmatprep.subr.mxu0 0.0
        %875 = vmatpush1.msra.mxu0 0.0
        %876 = vmatprep.mubr.f32.mxu0 0.0
        %877 = vmatmul.mubr.f32.gmra.mrb[0].mxu0 %v581
        %v878 = vpop.f32.mrb[0].mxu0
        %v879 = vadd.f32 %v797, %v878
        %v880 = vpop.f32.mrb[0].mxu0
        %881 = vmatprep.mubr.f32.mxu0 0.0
        %882 = vmatmul.mubr.f32.gmra.mrb[0].mxu0 %v584
        %v883 = vpop.f32.mrb[0].mxu0
        %v884 = vadd.f32 %v802, %v883
        %v885 = vpop.f32.mrb[0].mxu0
        %886 = vdwg.mxu0
        %v887 = vadd.f32 %v879, %v810
        %v888 = vadd.f32 %v884, %v811
        %v889 = vpack.c.bf16 %v888, %v887
        %v891 = vunpack.c.l.b16 %v889
        %v892 = vunpack.c.h.b16 %v889
        %v893 = vpack.c.b16 %v891, %v891
        %v894 = vpack.c.b16 %v892, %v892
        %s897 = scalar_lea.vmem %s367, 8 [#allocation7]
        %898 = vst.msk [vmem:[%s897] sm:$0xf] %vm671, %v893
        %899 = vst.msk [vmem:[%s897 + $0x4] sm:$0xf] %vm671, %v894
        %s900 = scalar_lea.vmem %s320, 16 [#allocation2]
        %v901 = vld [vmem:[%s900] sm:$0xff]
        %v902 = vlaneseq
        %v903 = vshrl.u32 %v902, 7
        %v904 = vsub.s32 2, %v903
        %v905 = vrot.slane %v385, %v904
        %v906 = vmul.f32 %v404, %v905
        %v907 = vmul.f32 %v409, %v905
        %v908 = vmul.f32 %v414, %v905
        %v909 = vmul.f32 %v419, %v905
        %v910 = vadd.f32 %v906, %v432
        %v911 = vadd.f32 %v907, %v437
        %v912 = vadd.f32 %v908, %v442
        %v913 = vadd.f32 %v909, %v447
        %v914 = vmax.f32 %v910, 0.0
        %v915 = vmax.f32 %v911, 0.0
        %v916 = vmax.f32 %v912, 0.0
        %v917 = vmax.f32 %v913, 0.0
        %918 = vxpose.xlu0.b32.start [1/16] %v914, 128
        %919 = vxpose.xlu0.b32.cont [2/16] %v915, 128
        %920 = vxpose.xlu0.b32.cont [3/16] %v916, 128
        %921 = vxpose.xlu0.b32.cont [4/16] %v917, 128
        %922 = vxpose.xlu0.b32.cont [5/16] 0.0, 128
        %923 = vxpose.xlu0.b32.cont [6/16] 0.0, 128
        %924 = vxpose.xlu0.b32.cont [7/16] 0.0, 128
        %925 = vxpose.xlu0.b32.cont [8/16] 0.0, 128
        %926 = vxpose.xlu0.b32.cont [9/16] 0.0, 128
        %927 = vxpose.xlu0.b32.cont [10/16] 0.0, 128
        %928 = vxpose.xlu0.b32.cont [11/16] 0.0, 128
        %929 = vxpose.xlu0.b32.cont [12/16] 0.0, 128
        %930 = vxpose.xlu0.b32.cont [13/16] 0.0, 128
        %931 = vxpose.xlu0.b32.cont [14/16] 0.0, 128
        %932 = vxpose.xlu0.b32.cont [15/16] 0.0, 128
        %933 = vxpose.xlu0.b32.end [16/16] 0.0, 128
        %v934 = vpop.trf.xlu0
        %v935 = vpop.trf.xlu0
        %v936 = vpop.trf.xlu0
        %v937 = vpop.trf.xlu0
        %v938 = vpop.trf.xlu0
        %v939 = vpop.trf.xlu0
        %v940 = vpop.trf.xlu0
        %v941 = vpop.trf.xlu0
        %v942 = vpop.trf.xlu0
        %v943 = vpop.trf.xlu0
        %v944 = vpop.trf.xlu0
        %v945 = vpop.trf.xlu0
        %v946 = vpop.trf.xlu0
        %v947 = vpop.trf.xlu0
        %v948 = vpop.trf.xlu0
        %v949 = vpop.trf.xlu0
        %v951 = vsel %vm489, %v934, 0
        %v954 = vsel %vm489, %v935, 0
        %956 = vmatprep.subr.mxu0 0.0
        %957 = vmatpush1.msra.mxu0 %v394
        %958 = vmatprep.subr.mxu0 0.0
        %959 = vmatpush1.msra.mxu0 %v395
        %960 = vmatprep.subr.mxu0 0.0
        %961 = vmatpush1.msra.mxu0 %v396
        %962 = vmatprep.subr.mxu0 0.0
        %963 = vmatpush1.msra.mxu0 %v397
        %964 = vmatprep.subr.mxu0 0.0
        %965 = vmatpush1.msra.mxu0 0.0
        %966 = vmatprep.subr.mxu0 0.0
        %967 = vmatpush1.msra.mxu0 0.0
        %968 = vmatprep.subr.mxu0 0.0
        %969 = vmatpush1.msra.mxu0 0.0
        %970 = vmatprep.subr.mxu0 0.0
        %971 = vmatpush1.msra.mxu0 0.0
        %972 = vmatprep.subr.mxu0 0.0
        %973 = vmatpush1.msra.mxu0 0.0
        %974 = vmatprep.subr.mxu0 0.0
        %975 = vmatpush1.msra.mxu0 0.0
        %976 = vmatprep.subr.mxu0 0.0
        %977 = vmatpush1.msra.mxu0 0.0
        %978 = vmatprep.subr.mxu0 0.0
        %979 = vmatpush1.msra.mxu0 0.0
        %980 = vmatprep.subr.mxu0 0.0
        %981 = vmatpush1.msra.mxu0 0.0
        %982 = vmatprep.subr.mxu0 0.0
        %983 = vmatpush1.msra.mxu0 0.0
        %984 = vmatprep.subr.mxu0 0.0
        %985 = vmatpush1.msra.mxu0 0.0
        %986 = vmatprep.subr.mxu0 0.0
        %987 = vmatpush1.msra.mxu0 0.0
        %988 = vmatprep.subr.mxu0 0.0
        %989 = vmatpush1.msra.mxu0 0.0
        %990 = vmatprep.subr.mxu0 0.0
        %991 = vmatpush1.msra.mxu0 0.0
        %992 = vmatprep.subr.mxu0 0.0
        %993 = vmatpush1.msra.mxu0 0.0
        %994 = vmatprep.subr.mxu0 0.0
        %995 = vmatpush1.msra.mxu0 0.0
        %996 = vmatprep.subr.mxu0 0.0
        %997 = vmatpush1.msra.mxu0 0.0
        %998 = vmatprep.subr.mxu0 0.0
        %999 = vmatpush1.msra.mxu0 0.0
        %1000 = vmatprep.subr.mxu0 0.0
        %1001 = vmatpush1.msra.mxu0 0.0
        %1002 = vmatprep.subr.mxu0 0.0
        %1003 = vmatpush1.msra.mxu0 0.0
        %1004 = vmatprep.subr.mxu0 0.0
        %1005 = vmatpush1.msra.mxu0 0.0
        %1006 = vmatprep.subr.mxu0 0.0
        %1007 = vmatpush1.msra.mxu0 0.0
        %1008 = vmatprep.subr.mxu0 0.0
        %1009 = vmatpush1.msra.mxu0 0.0
        %1010 = vmatprep.subr.mxu0 0.0
        %1011 = vmatpush1.msra.mxu0 0.0
        %1012 = vmatprep.subr.mxu0 0.0
        %1013 = vmatpush1.msra.mxu0 0.0
        %1014 = vmatprep.subr.mxu0 0.0
        %1015 = vmatpush1.msra.mxu0 0.0
        %1016 = vmatprep.subr.mxu0 0.0
        %1017 = vmatpush1.msra.mxu0 0.0
        %1018 = vmatprep.subr.mxu0 0.0
        %1019 = vmatpush1.msra.mxu0 0.0
        %1020 = vmatprep.mubr.f32.mxu0 0.0
        %1021 = vmatmul.mubr.f32.gmra.mrb[0].mxu0 %v951
        %v1022 = vpop.f32.mrb[0].mxu0
        %v1023 = vadd.f32 0.0, %v1022
        %v1024 = vpop.f32.mrb[0].mxu0
        %1025 = vmatprep.mubr.f32.mxu0 0.0
        %1026 = vmatmul.mubr.f32.gmra.mrb[0].mxu0 %v954
        %v1027 = vpop.f32.mrb[0].mxu0
        %v1028 = vadd.f32 0.0, %v1027
        %v1029 = vpop.f32.mrb[0].mxu0
        %1030 = vdwg.mxu0
        %s1031 = sadd.s32 %s571, 6
        %s1032 = smul.addr %s1031, 4
        %s1033 = scalar_lea.vmem %s6, %s1032
        %v1034 = vld [vmem:[%s1033] sm:$0xf]
        %v1035 = vld [vmem:[%s1033 + $0x4] sm:$0xf]
        %v1036 = vunpack.c.l.bf16 %v1034
        %v1037 = vunpack.c.l.bf16 %v1035
        %1038 = vmatprep.subr.mxu0 0.0
        %1039 = vmatpush1.msra.mxu0 %v901
        %1040 = vmatprep.subr.mxu0 0.0
        %1041 = vmatpush1.msra.mxu0 0.0
        %1042 = vmatprep.subr.mxu0 0.0
        %1043 = vmatpush1.msra.mxu0 0.0
        %1044 = vmatprep.subr.mxu0 0.0
        %1045 = vmatpush1.msra.mxu0 0.0
        %1046 = vmatprep.subr.mxu0 0.0
        %1047 = vmatpush1.msra.mxu0 0.0
        %1048 = vmatprep.subr.mxu0 0.0
        %1049 = vmatpush1.msra.mxu0 0.0
        %1050 = vmatprep.subr.mxu0 0.0
        %1051 = vmatpush1.msra.mxu0 0.0
        %1052 = vmatprep.subr.mxu0 0.0
        %1053 = vmatpush1.msra.mxu0 0.0
        %1054 = vmatprep.subr.mxu0 0.0
        %1055 = vmatpush1.msra.mxu0 0.0
        %1056 = vmatprep.subr.mxu0 0.0
        %1057 = vmatpush1.msra.mxu0 0.0
        %1058 = vmatprep.subr.mxu0 0.0
        %1059 = vmatpush1.msra.mxu0 0.0
        %1060 = vmatprep.subr.mxu0 0.0
        %1061 = vmatpush1.msra.mxu0 0.0
        %1062 = vmatprep.subr.mxu0 0.0
        %1063 = vmatpush1.msra.mxu0 0.0
        %1064 = vmatprep.subr.mxu0 0.0
        %1065 = vmatpush1.msra.mxu0 0.0
        %1066 = vmatprep.subr.mxu0 0.0
        %1067 = vmatpush1.msra.mxu0 0.0
        %1068 = vmatprep.subr.mxu0 0.0
        %1069 = vmatpush1.msra.mxu0 0.0
        %1070 = vmatprep.subr.mxu0 0.0
        %1071 = vmatpush1.msra.mxu0 0.0
        %1072 = vmatprep.subr.mxu0 0.0
        %1073 = vmatpush1.msra.mxu0 0.0
        %1074 = vmatprep.subr.mxu0 0.0
        %1075 = vmatpush1.msra.mxu0 0.0
        %1076 = vmatprep.subr.mxu0 0.0
        %1077 = vmatpush1.msra.mxu0 0.0
        %1078 = vmatprep.subr.mxu0 0.0
        %1079 = vmatpush1.msra.mxu0 0.0
        %1080 = vmatprep.subr.mxu0 0.0
        %1081 = vmatpush1.msra.mxu0 0.0
        %1082 = vmatprep.subr.mxu0 0.0
        %1083 = vmatpush1.msra.mxu0 0.0
        %1084 = vmatprep.subr.mxu0 0.0
        %1085 = vmatpush1.msra.mxu0 0.0
        %1086 = vmatprep.subr.mxu0 0.0
        %1087 = vmatpush1.msra.mxu0 0.0
        %1088 = vmatprep.subr.mxu0 0.0
        %1089 = vmatpush1.msra.mxu0 0.0
        %1090 = vmatprep.subr.mxu0 0.0
        %1091 = vmatpush1.msra.mxu0 0.0
        %1092 = vmatprep.subr.mxu0 0.0
        %1093 = vmatpush1.msra.mxu0 0.0
        %1094 = vmatprep.subr.mxu0 0.0
        %1095 = vmatpush1.msra.mxu0 0.0
        %1096 = vmatprep.subr.mxu0 0.0
        %1097 = vmatpush1.msra.mxu0 0.0
        %1098 = vmatprep.subr.mxu0 0.0
        %1099 = vmatpush1.msra.mxu0 0.0
        %1100 = vmatprep.subr.mxu0 0.0
        %1101 = vmatpush1.msra.mxu0 0.0
        %1102 = vmatprep.mubr.f32.mxu0 0.0
        %1103 = vmatmul.mubr.f32.gmra.mrb[0].mxu0 %v581
        %v1104 = vpop.f32.mrb[0].mxu0
        %v1105 = vadd.f32 %v1023, %v1104
        %v1106 = vpop.f32.mrb[0].mxu0
        %1107 = vmatprep.mubr.f32.mxu0 0.0
        %1108 = vmatmul.mubr.f32.gmra.mrb[0].mxu0 %v584
        %v1109 = vpop.f32.mrb[0].mxu0
        %v1110 = vadd.f32 %v1028, %v1109
        %v1111 = vpop.f32.mrb[0].mxu0
        %1112 = vdwg.mxu0
        %v1113 = vadd.f32 %v1105, %v1036
        %v1114 = vadd.f32 %v1110, %v1037
        %v1115 = vpack.c.bf16 %v1114, %v1113
        %v1117 = vunpack.c.l.b16 %v1115
        %v1118 = vunpack.c.h.b16 %v1115
        %v1119 = vpack.c.b16 %v1117, %v1117
        %v1120 = vpack.c.b16 %v1118, %v1118
        %s1123 = scalar_lea.vmem %s367, 16 [#allocation7]
        %1124 = vst.msk [vmem:[%s1123] sm:$0xf] %vm671, %v1119
        %1125 = vst.msk [vmem:[%s1123 + $0x4] sm:$0xf] %vm671, %v1120
        %s1126 = scalar_lea.vmem %s320, 24 [#allocation2]
        %v1127 = vld [vmem:[%s1126] sm:$0xff]
        %v1128 = vlaneseq
        %v1129 = vshrl.u32 %v1128, 7
        %v1130 = vsub.s32 3, %v1129
        %v1131 = vrot.slane %v385, %v1130
        %v1132 = vmul.f32 %v404, %v1131
        %v1133 = vmul.f32 %v409, %v1131
        %v1134 = vmul.f32 %v414, %v1131
        %v1135 = vmul.f32 %v419, %v1131
        %v1136 = vadd.f32 %v1132, %v432
        %v1137 = vadd.f32 %v1133, %v437
        %v1138 = vadd.f32 %v1134, %v442
        %v1139 = vadd.f32 %v1135, %v447
        %v1140 = vmax.f32 %v1136, 0.0
        %v1141 = vmax.f32 %v1137, 0.0
        %v1142 = vmax.f32 %v1138, 0.0
        %v1143 = vmax.f32 %v1139, 0.0
        %1144 = vxpose.xlu0.b32.start [1/16] %v1140, 128
        %1145 = vxpose.xlu0.b32.cont [2/16] %v1141, 128
        %1146 = vxpose.xlu0.b32.cont [3/16] %v1142, 128
        %1147 = vxpose.xlu0.b32.cont [4/16] %v1143, 128
        %1148 = vxpose.xlu0.b32.cont [5/16] 0.0, 128
        %1149 = vxpose.xlu0.b32.cont [6/16] 0.0, 128
        %1150 = vxpose.xlu0.b32.cont [7/16] 0.0, 128
        %1151 = vxpose.xlu0.b32.cont [8/16] 0.0, 128
        %1152 = vxpose.xlu0.b32.cont [9/16] 0.0, 128
        %1153 = vxpose.xlu0.b32.cont [10/16] 0.0, 128
        %1154 = vxpose.xlu0.b32.cont [11/16] 0.0, 128
        %1155 = vxpose.xlu0.b32.cont [12/16] 0.0, 128
        %1156 = vxpose.xlu0.b32.cont [13/16] 0.0, 128
        %1157 = vxpose.xlu0.b32.cont [14/16] 0.0, 128
        %1158 = vxpose.xlu0.b32.cont [15/16] 0.0, 128
        %1159 = vxpose.xlu0.b32.end [16/16] 0.0, 128
        %v1160 = vpop.trf.xlu0
        %v1161 = vpop.trf.xlu0
        %v1162 = vpop.trf.xlu0
        %v1163 = vpop.trf.xlu0
        %v1164 = vpop.trf.xlu0
        %v1165 = vpop.trf.xlu0
        %v1166 = vpop.trf.xlu0
        %v1167 = vpop.trf.xlu0
        %v1168 = vpop.trf.xlu0
        %v1169 = vpop.trf.xlu0
        %v1170 = vpop.trf.xlu0
        %v1171 = vpop.trf.xlu0
        %v1172 = vpop.trf.xlu0
        %v1173 = vpop.trf.xlu0
        %v1174 = vpop.trf.xlu0
        %v1175 = vpop.trf.xlu0
        %v1177 = vsel %vm489, %v1160, 0
        %v1180 = vsel %vm489, %v1161, 0
        %1182 = vmatprep.subr.mxu0 0.0
        %1183 = vmatpush1.msra.mxu0 %v394
        %1184 = vmatprep.subr.mxu0 0.0
        %1185 = vmatpush1.msra.mxu0 %v395
        %1186 = vmatprep.subr.mxu0 0.0
        %1187 = vmatpush1.msra.mxu0 %v396
        %1188 = vmatprep.subr.mxu0 0.0
        %1189 = vmatpush1.msra.mxu0 %v397
        %1190 = vmatprep.subr.mxu0 0.0
        %1191 = vmatpush1.msra.mxu0 0.0
        %1192 = vmatprep.subr.mxu0 0.0
        %1193 = vmatpush1.msra.mxu0 0.0
        %1194 = vmatprep.subr.mxu0 0.0
        %1195 = vmatpush1.msra.mxu0 0.0
        %1196 = vmatprep.subr.mxu0 0.0
        %1197 = vmatpush1.msra.mxu0 0.0
        %1198 = vmatprep.subr.mxu0 0.0
        %1199 = vmatpush1.msra.mxu0 0.0
        %1200 = vmatprep.subr.mxu0 0.0
        %1201 = vmatpush1.msra.mxu0 0.0
        %1202 = vmatprep.subr.mxu0 0.0
        %1203 = vmatpush1.msra.mxu0 0.0
        %1204 = vmatprep.subr.mxu0 0.0
        %1205 = vmatpush1.msra.mxu0 0.0
        %1206 = vmatprep.subr.mxu0 0.0
        %1207 = vmatpush1.msra.mxu0 0.0
        %1208 = vmatprep.subr.mxu0 0.0
        %1209 = vmatpush1.msra.mxu0 0.0
        %1210 = vmatprep.subr.mxu0 0.0
        %1211 = vmatpush1.msra.mxu0 0.0
        %1212 = vmatprep.subr.mxu0 0.0
        %1213 = vmatpush1.msra.mxu0 0.0
        %1214 = vmatprep.subr.mxu0 0.0
        %1215 = vmatpush1.msra.mxu0 0.0
        %1216 = vmatprep.subr.mxu0 0.0
        %1217 = vmatpush1.msra.mxu0 0.0
        %1218 = vmatprep.subr.mxu0 0.0
        %1219 = vmatpush1.msra.mxu0 0.0
        %1220 = vmatprep.subr.mxu0 0.0
        %1221 = vmatpush1.msra.mxu0 0.0
        %1222 = vmatprep.subr.mxu0 0.0
        %1223 = vmatpush1.msra.mxu0 0.0
        %1224 = vmatprep.subr.mxu0 0.0
        %1225 = vmatpush1.msra.mxu0 0.0
        %1226 = vmatprep.subr.mxu0 0.0
        %1227 = vmatpush1.msra.mxu0 0.0
        %1228 = vmatprep.subr.mxu0 0.0
        %1229 = vmatpush1.msra.mxu0 0.0
        %1230 = vmatprep.subr.mxu0 0.0
        %1231 = vmatpush1.msra.mxu0 0.0
        %1232 = vmatprep.subr.mxu0 0.0
        %1233 = vmatpush1.msra.mxu0 0.0
        %1234 = vmatprep.subr.mxu0 0.0
        %1235 = vmatpush1.msra.mxu0 0.0
        %1236 = vmatprep.subr.mxu0 0.0
        %1237 = vmatpush1.msra.mxu0 0.0
        %1238 = vmatprep.subr.mxu0 0.0
        %1239 = vmatpush1.msra.mxu0 0.0
        %1240 = vmatprep.subr.mxu0 0.0
        %1241 = vmatpush1.msra.mxu0 0.0
        %1242 = vmatprep.subr.mxu0 0.0
        %1243 = vmatpush1.msra.mxu0 0.0
        %1244 = vmatprep.subr.mxu0 0.0
        %1245 = vmatpush1.msra.mxu0 0.0
        %1246 = vmatprep.mubr.f32.mxu0 0.0
        %1247 = vmatmul.mubr.f32.gmra.mrb[0].mxu0 %v1177
        %v1248 = vpop.f32.mrb[0].mxu0
        %v1249 = vadd.f32 0.0, %v1248
        %v1250 = vpop.f32.mrb[0].mxu0
        %1251 = vmatprep.mubr.f32.mxu0 0.0
        %1252 = vmatmul.mubr.f32.gmra.mrb[0].mxu0 %v1180
        %v1253 = vpop.f32.mrb[0].mxu0
        %v1254 = vadd.f32 0.0, %v1253
        %v1255 = vpop.f32.mrb[0].mxu0
        %1256 = vdwg.mxu0
        %s1257 = sadd.s32 %s571, 9
        %s1258 = smul.addr %s1257, 4
        %s1259 = scalar_lea.vmem %s6, %s1258
        %v1260 = vld [vmem:[%s1259] sm:$0xf]
        %v1261 = vld [vmem:[%s1259 + $0x4] sm:$0xf]
        %v1262 = vunpack.c.l.bf16 %v1260
        %v1263 = vunpack.c.l.bf16 %v1261
        %1264 = vmatprep.subr.mxu0 0.0
        %1265 = vmatpush1.msra.mxu0 %v1127
        %1266 = vmatprep.subr.mxu0 0.0
        %1267 = vmatpush1.msra.mxu0 0.0
        %1268 = vmatprep.subr.mxu0 0.0
        %1269 = vmatpush1.msra.mxu0 0.0
        %1270 = vmatprep.subr.mxu0 0.0
        %1271 = vmatpush1.msra.mxu0 0.0
        %1272 = vmatprep.subr.mxu0 0.0
        %1273 = vmatpush1.msra.mxu0 0.0
        %1274 = vmatprep.subr.mxu0 0.0
        %1275 = vmatpush1.msra.mxu0 0.0
        %1276 = vmatprep.subr.mxu0 0.0
        %1277 = vmatpush1.msra.mxu0 0.0
        %1278 = vmatprep.subr.mxu0 0.0
        %1279 = vmatpush1.msra.mxu0 0.0
        %1280 = vmatprep.subr.mxu0 0.0
        %1281 = vmatpush1.msra.mxu0 0.0
        %1282 = vmatprep.subr.mxu0 0.0
        %1283 = vmatpush1.msra.mxu0 0.0
        %1284 = vmatprep.subr.mxu0 0.0
        %1285 = vmatpush1.msra.mxu0 0.0
        %1286 = vmatprep.subr.mxu0 0.0
        %1287 = vmatpush1.msra.mxu0 0.0
        %1288 = vmatprep.subr.mxu0 0.0
        %1289 = vmatpush1.msra.mxu0 0.0
        %1290 = vmatprep.subr.mxu0 0.0
        %1291 = vmatpush1.msra.mxu0 0.0
        %1292 = vmatprep.subr.mxu0 0.0
        %1293 = vmatpush1.msra.mxu0 0.0
        %1294 = vmatprep.subr.mxu0 0.0
        %1295 = vmatpush1.msra.mxu0 0.0
        %1296 = vmatprep.subr.mxu0 0.0
        %1297 = vmatpush1.msra.mxu0 0.0
        %1298 = vmatprep.subr.mxu0 0.0
        %1299 = vmatpush1.msra.mxu0 0.0
        %1300 = vmatprep.subr.mxu0 0.0
        %1301 = vmatpush1.msra.mxu0 0.0
        %1302 = vmatprep.subr.mxu0 0.0
        %1303 = vmatpush1.msra.mxu0 0.0
        %1304 = vmatprep.subr.mxu0 0.0
        %1305 = vmatpush1.msra.mxu0 0.0
        %1306 = vmatprep.subr.mxu0 0.0
        %1307 = vmatpush1.msra.mxu0 0.0
        %1308 = vmatprep.subr.mxu0 0.0
        %1309 = vmatpush1.msra.mxu0 0.0
        %1310 = vmatprep.subr.mxu0 0.0
        %1311 = vmatpush1.msra.mxu0 0.0
        %1312 = vmatprep.subr.mxu0 0.0
        %1313 = vmatpush1.msra.mxu0 0.0
        %1314 = vmatprep.subr.mxu0 0.0
        %1315 = vmatpush1.msra.mxu0 0.0
        %1316 = vmatprep.subr.mxu0 0.0
        %1317 = vmatpush1.msra.mxu0 0.0
        %1318 = vmatprep.subr.mxu0 0.0
        %1319 = vmatpush1.msra.mxu0 0.0
        %1320 = vmatprep.subr.mxu0 0.0
        %1321 = vmatpush1.msra.mxu0 0.0
        %1322 = vmatprep.subr.mxu0 0.0
        %1323 = vmatpush1.msra.mxu0 0.0
        %1324 = vmatprep.subr.mxu0 0.0
        %1325 = vmatpush1.msra.mxu0 0.0
        %1326 = vmatprep.subr.mxu0 0.0
        %1327 = vmatpush1.msra.mxu0 0.0
        %1328 = vmatprep.mubr.f32.mxu0 0.0
        %1329 = vmatmul.mubr.f32.gmra.mrb[0].mxu0 %v581
        %v1330 = vpop.f32.mrb[0].mxu0
        %v1331 = vadd.f32 %v1249, %v1330
        %v1332 = vpop.f32.mrb[0].mxu0
        %1333 = vmatprep.mubr.f32.mxu0 0.0
        %1334 = vmatmul.mubr.f32.gmra.mrb[0].mxu0 %v584
        %v1335 = vpop.f32.mrb[0].mxu0
        %v1336 = vadd.f32 %v1254, %v1335
        %v1337 = vpop.f32.mrb[0].mxu0
        %1338 = vdwg.mxu0
        %v1339 = vadd.f32 %v1331, %v1262
        %v1340 = vadd.f32 %v1336, %v1263
        %v1341 = vpack.c.bf16 %v1340, %v1339
        %v1343 = vunpack.c.l.b16 %v1341
        %v1344 = vunpack.c.h.b16 %v1341
        %v1345 = vpack.c.b16 %v1343, %v1343
        %v1346 = vpack.c.b16 %v1344, %v1344
        %s1349 = scalar_lea.vmem %s367, 24 [#allocation7]
        %1350 = vst.msk [vmem:[%s1349] sm:$0xf] %vm671, %v1345
        %1351 = vst.msk [vmem:[%s1349 + $0x4] sm:$0xf] %vm671, %v1346
        %s1352 = scalar_lea.vmem %s320, 32 [#allocation2]
        %v1353 = vld [vmem:[%s1352] sm:$0xff]
        %v1354 = vlaneseq
        %v1355 = vshrl.u32 %v1354, 7
        %v1356 = vsub.s32 4, %v1355
        %v1357 = vrot.slane %v385, %v1356
        %v1358 = vmul.f32 %v404, %v1357
        %v1359 = vmul.f32 %v409, %v1357
        %v1360 = vmul.f32 %v414, %v1357
        %v1361 = vmul.f32 %v419, %v1357
        %v1362 = vadd.f32 %v1358, %v432
        %v1363 = vadd.f32 %v1359, %v437
        %v1364 = vadd.f32 %v1360, %v442
        %v1365 = vadd.f32 %v1361, %v447
        %v1366 = vmax.f32 %v1362, 0.0
        %v1367 = vmax.f32 %v1363, 0.0
        %v1368 = vmax.f32 %v1364, 0.0
        %v1369 = vmax.f32 %v1365, 0.0
        %1370 = vxpose.xlu0.b32.start [1/16] %v1366, 128
        %1371 = vxpose.xlu0.b32.cont [2/16] %v1367, 128
        %1372 = vxpose.xlu0.b32.cont [3/16] %v1368, 128
        %1373 = vxpose.xlu0.b32.cont [4/16] %v1369, 128
        %1374 = vxpose.xlu0.b32.cont [5/16] 0.0, 128
        %1375 = vxpose.xlu0.b32.cont [6/16] 0.0, 128
        %1376 = vxpose.xlu0.b32.cont [7/16] 0.0, 128
        %1377 = vxpose.xlu0.b32.cont [8/16] 0.0, 128
        %1378 = vxpose.xlu0.b32.cont [9/16] 0.0, 128
        %1379 = vxpose.xlu0.b32.cont [10/16] 0.0, 128
        %1380 = vxpose.xlu0.b32.cont [11/16] 0.0, 128
        %1381 = vxpose.xlu0.b32.cont [12/16] 0.0, 128
        %1382 = vxpose.xlu0.b32.cont [13/16] 0.0, 128
        %1383 = vxpose.xlu0.b32.cont [14/16] 0.0, 128
        %1384 = vxpose.xlu0.b32.cont [15/16] 0.0, 128
        %1385 = vxpose.xlu0.b32.end [16/16] 0.0, 128
        %v1386 = vpop.trf.xlu0
        %v1387 = vpop.trf.xlu0
        %v1388 = vpop.trf.xlu0
        %v1389 = vpop.trf.xlu0
        %v1390 = vpop.trf.xlu0
        %v1391 = vpop.trf.xlu0
        %v1392 = vpop.trf.xlu0
        %v1393 = vpop.trf.xlu0
        %v1394 = vpop.trf.xlu0
        %v1395 = vpop.trf.xlu0
        %v1396 = vpop.trf.xlu0
        %v1397 = vpop.trf.xlu0
        %v1398 = vpop.trf.xlu0
        %v1399 = vpop.trf.xlu0
        %v1400 = vpop.trf.xlu0
        %v1401 = vpop.trf.xlu0
        %v1403 = vsel %vm489, %v1386, 0
        %v1406 = vsel %vm489, %v1387, 0
        %1408 = vmatprep.subr.mxu0 0.0
        %1409 = vmatpush1.msra.mxu0 %v394
        %1410 = vmatprep.subr.mxu0 0.0
        %1411 = vmatpush1.msra.mxu0 %v395
        %1412 = vmatprep.subr.mxu0 0.0
        %1413 = vmatpush1.msra.mxu0 %v396
        %1414 = vmatprep.subr.mxu0 0.0
        %1415 = vmatpush1.msra.mxu0 %v397
        %1416 = vmatprep.subr.mxu0 0.0
        %1417 = vmatpush1.msra.mxu0 0.0
        %1418 = vmatprep.subr.mxu0 0.0
        %1419 = vmatpush1.msra.mxu0 0.0
        %1420 = vmatprep.subr.mxu0 0.0
        %1421 = vmatpush1.msra.mxu0 0.0
        %1422 = vmatprep.subr.mxu0 0.0
        %1423 = vmatpush1.msra.mxu0 0.0
        %1424 = vmatprep.subr.mxu0 0.0
        %1425 = vmatpush1.msra.mxu0 0.0
        %1426 = vmatprep.subr.mxu0 0.0
        %1427 = vmatpush1.msra.mxu0 0.0
        %1428 = vmatprep.subr.mxu0 0.0
        %1429 = vmatpush1.msra.mxu0 0.0
        %1430 = vmatprep.subr.mxu0 0.0
        %1431 = vmatpush1.msra.mxu0 0.0
        %1432 = vmatprep.subr.mxu0 0.0
        %1433 = vmatpush1.msra.mxu0 0.0
        %1434 = vmatprep.subr.mxu0 0.0
        %1435 = vmatpush1.msra.mxu0 0.0
        %1436 = vmatprep.subr.mxu0 0.0
        %1437 = vmatpush1.msra.mxu0 0.0
        %1438 = vmatprep.subr.mxu0 0.0
        %1439 = vmatpush1.msra.mxu0 0.0
        %1440 = vmatprep.subr.mxu0 0.0
        %1441 = vmatpush1.msra.mxu0 0.0
        %1442 = vmatprep.subr.mxu0 0.0
        %1443 = vmatpush1.msra.mxu0 0.0
        %1444 = vmatprep.subr.mxu0 0.0
        %1445 = vmatpush1.msra.mxu0 0.0
        %1446 = vmatprep.subr.mxu0 0.0
        %1447 = vmatpush1.msra.mxu0 0.0
        %1448 = vmatprep.subr.mxu0 0.0
        %1449 = vmatpush1.msra.mxu0 0.0
        %1450 = vmatprep.subr.mxu0 0.0
        %1451 = vmatpush1.msra.mxu0 0.0
        %1452 = vmatprep.subr.mxu0 0.0
        %1453 = vmatpush1.msra.mxu0 0.0
        %1454 = vmatprep.subr.mxu0 0.0
        %1455 = vmatpush1.msra.mxu0 0.0
        %1456 = vmatprep.subr.mxu0 0.0
        %1457 = vmatpush1.msra.mxu0 0.0
        %1458 = vmatprep.subr.mxu0 0.0
        %1459 = vmatpush1.msra.mxu0 0.0
        %1460 = vmatprep.subr.mxu0 0.0
        %1461 = vmatpush1.msra.mxu0 0.0
        %1462 = vmatprep.subr.mxu0 0.0
        %1463 = vmatpush1.msra.mxu0 0.0
        %1464 = vmatprep.subr.mxu0 0.0
        %1465 = vmatpush1.msra.mxu0 0.0
        %1466 = vmatprep.subr.mxu0 0.0
        %1467 = vmatpush1.msra.mxu0 0.0
        %1468 = vmatprep.subr.mxu0 0.0
        %1469 = vmatpush1.msra.mxu0 0.0
        %1470 = vmatprep.subr.mxu0 0.0
        %1471 = vmatpush1.msra.mxu0 0.0
        %1472 = vmatprep.mubr.f32.mxu0 0.0
        %1473 = vmatmul.mubr.f32.gmra.mrb[0].mxu0 %v1403
        %v1474 = vpop.f32.mrb[0].mxu0
        %v1475 = vadd.f32 0.0, %v1474
        %v1476 = vpop.f32.mrb[0].mxu0
        %1477 = vmatprep.mubr.f32.mxu0 0.0
        %1478 = vmatmul.mubr.f32.gmra.mrb[0].mxu0 %v1406
        %v1479 = vpop.f32.mrb[0].mxu0
        %v1480 = vadd.f32 0.0, %v1479
        %v1481 = vpop.f32.mrb[0].mxu0
        %1482 = vdwg.mxu0
        %s1483 = sadd.s32 %s571, 12
        %s1484 = smul.addr %s1483, 4
        %s1485 = scalar_lea.vmem %s6, %s1484
        %v1486 = vld [vmem:[%s1485] sm:$0xf]
        %v1487 = vld [vmem:[%s1485 + $0x4] sm:$0xf]
        %v1488 = vunpack.c.l.bf16 %v1486
        %v1489 = vunpack.c.l.bf16 %v1487
        %1490 = vmatprep.subr.mxu0 0.0
        %1491 = vmatpush1.msra.mxu0 %v1353
        %1492 = vmatprep.subr.mxu0 0.0
        %1493 = vmatpush1.msra.mxu0 0.0
        %1494 = vmatprep.subr.mxu0 0.0
        %1495 = vmatpush1.msra.mxu0 0.0
        %1496 = vmatprep.subr.mxu0 0.0
        %1497 = vmatpush1.msra.mxu0 0.0
        %1498 = vmatprep.subr.mxu0 0.0
        %1499 = vmatpush1.msra.mxu0 0.0
        %1500 = vmatprep.subr.mxu0 0.0
        %1501 = vmatpush1.msra.mxu0 0.0
        %1502 = vmatprep.subr.mxu0 0.0
        %1503 = vmatpush1.msra.mxu0 0.0
        %1504 = vmatprep.subr.mxu0 0.0
        %1505 = vmatpush1.msra.mxu0 0.0
        %1506 = vmatprep.subr.mxu0 0.0
        %1507 = vmatpush1.msra.mxu0 0.0
        %1508 = vmatprep.subr.mxu0 0.0
        %1509 = vmatpush1.msra.mxu0 0.0
        %1510 = vmatprep.subr.mxu0 0.0
        %1511 = vmatpush1.msra.mxu0 0.0
        %1512 = vmatprep.subr.mxu0 0.0
        %1513 = vmatpush1.msra.mxu0 0.0
        %1514 = vmatprep.subr.mxu0 0.0
        %1515 = vmatpush1.msra.mxu0 0.0
        %1516 = vmatprep.subr.mxu0 0.0
        %1517 = vmatpush1.msra.mxu0 0.0
        %1518 = vmatprep.subr.mxu0 0.0
        %1519 = vmatpush1.msra.mxu0 0.0
        %1520 = vmatprep.subr.mxu0 0.0
        %1521 = vmatpush1.msra.mxu0 0.0
        %1522 = vmatprep.subr.mxu0 0.0
        %1523 = vmatpush1.msra.mxu0 0.0
        %1524 = vmatprep.subr.mxu0 0.0
        %1525 = vmatpush1.msra.mxu0 0.0
        %1526 = vmatprep.subr.mxu0 0.0
        %1527 = vmatpush1.msra.mxu0 0.0
        %1528 = vmatprep.subr.mxu0 0.0
        %1529 = vmatpush1.msra.mxu0 0.0
        %1530 = vmatprep.subr.mxu0 0.0
        %1531 = vmatpush1.msra.mxu0 0.0
        %1532 = vmatprep.subr.mxu0 0.0
        %1533 = vmatpush1.msra.mxu0 0.0
        %1534 = vmatprep.subr.mxu0 0.0
        %1535 = vmatpush1.msra.mxu0 0.0
        %1536 = vmatprep.subr.mxu0 0.0
        %1537 = vmatpush1.msra.mxu0 0.0
        %1538 = vmatprep.subr.mxu0 0.0
        %1539 = vmatpush1.msra.mxu0 0.0
        %1540 = vmatprep.subr.mxu0 0.0
        %1541 = vmatpush1.msra.mxu0 0.0
        %1542 = vmatprep.subr.mxu0 0.0
        %1543 = vmatpush1.msra.mxu0 0.0
        %1544 = vmatprep.subr.mxu0 0.0
        %1545 = vmatpush1.msra.mxu0 0.0
        %1546 = vmatprep.subr.mxu0 0.0
        %1547 = vmatpush1.msra.mxu0 0.0
        %1548 = vmatprep.subr.mxu0 0.0
        %1549 = vmatpush1.msra.mxu0 0.0
        %1550 = vmatprep.subr.mxu0 0.0
        %1551 = vmatpush1.msra.mxu0 0.0
        %1552 = vmatprep.subr.mxu0 0.0
        %1553 = vmatpush1.msra.mxu0 0.0
        %1554 = vmatprep.mubr.f32.mxu0 0.0
        %1555 = vmatmul.mubr.f32.gmra.mrb[0].mxu0 %v581
        %v1556 = vpop.f32.mrb[0].mxu0
        %v1557 = vadd.f32 %v1475, %v1556
        %v1558 = vpop.f32.mrb[0].mxu0
        %1559 = vmatprep.mubr.f32.mxu0 0.0
        %1560 = vmatmul.mubr.f32.gmra.mrb[0].mxu0 %v584
        %v1561 = vpop.f32.mrb[0].mxu0
        %v1562 = vadd.f32 %v1480, %v1561
        %v1563 = vpop.f32.mrb[0].mxu0
        %1564 = vdwg.mxu0
        %v1565 = vadd.f32 %v1557, %v1488
        %v1566 = vadd.f32 %v1562, %v1489
        %v1567 = vpack.c.bf16 %v1566, %v1565
        %v1569 = vunpack.c.l.b16 %v1567
        %v1570 = vunpack.c.h.b16 %v1567
        %v1571 = vpack.c.b16 %v1569, %v1569
        %v1572 = vpack.c.b16 %v1570, %v1570
        %s1575 = scalar_lea.vmem %s367, 32 [#allocation7]
        %1576 = vst.msk [vmem:[%s1575] sm:$0xf] %vm671, %v1571
        %1577 = vst.msk [vmem:[%s1575 + $0x4] sm:$0xf] %vm671, %v1572
        %s1578 = scalar_lea.vmem %s320, 40 [#allocation2]
        %v1579 = vld [vmem:[%s1578] sm:$0xff]
        %v1580 = vlaneseq
        %v1581 = vshrl.u32 %v1580, 7
        %v1582 = vsub.s32 5, %v1581
        %v1583 = vrot.slane %v385, %v1582
        %v1584 = vmul.f32 %v404, %v1583
        %v1585 = vmul.f32 %v409, %v1583
        %v1586 = vmul.f32 %v414, %v1583
        %v1587 = vmul.f32 %v419, %v1583
        %v1588 = vadd.f32 %v1584, %v432
        %v1589 = vadd.f32 %v1585, %v437
        %v1590 = vadd.f32 %v1586, %v442
        %v1591 = vadd.f32 %v1587, %v447
        %v1592 = vmax.f32 %v1588, 0.0
        %v1593 = vmax.f32 %v1589, 0.0
        %v1594 = vmax.f32 %v1590, 0.0
        %v1595 = vmax.f32 %v1591, 0.0
        %1596 = vxpose.xlu0.b32.start [1/16] %v1592, 128
        %1597 = vxpose.xlu0.b32.cont [2/16] %v1593, 128
        %1598 = vxpose.xlu0.b32.cont [3/16] %v1594, 128
        %1599 = vxpose.xlu0.b32.cont [4/16] %v1595, 128
        %1600 = vxpose.xlu0.b32.cont [5/16] 0.0, 128
        %1601 = vxpose.xlu0.b32.cont [6/16] 0.0, 128
        %1602 = vxpose.xlu0.b32.cont [7/16] 0.0, 128
        %1603 = vxpose.xlu0.b32.cont [8/16] 0.0, 128
        %1604 = vxpose.xlu0.b32.cont [9/16] 0.0, 128
        %1605 = vxpose.xlu0.b32.cont [10/16] 0.0, 128
        %1606 = vxpose.xlu0.b32.cont [11/16] 0.0, 128
        %1607 = vxpose.xlu0.b32.cont [12/16] 0.0, 128
        %1608 = vxpose.xlu0.b32.cont [13/16] 0.0, 128
        %1609 = vxpose.xlu0.b32.cont [14/16] 0.0, 128
        %1610 = vxpose.xlu0.b32.cont [15/16] 0.0, 128
        %1611 = vxpose.xlu0.b32.end [16/16] 0.0, 128
        %v1612 = vpop.trf.xlu0
        %v1613 = vpop.trf.xlu0
        %v1614 = vpop.trf.xlu0
        %v1615 = vpop.trf.xlu0
        %v1616 = vpop.trf.xlu0
        %v1617 = vpop.trf.xlu0
        %v1618 = vpop.trf.xlu0
        %v1619 = vpop.trf.xlu0
        %v1620 = vpop.trf.xlu0
        %v1621 = vpop.trf.xlu0
        %v1622 = vpop.trf.xlu0
        %v1623 = vpop.trf.xlu0
        %v1624 = vpop.trf.xlu0
        %v1625 = vpop.trf.xlu0
        %v1626 = vpop.trf.xlu0
        %v1627 = vpop.trf.xlu0
        %v1629 = vsel %vm489, %v1612, 0
        %v1632 = vsel %vm489, %v1613, 0
        %1634 = vmatprep.subr.mxu0 0.0
        %1635 = vmatpush1.msra.mxu0 %v394
        %1636 = vmatprep.subr.mxu0 0.0
        %1637 = vmatpush1.msra.mxu0 %v395
        %1638 = vmatprep.subr.mxu0 0.0
        %1639 = vmatpush1.msra.mxu0 %v396
        %1640 = vmatprep.subr.mxu0 0.0
        %1641 = vmatpush1.msra.mxu0 %v397
        %1642 = vmatprep.subr.mxu0 0.0
        %1643 = vmatpush1.msra.mxu0 0.0
        %1644 = vmatprep.subr.mxu0 0.0
        %1645 = vmatpush1.msra.mxu0 0.0
        %1646 = vmatprep.subr.mxu0 0.0
        %1647 = vmatpush1.msra.mxu0 0.0
        %1648 = vmatprep.subr.mxu0 0.0
        %1649 = vmatpush1.msra.mxu0 0.0
        %1650 = vmatprep.subr.mxu0 0.0
        %1651 = vmatpush1.msra.mxu0 0.0
        %1652 = vmatprep.subr.mxu0 0.0
        %1653 = vmatpush1.msra.mxu0 0.0
        %1654 = vmatprep.subr.mxu0 0.0
        %1655 = vmatpush1.msra.mxu0 0.0
        %1656 = vmatprep.subr.mxu0 0.0
        %1657 = vmatpush1.msra.mxu0 0.0
        %1658 = vmatprep.subr.mxu0 0.0
        %1659 = vmatpush1.msra.mxu0 0.0
        %1660 = vmatprep.subr.mxu0 0.0
        %1661 = vmatpush1.msra.mxu0 0.0
        %1662 = vmatprep.subr.mxu0 0.0
        %1663 = vmatpush1.msra.mxu0 0.0
        %1664 = vmatprep.subr.mxu0 0.0
        %1665 = vmatpush1.msra.mxu0 0.0
        %1666 = vmatprep.subr.mxu0 0.0
        %1667 = vmatpush1.msra.mxu0 0.0
        %1668 = vmatprep.subr.mxu0 0.0
        %1669 = vmatpush1.msra.mxu0 0.0
        %1670 = vmatprep.subr.mxu0 0.0
        %1671 = vmatpush1.msra.mxu0 0.0
        %1672 = vmatprep.subr.mxu0 0.0
        %1673 = vmatpush1.msra.mxu0 0.0
        %1674 = vmatprep.subr.mxu0 0.0
        %1675 = vmatpush1.msra.mxu0 0.0
        %1676 = vmatprep.subr.mxu0 0.0
        %1677 = vmatpush1.msra.mxu0 0.0
        %1678 = vmatprep.subr.mxu0 0.0
        %1679 = vmatpush1.msra.mxu0 0.0
        %1680 = vmatprep.subr.mxu0 0.0
        %1681 = vmatpush1.msra.mxu0 0.0
        %1682 = vmatprep.subr.mxu0 0.0
        %1683 = vmatpush1.msra.mxu0 0.0
        %1684 = vmatprep.subr.mxu0 0.0
        %1685 = vmatpush1.msra.mxu0 0.0
        %1686 = vmatprep.subr.mxu0 0.0
        %1687 = vmatpush1.msra.mxu0 0.0
        %1688 = vmatprep.subr.mxu0 0.0
        %1689 = vmatpush1.msra.mxu0 0.0
        %1690 = vmatprep.subr.mxu0 0.0
        %1691 = vmatpush1.msra.mxu0 0.0
        %1692 = vmatprep.subr.mxu0 0.0
        %1693 = vmatpush1.msra.mxu0 0.0
        %1694 = vmatprep.subr.mxu0 0.0
        %1695 = vmatpush1.msra.mxu0 0.0
        %1696 = vmatprep.subr.mxu0 0.0
        %1697 = vmatpush1.msra.mxu0 0.0
        %1698 = vmatprep.mubr.f32.mxu0 0.0
        %1699 = vmatmul.mubr.f32.gmra.mrb[0].mxu0 %v1629
        %v1700 = vpop.f32.mrb[0].mxu0
        %v1701 = vadd.f32 0.0, %v1700
        %v1702 = vpop.f32.mrb[0].mxu0
        %1703 = vmatprep.mubr.f32.mxu0 0.0
        %1704 = vmatmul.mubr.f32.gmra.mrb[0].mxu0 %v1632
        %v1705 = vpop.f32.mrb[0].mxu0
        %v1706 = vadd.f32 0.0, %v1705
        %v1707 = vpop.f32.mrb[0].mxu0
        %1708 = vdwg.mxu0
        %s1709 = sadd.s32 %s571, 15
        %s1710 = smul.addr %s1709, 4
        %s1711 = scalar_lea.vmem %s6, %s1710
        %v1712 = vld [vmem:[%s1711] sm:$0xf]
        %v1713 = vld [vmem:[%s1711 + $0x4] sm:$0xf]
        %v1714 = vunpack.c.l.bf16 %v1712
        %v1715 = vunpack.c.l.bf16 %v1713
        %1716 = vmatprep.subr.mxu0 0.0
        %1717 = vmatpush1.msra.mxu0 %v1579
        %1718 = vmatprep.subr.mxu0 0.0
        %1719 = vmatpush1.msra.mxu0 0.0
        %1720 = vmatprep.subr.mxu0 0.0
        %1721 = vmatpush1.msra.mxu0 0.0
        %1722 = vmatprep.subr.mxu0 0.0
        %1723 = vmatpush1.msra.mxu0 0.0
        %1724 = vmatprep.subr.mxu0 0.0
        %1725 = vmatpush1.msra.mxu0 0.0
        %1726 = vmatprep.subr.mxu0 0.0
        %1727 = vmatpush1.msra.mxu0 0.0
        %1728 = vmatprep.subr.mxu0 0.0
        %1729 = vmatpush1.msra.mxu0 0.0
        %1730 = vmatprep.subr.mxu0 0.0
        %1731 = vmatpush1.msra.mxu0 0.0
        %1732 = vmatprep.subr.mxu0 0.0
        %1733 = vmatpush1.msra.mxu0 0.0
        %1734 = vmatprep.subr.mxu0 0.0
        %1735 = vmatpush1.msra.mxu0 0.0
        %1736 = vmatprep.subr.mxu0 0.0
        %1737 = vmatpush1.msra.mxu0 0.0
        %1738 = vmatprep.subr.mxu0 0.0
        %1739 = vmatpush1.msra.mxu0 0.0
        %1740 = vmatprep.subr.mxu0 0.0
        %1741 = vmatpush1.msra.mxu0 0.0
        %1742 = vmatprep.subr.mxu0 0.0
        %1743 = vmatpush1.msra.mxu0 0.0
        %1744 = vmatprep.subr.mxu0 0.0
        %1745 = vmatpush1.msra.mxu0 0.0
        %1746 = vmatprep.subr.mxu0 0.0
        %1747 = vmatpush1.msra.mxu0 0.0
        %1748 = vmatprep.subr.mxu0 0.0
        %1749 = vmatpush1.msra.mxu0 0.0
        %1750 = vmatprep.subr.mxu0 0.0
        %1751 = vmatpush1.msra.mxu0 0.0
        %1752 = vmatprep.subr.mxu0 0.0
        %1753 = vmatpush1.msra.mxu0 0.0
        %1754 = vmatprep.subr.mxu0 0.0
        %1755 = vmatpush1.msra.mxu0 0.0
        %1756 = vmatprep.subr.mxu0 0.0
        %1757 = vmatpush1.msra.mxu0 0.0
        %1758 = vmatprep.subr.mxu0 0.0
        %1759 = vmatpush1.msra.mxu0 0.0
        %1760 = vmatprep.subr.mxu0 0.0
        %1761 = vmatpush1.msra.mxu0 0.0
        %1762 = vmatprep.subr.mxu0 0.0
        %1763 = vmatpush1.msra.mxu0 0.0
        %1764 = vmatprep.subr.mxu0 0.0
        %1765 = vmatpush1.msra.mxu0 0.0
        %1766 = vmatprep.subr.mxu0 0.0
        %1767 = vmatpush1.msra.mxu0 0.0
        %1768 = vmatprep.subr.mxu0 0.0
        %1769 = vmatpush1.msra.mxu0 0.0
        %1770 = vmatprep.subr.mxu0 0.0
        %1771 = vmatpush1.msra.mxu0 0.0
        %1772 = vmatprep.subr.mxu0 0.0
        %1773 = vmatpush1.msra.mxu0 0.0
        %1774 = vmatprep.subr.mxu0 0.0
        %1775 = vmatpush1.msra.mxu0 0.0
        %1776 = vmatprep.subr.mxu0 0.0
        %1777 = vmatpush1.msra.mxu0 0.0
        %1778 = vmatprep.subr.mxu0 0.0
        %1779 = vmatpush1.msra.mxu0 0.0
        %1780 = vmatprep.mubr.f32.mxu0 0.0
        %1781 = vmatmul.mubr.f32.gmra.mrb[0].mxu0 %v581
        %v1782 = vpop.f32.mrb[0].mxu0
        %v1783 = vadd.f32 %v1701, %v1782
        %v1784 = vpop.f32.mrb[0].mxu0
        %1785 = vmatprep.mubr.f32.mxu0 0.0
        %1786 = vmatmul.mubr.f32.gmra.mrb[0].mxu0 %v584
        %v1787 = vpop.f32.mrb[0].mxu0
        %v1788 = vadd.f32 %v1706, %v1787
        %v1789 = vpop.f32.mrb[0].mxu0
        %1790 = vdwg.mxu0
        %v1791 = vadd.f32 %v1783, %v1714
        %v1792 = vadd.f32 %v1788, %v1715
        %v1793 = vpack.c.bf16 %v1792, %v1791
        %v1795 = vunpack.c.l.b16 %v1793
        %v1796 = vunpack.c.h.b16 %v1793
        %v1797 = vpack.c.b16 %v1795, %v1795
        %v1798 = vpack.c.b16 %v1796, %v1796
        %s1801 = scalar_lea.vmem %s367, 40 [#allocation7]
        %1802 = vst.msk [vmem:[%s1801] sm:$0xf] %vm671, %v1797
        %1803 = vst.msk [vmem:[%s1801 + $0x4] sm:$0xf] %vm671, %v1798
        %s1804 = scalar_lea.vmem %s320, 48 [#allocation2]
        %v1805 = vld [vmem:[%s1804] sm:$0xff]
        %v1806 = vlaneseq
        %v1807 = vshrl.u32 %v1806, 7
        %v1808 = vsub.s32 6, %v1807
        %v1809 = vrot.slane %v385, %v1808
        %v1810 = vmul.f32 %v404, %v1809
        %v1811 = vmul.f32 %v409, %v1809
        %v1812 = vmul.f32 %v414, %v1809
        %v1813 = vmul.f32 %v419, %v1809
        %v1814 = vadd.f32 %v1810, %v432
        %v1815 = vadd.f32 %v1811, %v437
        %v1816 = vadd.f32 %v1812, %v442
        %v1817 = vadd.f32 %v1813, %v447
        %v1818 = vmax.f32 %v1814, 0.0
        %v1819 = vmax.f32 %v1815, 0.0
        %v1820 = vmax.f32 %v1816, 0.0
        %v1821 = vmax.f32 %v1817, 0.0
        %1822 = vxpose.xlu0.b32.start [1/16] %v1818, 128
        %1823 = vxpose.xlu0.b32.cont [2/16] %v1819, 128
        %1824 = vxpose.xlu0.b32.cont [3/16] %v1820, 128
        %1825 = vxpose.xlu0.b32.cont [4/16] %v1821, 128
        %1826 = vxpose.xlu0.b32.cont [5/16] 0.0, 128
        %1827 = vxpose.xlu0.b32.cont [6/16] 0.0, 128
        %1828 = vxpose.xlu0.b32.cont [7/16] 0.0, 128
        %1829 = vxpose.xlu0.b32.cont [8/16] 0.0, 128
        %1830 = vxpose.xlu0.b32.cont [9/16] 0.0, 128
        %1831 = vxpose.xlu0.b32.cont [10/16] 0.0, 128
        %1832 = vxpose.xlu0.b32.cont [11/16] 0.0, 128
        %1833 = vxpose.xlu0.b32.cont [12/16] 0.0, 128
        %1834 = vxpose.xlu0.b32.cont [13/16] 0.0, 128
        %1835 = vxpose.xlu0.b32.cont [14/16] 0.0, 128
        %1836 = vxpose.xlu0.b32.cont [15/16] 0.0, 128
        %1837 = vxpose.xlu0.b32.end [16/16] 0.0, 128
        %v1838 = vpop.trf.xlu0
        %v1839 = vpop.trf.xlu0
        %v1840 = vpop.trf.xlu0
        %v1841 = vpop.trf.xlu0
        %v1842 = vpop.trf.xlu0
        %v1843 = vpop.trf.xlu0
        %v1844 = vpop.trf.xlu0
        %v1845 = vpop.trf.xlu0
        %v1846 = vpop.trf.xlu0
        %v1847 = vpop.trf.xlu0
        %v1848 = vpop.trf.xlu0
        %v1849 = vpop.trf.xlu0
        %v1850 = vpop.trf.xlu0
        %v1851 = vpop.trf.xlu0
        %v1852 = vpop.trf.xlu0
        %v1853 = vpop.trf.xlu0
        %v1855 = vsel %vm489, %v1838, 0
        %v1858 = vsel %vm489, %v1839, 0
        %1860 = vmatprep.subr.mxu0 0.0
        %1861 = vmatpush1.msra.mxu0 %v394
        %1862 = vmatprep.subr.mxu0 0.0
        %1863 = vmatpush1.msra.mxu0 %v395
        %1864 = vmatprep.subr.mxu0 0.0
        %1865 = vmatpush1.msra.mxu0 %v396
        %1866 = vmatprep.subr.mxu0 0.0
        %1867 = vmatpush1.msra.mxu0 %v397
        %1868 = vmatprep.subr.mxu0 0.0
        %1869 = vmatpush1.msra.mxu0 0.0
        %1870 = vmatprep.subr.mxu0 0.0
        %1871 = vmatpush1.msra.mxu0 0.0
        %1872 = vmatprep.subr.mxu0 0.0
        %1873 = vmatpush1.msra.mxu0 0.0
        %1874 = vmatprep.subr.mxu0 0.0
        %1875 = vmatpush1.msra.mxu0 0.0
        %1876 = vmatprep.subr.mxu0 0.0
        %1877 = vmatpush1.msra.mxu0 0.0
        %1878 = vmatprep.subr.mxu0 0.0
        %1879 = vmatpush1.msra.mxu0 0.0
        %1880 = vmatprep.subr.mxu0 0.0
        %1881 = vmatpush1.msra.mxu0 0.0
        %1882 = vmatprep.subr.mxu0 0.0
        %1883 = vmatpush1.msra.mxu0 0.0
        %1884 = vmatprep.subr.mxu0 0.0
        %1885 = vmatpush1.msra.mxu0 0.0
        %1886 = vmatprep.subr.mxu0 0.0
        %1887 = vmatpush1.msra.mxu0 0.0
        %1888 = vmatprep.subr.mxu0 0.0
        %1889 = vmatpush1.msra.mxu0 0.0
        %1890 = vmatprep.subr.mxu0 0.0
        %1891 = vmatpush1.msra.mxu0 0.0
        %1892 = vmatprep.subr.mxu0 0.0
        %1893 = vmatpush1.msra.mxu0 0.0
        %1894 = vmatprep.subr.mxu0 0.0
        %1895 = vmatpush1.msra.mxu0 0.0
        %1896 = vmatprep.subr.mxu0 0.0
        %1897 = vmatpush1.msra.mxu0 0.0
        %1898 = vmatprep.subr.mxu0 0.0
        %1899 = vmatpush1.msra.mxu0 0.0
        %1900 = vmatprep.subr.mxu0 0.0
        %1901 = vmatpush1.msra.mxu0 0.0
        %1902 = vmatprep.subr.mxu0 0.0
        %1903 = vmatpush1.msra.mxu0 0.0
        %1904 = vmatprep.subr.mxu0 0.0
        %1905 = vmatpush1.msra.mxu0 0.0
        %1906 = vmatprep.subr.mxu0 0.0
        %1907 = vmatpush1.msra.mxu0 0.0
        %1908 = vmatprep.subr.mxu0 0.0
        %1909 = vmatpush1.msra.mxu0 0.0
        %1910 = vmatprep.subr.mxu0 0.0
        %1911 = vmatpush1.msra.mxu0 0.0
        %1912 = vmatprep.subr.mxu0 0.0
        %1913 = vmatpush1.msra.mxu0 0.0
        %1914 = vmatprep.subr.mxu0 0.0
        %1915 = vmatpush1.msra.mxu0 0.0
        %1916 = vmatprep.subr.mxu0 0.0
        %1917 = vmatpush1.msra.mxu0 0.0
        %1918 = vmatprep.subr.mxu0 0.0
        %1919 = vmatpush1.msra.mxu0 0.0
        %1920 = vmatprep.subr.mxu0 0.0
        %1921 = vmatpush1.msra.mxu0 0.0
        %1922 = vmatprep.subr.mxu0 0.0
        %1923 = vmatpush1.msra.mxu0 0.0
        %1924 = vmatprep.mubr.f32.mxu0 0.0
        %1925 = vmatmul.mubr.f32.gmra.mrb[0].mxu0 %v1855
        %v1926 = vpop.f32.mrb[0].mxu0
        %v1927 = vadd.f32 0.0, %v1926
        %v1928 = vpop.f32.mrb[0].mxu0
        %1929 = vmatprep.mubr.f32.mxu0 0.0
        %1930 = vmatmul.mubr.f32.gmra.mrb[0].mxu0 %v1858
        %v1931 = vpop.f32.mrb[0].mxu0
        %v1932 = vadd.f32 0.0, %v1931
        %v1933 = vpop.f32.mrb[0].mxu0
        %1934 = vdwg.mxu0
        %s1935 = sadd.s32 %s571, 18
        %s1936 = smul.addr %s1935, 4
        %s1937 = scalar_lea.vmem %s6, %s1936
        %v1938 = vld [vmem:[%s1937] sm:$0xf]
        %v1939 = vld [vmem:[%s1937 + $0x4] sm:$0xf]
        %v1940 = vunpack.c.l.bf16 %v1938
        %v1941 = vunpack.c.l.bf16 %v1939
        %1942 = vmatprep.subr.mxu0 0.0
        %1943 = vmatpush1.msra.mxu0 %v1805
        %1944 = vmatprep.subr.mxu0 0.0
        %1945 = vmatpush1.msra.mxu0 0.0
        %1946 = vmatprep.subr.mxu0 0.0
        %1947 = vmatpush1.msra.mxu0 0.0
        %1948 = vmatprep.subr.mxu0 0.0
        %1949 = vmatpush1.msra.mxu0 0.0
        %1950 = vmatprep.subr.mxu0 0.0
        %1951 = vmatpush1.msra.mxu0 0.0
        %1952 = vmatprep.subr.mxu0 0.0
        %1953 = vmatpush1.msra.mxu0 0.0
        %1954 = vmatprep.subr.mxu0 0.0
        %1955 = vmatpush1.msra.mxu0 0.0
        %1956 = vmatprep.subr.mxu0 0.0
        %1957 = vmatpush1.msra.mxu0 0.0
        %1958 = vmatprep.subr.mxu0 0.0
        %1959 = vmatpush1.msra.mxu0 0.0
        %1960 = vmatprep.subr.mxu0 0.0
        %1961 = vmatpush1.msra.mxu0 0.0
        %1962 = vmatprep.subr.mxu0 0.0
        %1963 = vmatpush1.msra.mxu0 0.0
        %1964 = vmatprep.subr.mxu0 0.0
        %1965 = vmatpush1.msra.mxu0 0.0
        %1966 = vmatprep.subr.mxu0 0.0
        %1967 = vmatpush1.msra.mxu0 0.0
        %1968 = vmatprep.subr.mxu0 0.0
        %1969 = vmatpush1.msra.mxu0 0.0
        %1970 = vmatprep.subr.mxu0 0.0
        %1971 = vmatpush1.msra.mxu0 0.0
        %1972 = vmatprep.subr.mxu0 0.0
        %1973 = vmatpush1.msra.mxu0 0.0
        %1974 = vmatprep.subr.mxu0 0.0
        %1975 = vmatpush1.msra.mxu0 0.0
        %1976 = vmatprep.subr.mxu0 0.0
        %1977 = vmatpush1.msra.mxu0 0.0
        %1978 = vmatprep.subr.mxu0 0.0
        %1979 = vmatpush1.msra.mxu0 0.0
        %1980 = vmatprep.subr.mxu0 0.0
        %1981 = vmatpush1.msra.mxu0 0.0
        %1982 = vmatprep.subr.mxu0 0.0
        %1983 = vmatpush1.msra.mxu0 0.0
        %1984 = vmatprep.subr.mxu0 0.0
        %1985 = vmatpush1.msra.mxu0 0.0
        %1986 = vmatprep.subr.mxu0 0.0
        %1987 = vmatpush1.msra.mxu0 0.0
        %1988 = vmatprep.subr.mxu0 0.0
        %1989 = vmatpush1.msra.mxu0 0.0
        %1990 = vmatprep.subr.mxu0 0.0
        %1991 = vmatpush1.msra.mxu0 0.0
        %1992 = vmatprep.subr.mxu0 0.0
        %1993 = vmatpush1.msra.mxu0 0.0
        %1994 = vmatprep.subr.mxu0 0.0
        %1995 = vmatpush1.msra.mxu0 0.0
        %1996 = vmatprep.subr.mxu0 0.0
        %1997 = vmatpush1.msra.mxu0 0.0
        %1998 = vmatprep.subr.mxu0 0.0
        %1999 = vmatpush1.msra.mxu0 0.0
        %2000 = vmatprep.subr.mxu0 0.0
        %2001 = vmatpush1.msra.mxu0 0.0
        %2002 = vmatprep.subr.mxu0 0.0
        %2003 = vmatpush1.msra.mxu0 0.0
        %2004 = vmatprep.subr.mxu0 0.0
        %2005 = vmatpush1.msra.mxu0 0.0
        %2006 = vmatprep.mubr.f32.mxu0 0.0
        %2007 = vmatmul.mubr.f32.gmra.mrb[0].mxu0 %v581
        %v2008 = vpop.f32.mrb[0].mxu0
        %v2009 = vadd.f32 %v1927, %v2008
        %v2010 = vpop.f32.mrb[0].mxu0
        %2011 = vmatprep.mubr.f32.mxu0 0.0
        %2012 = vmatmul.mubr.f32.gmra.mrb[0].mxu0 %v584
        %v2013 = vpop.f32.mrb[0].mxu0
        %v2014 = vadd.f32 %v1932, %v2013
        %v2015 = vpop.f32.mrb[0].mxu0
        %2016 = vdwg.mxu0
        %v2017 = vadd.f32 %v2009, %v1940
        %v2018 = vadd.f32 %v2014, %v1941
        %v2019 = vpack.c.bf16 %v2018, %v2017
        %v2021 = vunpack.c.l.b16 %v2019
        %v2022 = vunpack.c.h.b16 %v2019
        %v2023 = vpack.c.b16 %v2021, %v2021
        %v2024 = vpack.c.b16 %v2022, %v2022
        %s2027 = scalar_lea.vmem %s367, 48 [#allocation7]
        %2028 = vst.msk [vmem:[%s2027] sm:$0xf] %vm671, %v2023
        %2029 = vst.msk [vmem:[%s2027 + $0x4] sm:$0xf] %vm671, %v2024
        %s2030 = scalar_lea.vmem %s320, 56 [#allocation2]
        %v2031 = vld [vmem:[%s2030] sm:$0xff]
        %v2032 = vlaneseq
        %v2033 = vshrl.u32 %v2032, 7
        %v2034 = vsub.s32 7, %v2033
        %v2035 = vrot.slane %v385, %v2034
        %v2036 = vmul.f32 %v404, %v2035
        %v2037 = vmul.f32 %v409, %v2035
        %v2038 = vmul.f32 %v414, %v2035
        %v2039 = vmul.f32 %v419, %v2035
        %v2040 = vadd.f32 %v2036, %v432
        %v2041 = vadd.f32 %v2037, %v437
        %v2042 = vadd.f32 %v2038, %v442
        %v2043 = vadd.f32 %v2039, %v447
        %v2044 = vmax.f32 %v2040, 0.0
        %v2045 = vmax.f32 %v2041, 0.0
        %v2046 = vmax.f32 %v2042, 0.0
        %v2047 = vmax.f32 %v2043, 0.0
        %2048 = vxpose.xlu0.b32.start [1/16] %v2044, 128
        %2049 = vxpose.xlu0.b32.cont [2/16] %v2045, 128
        %2050 = vxpose.xlu0.b32.cont [3/16] %v2046, 128
        %2051 = vxpose.xlu0.b32.cont [4/16] %v2047, 128
        %2052 = vxpose.xlu0.b32.cont [5/16] 0.0, 128
        %2053 = vxpose.xlu0.b32.cont [6/16] 0.0, 128
        %2054 = vxpose.xlu0.b32.cont [7/16] 0.0, 128
        %2055 = vxpose.xlu0.b32.cont [8/16] 0.0, 128
        %2056 = vxpose.xlu0.b32.cont [9/16] 0.0, 128
        %2057 = vxpose.xlu0.b32.cont [10/16] 0.0, 128
        %2058 = vxpose.xlu0.b32.cont [11/16] 0.0, 128
        %2059 = vxpose.xlu0.b32.cont [12/16] 0.0, 128
        %2060 = vxpose.xlu0.b32.cont [13/16] 0.0, 128
        %2061 = vxpose.xlu0.b32.cont [14/16] 0.0, 128
        %2062 = vxpose.xlu0.b32.cont [15/16] 0.0, 128
        %2063 = vxpose.xlu0.b32.end [16/16] 0.0, 128
        %v2064 = vpop.trf.xlu0
        %v2065 = vpop.trf.xlu0
        %v2066 = vpop.trf.xlu0
        %v2067 = vpop.trf.xlu0
        %v2068 = vpop.trf.xlu0
        %v2069 = vpop.trf.xlu0
        %v2070 = vpop.trf.xlu0
        %v2071 = vpop.trf.xlu0
        %v2072 = vpop.trf.xlu0
        %v2073 = vpop.trf.xlu0
        %v2074 = vpop.trf.xlu0
        %v2075 = vpop.trf.xlu0
        %v2076 = vpop.trf.xlu0
        %v2077 = vpop.trf.xlu0
        %v2078 = vpop.trf.xlu0
        %v2079 = vpop.trf.xlu0
        %v2081 = vsel %vm489, %v2064, 0
        %v2084 = vsel %vm489, %v2065, 0
        %2086 = vmatprep.subr.mxu0 0.0
        %2087 = vmatpush1.msra.mxu0 %v394
        %2088 = vmatprep.subr.mxu0 0.0
        %2089 = vmatpush1.msra.mxu0 %v395
        %2090 = vmatprep.subr.mxu0 0.0
        %2091 = vmatpush1.msra.mxu0 %v396
        %2092 = vmatprep.subr.mxu0 0.0
        %2093 = vmatpush1.msra.mxu0 %v397
        %2094 = vmatprep.subr.mxu0 0.0
        %2095 = vmatpush1.msra.mxu0 0.0
        %2096 = vmatprep.subr.mxu0 0.0
        %2097 = vmatpush1.msra.mxu0 0.0
        %2098 = vmatprep.subr.mxu0 0.0
        %2099 = vmatpush1.msra.mxu0 0.0
        %2100 = vmatprep.subr.mxu0 0.0
        %2101 = vmatpush1.msra.mxu0 0.0
        %2102 = vmatprep.subr.mxu0 0.0
        %2103 = vmatpush1.msra.mxu0 0.0
        %2104 = vmatprep.subr.mxu0 0.0
        %2105 = vmatpush1.msra.mxu0 0.0
        %2106 = vmatprep.subr.mxu0 0.0
        %2107 = vmatpush1.msra.mxu0 0.0
        %2108 = vmatprep.subr.mxu0 0.0
        %2109 = vmatpush1.msra.mxu0 0.0
        %2110 = vmatprep.subr.mxu0 0.0
        %2111 = vmatpush1.msra.mxu0 0.0
        %2112 = vmatprep.subr.mxu0 0.0
        %2113 = vmatpush1.msra.mxu0 0.0
        %2114 = vmatprep.subr.mxu0 0.0
        %2115 = vmatpush1.msra.mxu0 0.0
        %2116 = vmatprep.subr.mxu0 0.0
        %2117 = vmatpush1.msra.mxu0 0.0
        %2118 = vmatprep.subr.mxu0 0.0
        %2119 = vmatpush1.msra.mxu0 0.0
        %2120 = vmatprep.subr.mxu0 0.0
        %2121 = vmatpush1.msra.mxu0 0.0
        %2122 = vmatprep.subr.mxu0 0.0
        %2123 = vmatpush1.msra.mxu0 0.0
        %2124 = vmatprep.subr.mxu0 0.0
        %2125 = vmatpush1.msra.mxu0 0.0
        %2126 = vmatprep.subr.mxu0 0.0
        %2127 = vmatpush1.msra.mxu0 0.0
        %2128 = vmatprep.subr.mxu0 0.0
        %2129 = vmatpush1.msra.mxu0 0.0
        %2130 = vmatprep.subr.mxu0 0.0
        %2131 = vmatpush1.msra.mxu0 0.0
        %2132 = vmatprep.subr.mxu0 0.0
        %2133 = vmatpush1.msra.mxu0 0.0
        %2134 = vmatprep.subr.mxu0 0.0
        %2135 = vmatpush1.msra.mxu0 0.0
        %2136 = vmatprep.subr.mxu0 0.0
        %2137 = vmatpush1.msra.mxu0 0.0
        %2138 = vmatprep.subr.mxu0 0.0
        %2139 = vmatpush1.msra.mxu0 0.0
        %2140 = vmatprep.subr.mxu0 0.0
        %2141 = vmatpush1.msra.mxu0 0.0
        %2142 = vmatprep.subr.mxu0 0.0
        %2143 = vmatpush1.msra.mxu0 0.0
        %2144 = vmatprep.subr.mxu0 0.0
        %2145 = vmatpush1.msra.mxu0 0.0
        %2146 = vmatprep.subr.mxu0 0.0
        %2147 = vmatpush1.msra.mxu0 0.0
        %2148 = vmatprep.subr.mxu0 0.0
        %2149 = vmatpush1.msra.mxu0 0.0
        %2150 = vmatprep.mubr.f32.mxu0 0.0
        %2151 = vmatmul.mubr.f32.gmra.mrb[0].mxu0 %v2081
        %v2152 = vpop.f32.mrb[0].mxu0
        %v2153 = vadd.f32 0.0, %v2152
        %v2154 = vpop.f32.mrb[0].mxu0
        %2155 = vmatprep.mubr.f32.mxu0 0.0
        %2156 = vmatmul.mubr.f32.gmra.mrb[0].mxu0 %v2084
        %v2157 = vpop.f32.mrb[0].mxu0
        %v2158 = vadd.f32 0.0, %v2157
        %v2159 = vpop.f32.mrb[0].mxu0
        %2160 = vdwg.mxu0
        %s2161 = sadd.s32 %s571, 21
        %s2162 = smul.addr %s2161, 4
        %s2163 = scalar_lea.vmem %s6, %s2162
        %v2164 = vld [vmem:[%s2163] sm:$0xf]
        %v2165 = vld [vmem:[%s2163 + $0x4] sm:$0xf]
        %v2166 = vunpack.c.l.bf16 %v2164
        %v2167 = vunpack.c.l.bf16 %v2165
        %2168 = vmatprep.subr.mxu0 0.0
        %2169 = vmatpush1.msra.mxu0 %v2031
        %2170 = vmatprep.subr.mxu0 0.0
        %2171 = vmatpush1.msra.mxu0 0.0
        %2172 = vmatprep.subr.mxu0 0.0
        %2173 = vmatpush1.msra.mxu0 0.0
        %2174 = vmatprep.subr.mxu0 0.0
        %2175 = vmatpush1.msra.mxu0 0.0
        %2176 = vmatprep.subr.mxu0 0.0
        %2177 = vmatpush1.msra.mxu0 0.0
        %2178 = vmatprep.subr.mxu0 0.0
        %2179 = vmatpush1.msra.mxu0 0.0
        %2180 = vmatprep.subr.mxu0 0.0
        %2181 = vmatpush1.msra.mxu0 0.0
        %2182 = vmatprep.subr.mxu0 0.0
        %2183 = vmatpush1.msra.mxu0 0.0
        %2184 = vmatprep.subr.mxu0 0.0
        %2185 = vmatpush1.msra.mxu0 0.0
        %2186 = vmatprep.subr.mxu0 0.0
        %2187 = vmatpush1.msra.mxu0 0.0
        %2188 = vmatprep.subr.mxu0 0.0
        %2189 = vmatpush1.msra.mxu0 0.0
        %2190 = vmatprep.subr.mxu0 0.0
        %2191 = vmatpush1.msra.mxu0 0.0
        %2192 = vmatprep.subr.mxu0 0.0
        %2193 = vmatpush1.msra.mxu0 0.0
        %2194 = vmatprep.subr.mxu0 0.0
        %2195 = vmatpush1.msra.mxu0 0.0
        %2196 = vmatprep.subr.mxu0 0.0
        %2197 = vmatpush1.msra.mxu0 0.0
        %2198 = vmatprep.subr.mxu0 0.0
        %2199 = vmatpush1.msra.mxu0 0.0
        %2200 = vmatprep.subr.mxu0 0.0
        %2201 = vmatpush1.msra.mxu0 0.0
        %2202 = vmatprep.subr.mxu0 0.0
        %2203 = vmatpush1.msra.mxu0 0.0
        %2204 = vmatprep.subr.mxu0 0.0
        %2205 = vmatpush1.msra.mxu0 0.0
        %2206 = vmatprep.subr.mxu0 0.0
        %2207 = vmatpush1.msra.mxu0 0.0
        %2208 = vmatprep.subr.mxu0 0.0
        %2209 = vmatpush1.msra.mxu0 0.0
        %2210 = vmatprep.subr.mxu0 0.0
        %2211 = vmatpush1.msra.mxu0 0.0
        %2212 = vmatprep.subr.mxu0 0.0
        %2213 = vmatpush1.msra.mxu0 0.0
        %2214 = vmatprep.subr.mxu0 0.0
        %2215 = vmatpush1.msra.mxu0 0.0
        %2216 = vmatprep.subr.mxu0 0.0
        %2217 = vmatpush1.msra.mxu0 0.0
        %2218 = vmatprep.subr.mxu0 0.0
        %2219 = vmatpush1.msra.mxu0 0.0
        %2220 = vmatprep.subr.mxu0 0.0
        %2221 = vmatpush1.msra.mxu0 0.0
        %2222 = vmatprep.subr.mxu0 0.0
        %2223 = vmatpush1.msra.mxu0 0.0
        %2224 = vmatprep.subr.mxu0 0.0
        %2225 = vmatpush1.msra.mxu0 0.0
        %2226 = vmatprep.subr.mxu0 0.0
        %2227 = vmatpush1.msra.mxu0 0.0
        %2228 = vmatprep.subr.mxu0 0.0
        %2229 = vmatpush1.msra.mxu0 0.0
        %2230 = vmatprep.subr.mxu0 0.0
        %2231 = vmatpush1.msra.mxu0 0.0
        %2232 = vmatprep.mubr.f32.mxu0 0.0
        %2233 = vmatmul.mubr.f32.gmra.mrb[0].mxu0 %v581
        %v2234 = vpop.f32.mrb[0].mxu0
        %v2235 = vadd.f32 %v2153, %v2234
        %v2236 = vpop.f32.mrb[0].mxu0
        %2237 = vmatprep.mubr.f32.mxu0 0.0
        %2238 = vmatmul.mubr.f32.gmra.mrb[0].mxu0 %v584
        %v2239 = vpop.f32.mrb[0].mxu0
        %v2240 = vadd.f32 %v2158, %v2239
        %v2241 = vpop.f32.mrb[0].mxu0
        %2242 = vdwg.mxu0
        %v2243 = vadd.f32 %v2235, %v2166
        %v2244 = vadd.f32 %v2240, %v2167
        %v2245 = vpack.c.bf16 %v2244, %v2243
        %v2247 = vunpack.c.l.b16 %v2245
        %v2248 = vunpack.c.h.b16 %v2245
        %v2249 = vpack.c.b16 %v2247, %v2247
        %v2250 = vpack.c.b16 %v2248, %v2248
        %s2253 = scalar_lea.vmem %s367, 56 [#allocation7]
        %2254 = vst.msk [vmem:[%s2253] sm:$0xf] %vm671, %v2249
        %2255 = vst.msk [vmem:[%s2253 + $0x4] sm:$0xf] %vm671, %v2250
        %s2256 = sand.u32 %s213, 1
        %s2257 = scalar_lea.sflag [#allocation4], %s2256
        %s2258 = sand.u32 %s213, 1
        %s2259 = smul.addr %s2258, 64
        %s2260 = scalar_lea.vmem [#allocation7], %s2259
        // Predicated region
        $region57: #{tpu_custom_call.1} parent=47 // pred_check
          %p2261 = pneg %p223
        $region58: #{tpu_custom_call.1} parent=47 // pred_check_branch
          %2263 = sbr.rel (%p2261) target = $region60
        $region59: #{tpu_custom_call.1} parent=47 // pred_region
          %s2264 = smul.u32 8, %s30
          %s2266 = ssub.s32 1024, 1024
          %2267 = vsyncadd %s2257, %s2266
          %s2268 = smul.addr %s2264, 2
          %s2269 = smul.addr %s29, 32
          %s2270 = sadd.s32 %s2268, %s2269
          %s2271 = smul.addr %s2270, 64
          %s2272 = scalar_lea.hbm %s7, %s2271
          %s2273 = sshll.u32 %s2260, 4
          %s2274 = int_to_ptr.vmem [resolvable:$true] %s2273
          %2279 = dma.vmem_to_hbm [thread:$0]  %s2274, 1024, %s2272, %s2257, 64, 64, 4
        $region60: #{tpu_custom_call.1} parent=47 // pred_fallthru
          _
      $region48: #{tpu_custom_call.1} parent=5 // pred_fallthru
        _
      %p2280 = scmp.le.s32.totalorder 2, %s20
      // Predicated region
      $region61: #{tpu_custom_call.1} parent=5 // pred_check
        %p2281 = pneg %p2280
      $region62: #{tpu_custom_call.1} parent=5 // pred_check_branch
        %2283 = sbr.rel (%p2281) target = $region64
      $region63: #{tpu_custom_call.1} parent=5 // pred_region
        %s2284 = ssub.s32 %s20, 2
        // Predicated region
        $region65: #{tpu_custom_call.1} parent=63 // pred_check
          %p2285 = pneg %p229
        $region66: #{tpu_custom_call.1} parent=63 // pred_check_branch
          %2287 = sbr.rel (%p2285) target = $region68
        $region67: #{tpu_custom_call.1} parent=63 // pred_region
          %s2288 = sand.u32 %s214, 1
          %s2289 = scalar_lea.sflag [#allocation4], %s2288
          %s2290 = sand.u32 %s214, 1
          %s2291 = smul.addr %s2290, 64
          %s2292 = scalar_lea.vmem [#allocation7], %s2291
          %2293 = dma.done %s2289, 1024
        $region68: #{tpu_custom_call.1} parent=63 // pred_fallthru
          _
      $region64: #{tpu_custom_call.1} parent=5 // pred_fallthru
        _
    $region6: #{tpu_custom_call.1} parent=1 // loop_footer
      %s24 = sadd.s32 1, %s20
    $region7: #{tpu_custom_call.1} parent=1 // loop_footer_branch
      %19 = sbr.rel target = $region3
    $region8: #{tpu_custom_call.1} parent=1 // loop_exit
      _
    %2294 = vsyncpa [#allocation3], 1
    %s2295 = scalar_lea.sflag [#allocation3], 1
    %2296 = vsyncpa %s2295, 1
    %2297 = vsyncpa [#allocation6], 1
    %2298 = vsyncpa [#allocation4], 1
    %s2299 = scalar_lea.sflag [#allocation4], 1
    %2300 = vsyncpa %s2299, 1

</llo_original>
